<compile_context>
chip_gen: v7x
topology: tpu7x:2x2x1
jax: 0.10.0
libtpu: 0.0.40
codegen_flags: <defaults>
</compile_context>

<pallas_src>
import functools

import jax
import jax.numpy as jnp
from jax.experimental import pallas as pl
from jax.experimental.pallas import tpu as pltpu


# ----------------------------------------------------------------------------
# Pallas kernels (fused)
# ----------------------------------------------------------------------------
def _mha_addnorm_kernel(*refs, heads, embed_size, same_qkv):
    """Multi-head attention + residual-add + LayerNorm for one batch element."""
    if same_qkv:
        (xq_ref, mask_ref, wv_ref, wk_ref, wq_ref,
         wo_ref, bo_ref, g_ref, beta_ref, out_ref) = refs
        xv_ref = xk_ref = xq_ref
    else:
        (xv_ref, xk_ref, xq_ref, mask_ref, wv_ref, wk_ref, wq_ref,
         wo_ref, bo_ref, g_ref, beta_ref, out_ref) = refs

    bf16 = jnp.bfloat16
    D = embed_size // heads
    inv_scale = jnp.float32(1.0 / (embed_size ** 0.5))

    xq = xq_ref[0]                      # (Sq, E) f32 -- also the residual
    xk = xk_ref[0]                      # (Sk, E) f32
    xv = xv_ref[0]                      # (Sk, E) f32
    mask = mask_ref[0]                  # (1 or Sq, Sk) f32, 0.0 == masked

    # Lane-dense projections: one (S,E)@(E,E) bf16 matmul each (all heads at once).
    q2 = jnp.dot(xq.astype(bf16), wq_ref[...], preferred_element_type=jnp.float32)
    k2 = jnp.dot(xk.astype(bf16), wk_ref[...], preferred_element_type=jnp.float32)
    v2 = jnp.dot(xv.astype(bf16), wv_ref[...], preferred_element_type=jnp.float32)

    # Fold 1/sqrt(E) into q: an (Sq,E) multiply instead of per-head (Sq,Sk) ones.
    q2 = q2 * inv_scale

    # Head split = static lane slices stacked on a new leading axis (layout
    # only; every matmul below stays head-batched).
    qh = jnp.stack([q2[:, h * D:(h + 1) * D] for h in range(heads)]).astype(bf16)
    kh = jnp.stack([k2[:, h * D:(h + 1) * D] for h in range(heads)]).astype(bf16)
    vh = jnp.stack([v2[:, h * D:(h + 1) * D] for h in range(heads)]).astype(bf16)

    # Energies for all heads at once: (H, Sq, Sk)
    energy = jnp.einsum('hqd,hkd->hqk', qh, kh,
                        preferred_element_type=jnp.float32)

    # Reference applies masked_fill(-1e20) BEFORE /sqrt(E); with the scale
    # folded into q the equivalent masked value is -1e20/sqrt(E).  Single
    # select, broadcast over heads.
    energy = jnp.where(mask == 0.0, jnp.float32(-1e20) * inv_scale, energy)

    m = jnp.max(energy, axis=-1, keepdims=True)
    p = jnp.exp(energy - m)
    attn = p * pl.reciprocal(jnp.sum(p, axis=-1, keepdims=True), approx=True)

    # Context per head: (H, Sq, D)
    ctx = jnp.einsum('hqk,hkd->hqd', attn.astype(bf16), vh,
                     preferred_element_type=jnp.float32)

    # fc_out without concatenating heads: wo arrives as (H, D, E), so
    # out = sum_h ctx_h @ wo_h  + bias.
    proj = jnp.einsum('hqd,hde->hqe', ctx.astype(bf16), wo_ref[...],
                      preferred_element_type=jnp.float32)
    out = jnp.sum(proj, axis=0) + bo_ref[...]

    # Fused Add & LayerNorm epilogue (dropout = identity in eval).
    y = out + xq
    mean = jnp.mean(y, axis=-1, keepdims=True)
    c = y - mean
    var = jnp.mean(c * c, axis=-1, keepdims=True)
    out_ref[0] = (c * jax.lax.rsqrt(var + jnp.float32(1e-5))) * g_ref[...] + beta_ref[...]


def _ffn_addnorm_kernel(x_ref, w1_ref, b1_ref, w2_ref, b2_ref, g_ref, beta_ref,
                        out_ref):
    """Linear -> ReLU -> Linear + residual-add + LayerNorm, per batch element."""
    bf16 = jnp.bfloat16
    x = x_ref[0]                                               # (S, E) f32
    h = jnp.dot(x.astype(bf16), w1_ref[...],
                preferred_element_type=jnp.float32) + b1_ref[...]
    h = jnp.maximum(h, 0.0)
    y = jnp.dot(h.astype(bf16), w2_ref[...],
                preferred_element_type=jnp.float32) + b2_ref[...]
    y = y + x
    mean = jnp.mean(y, axis=-1, keepdims=True)
    c = y - mean
    var = jnp.mean(c * c, axis=-1, keepdims=True)
    out_ref[0] = (c * jax.lax.rsqrt(var + jnp.float32(1e-5))) * g_ref[...] + beta_ref[...]


# ----------------------------------------------------------------------------
# Wrappers (pallas_call plumbing; all weight re-layout happens once, host-side)
# ----------------------------------------------------------------------------
def _attention_addnorm(values, keys, queries, mask, attn_p, ln_p, heads):
    """LayerNorm(SelfAttention(values, keys, queries, mask) + queries)."""
    N, Sq, E = queries.shape
    Sk = keys.shape[1]
    D = E // heads
    bf16 = jnp.bfloat16

    # Per-head Linear(D, D, bias=False) is shared across heads: expand it once
    # to a block-diagonal (E, E), pre-transposed so the kernel computes x @ W.
    eye = jnp.eye(heads, dtype=jnp.float32)
    wq_blk = jnp.kron(eye, attn_p["wq"].T).astype(bf16)        # (E, E)
    wk_blk = jnp.kron(eye, attn_p["wk"].T).astype(bf16)
    wv_blk = jnp.kron(eye, attn_p["wv"].T).astype(bf16)
    wo_r = attn_p["wo"].T.reshape(heads, D, E).astype(bf16)    # (H, D, E)

    # Mask at its natural broadcast size (N, 1 or Sq, Sk) -- no big DMA.
    mask3 = mask.astype(jnp.float32).reshape(N, -1, Sk)
    mq = mask3.shape[1]

    same_qkv = (values is keys) and (keys is queries)
    kernel = functools.partial(_mha_addnorm_kernel, heads=heads,
                               embed_size=E, same_qkv=same_qkv)

    q_spec = pl.BlockSpec((1, Sq, E), lambda b: (b, 0, 0))
    kv_spec = pl.BlockSpec((1, Sk, E), lambda b: (b, 0, 0))
    mask_spec = pl.BlockSpec((1, mq, Sk), lambda b: (b, 0, 0))
    w_spec = pl.BlockSpec((E, E), lambda b: (0, 0))
    wo_spec = pl.BlockSpec((heads, D, E), lambda b: (0, 0, 0))
    row_spec = pl.BlockSpec((1, E), lambda b: (0, 0))

    if same_qkv:
        operands = (queries, mask3, wv_blk, wk_blk, wq_blk, wo_r,
                    attn_p["bo"], ln_p["g"], ln_p["b"])
        in_specs = [q_spec, mask_spec, w_spec, w_spec, w_spec, wo_spec,
                    row_spec, row_spec, row_spec]
    else:
        operands = (values, keys, queries, mask3, wv_blk, wk_blk, wq_blk, wo_r,
                    attn_p["bo"], ln_p["g"], ln_p["b"])
        in_specs = [kv_spec, kv_spec, q_spec, mask_spec, w_spec, w_spec,
                    w_spec, wo_spec, row_spec, row_spec, row_spec]

    return pl.pallas_call(
        kernel,
        out_shape=jax.ShapeDtypeStruct((N, Sq, E), jnp.float32),
        grid=(N,),
        in_specs=in_specs,
        out_specs=pl.BlockSpec((1, Sq, E), lambda b: (b, 0, 0)),
        compiler_params=pltpu.CompilerParams(dimension_semantics=("parallel",)),
    )(*operands)


def _ffn_addnorm(x, ffn_p, ln_p):
    """LayerNorm(FFN(x) + x)  with  FFN = Linear -> ReLU -> Linear."""
    N, S, E = x.shape
    F = ffn_p["w1"].shape[0]
    bf16 = jnp.bfloat16
    w1_t = ffn_p["w1"].T.astype(bf16)   # (E, F)
    w2_t = ffn_p["w2"].T.astype(bf16)   # (F, E)
    return pl.pallas_call(
        _ffn_addnorm_kernel,
        out_shape=jax.ShapeDtypeStruct((N, S, E), jnp.float32),
        grid=(N,),
        in_specs=[
            pl.BlockSpec((1, S, E), lambda b: (b, 0, 0)),
            pl.BlockSpec((E, F), lambda b: (0, 0)),
            pl.BlockSpec((1, F), lambda b: (0, 0)),
            pl.BlockSpec((F, E), lambda b: (0, 0)),
            pl.BlockSpec((1, E), lambda b: (0, 0)),
            pl.BlockSpec((1, E), lambda b: (0, 0)),
            pl.BlockSpec((1, E), lambda b: (0, 0)),
        ],
        out_specs=pl.BlockSpec((1, S, E), lambda b: (b, 0, 0)),
        compiler_params=pltpu.CompilerParams(dimension_semantics=("parallel",)),
    )(x, w1_t, ffn_p["b1"], w2_t, ffn_p["b2"], ln_p["g"], ln_p["b"])


def decoder_block(x, key, value, src_mask, target_mask, params, *, heads):
    # attention = self.attention(x, x, x, target_mask)
    # query     = dropout(norm(attention + x))          (dropout = identity, eval)
    query = _attention_addnorm(x, x, x, target_mask,
                               params["self_attn"], params["norm"], heads)
    # out = self.transformer_block(query, key, value, src_mask)
    # Canonical TransformerBlock semantics: the decoder-side `query` is the
    # attention query AND the residual; encoder key/value feed K and V.
    x2 = _attention_addnorm(value, key, query, src_mask,
                            params["cross_attn"], params["tb_norm1"], heads)
    out = _ffn_addnorm(x2, params["ffn"], params["tb_norm2"])
    return out


# ----------------------------------------------------------------------------
# Deterministic parameter init (PyTorch-like uniform(-1/sqrt(in), 1/sqrt(in)))
# ----------------------------------------------------------------------------
def init_params(rng, embed_size, heads, forward_expansion):
    D = embed_size // heads
    F = forward_expansion * embed_size
    ks = jax.random.split(rng, 16)

    def lin(k, out_f, in_f):
        s = 1.0 / (in_f ** 0.5)
        return jax.random.uniform(k, (out_f, in_f), jnp.float32, -s, s)

    def attn_params(k0, k1, k2, k3, k4):
        return {
            "wv": lin(k0, D, D),
            "wk": lin(k1, D, D),
            "wq": lin(k2, D, D),
            "wo": lin(k3, embed_size, embed_size),
            "bo": jax.random.uniform(k4, (1, embed_size), jnp.float32,
                                     -1.0 / embed_size ** 0.5, 1.0 / embed_size ** 0.5),
        }

    ln = lambda: {"g": jnp.ones((1, embed_size), jnp.float32),
                  "b": jnp.zeros((1, embed_size), jnp.float32)}

    return {
        "self_attn": attn_params(*ks[0:5]),
        "norm": ln(),
        "cross_attn": attn_params(*ks[5:10]),
        "tb_norm1": ln(),
        "tb_norm2": ln(),
        "ffn": {
            "w1": lin(ks[10], F, embed_size),
            "b1": jax.random.uniform(ks[11], (1, F), jnp.float32,
                                     -1.0 / embed_size ** 0.5, 1.0 / embed_size ** 0.5),
            "w2": lin(ks[12], embed_size, F),
            "b2": jax.random.uniform(ks[13], (1, embed_size), jnp.float32,
                                     -1.0 / F ** 0.5, 1.0 / F ** 0.5),
        },
    }


# ----------------------------------------------------------------------------
if __name__ == "__main__":
    batch, seq, embed_size, heads, forward_expansion = 2, 8, 32, 4, 4

    root = jax.random.PRNGKey(0)
    k_x, k_k, k_v, k_p = jax.random.split(root, 4)

    x = jax.random.normal(k_x, (batch, seq, embed_size), jnp.float32)        # decoder input
    enc_key = jax.random.normal(k_k, (batch, seq, embed_size), jnp.float32)  # encoder keys
    enc_val = jax.random.normal(k_v, (batch, seq, embed_size), jnp.float32)  # encoder values

    # causal target mask (N, 1, S, S); full src mask (N, 1, 1, S); 0.0 => masked
    target_mask = jnp.broadcast_to(
        jnp.tril(jnp.ones((seq, seq), jnp.float32))[None, None],
        (batch, 1, seq, seq))
    src_mask = jnp.ones((batch, 1, 1, seq), jnp.float32)

    params = init_params(k_p, embed_size, heads, forward_expansion)

    fwd = jax.jit(functools.partial(decoder_block, heads=heads))
    out = fwd(x, enc_key, enc_val, src_mask, target_mask, params)
    out = jax.block_until_ready(out)
    assert out.shape == (batch, seq, embed_size) and out.dtype == jnp.float32
    print("KERNEL_OK")
</pallas_src>

<mosaic_0001>
module attributes {stable_mosaic.version = 11 : i64} {
  func.func @_mha_addnorm_kernel(%arg0: i32, %arg1: memref<1x8x32xf32, #tpu.memory_space<vmem>>, %arg2: memref<1x8x8xf32, #tpu.memory_space<vmem>>, %arg3: memref<32x32xbf16, #tpu.memory_space<vmem>>, %arg4: memref<32x32xbf16, #tpu.memory_space<vmem>>, %arg5: memref<32x32xbf16, #tpu.memory_space<vmem>>, %arg6: memref<4x8x32xbf16, #tpu.memory_space<vmem>>, %arg7: memref<1x32xf32, #tpu.memory_space<vmem>>, %arg8: memref<1x32xf32, #tpu.memory_space<vmem>>, %arg9: memref<1x32xf32, #tpu.memory_space<vmem>>, %arg10: memref<1x8x32xf32, #tpu.memory_space<vmem>>) attributes {dimension_semantics = [#tpu.dimension_semantics<parallel>], iteration_bounds = array<i64: 2>, scalar_prefetch = 0 : i64, scratch_operands = 0 : i64, tpu.core_type = #tpu.core_type<tc>, window_params = [{transform_indices = @transform_0, window_bounds = array<i64: 1, 8, 32>}, {transform_indices = @transform_1, window_bounds = array<i64: 1, 8, 8>}, {pipeline_mode = #tpu.pipeline_mode<synchronous>, transform_indices = @transform_2, window_bounds = array<i64: 32, 32>}, {pipeline_mode = #tpu.pipeline_mode<synchronous>, transform_indices = @transform_3, window_bounds = array<i64: 32, 32>}, {pipeline_mode = #tpu.pipeline_mode<synchronous>, transform_indices = @transform_4, window_bounds = array<i64: 32, 32>}, {pipeline_mode = #tpu.pipeline_mode<synchronous>, transform_indices = @transform_5, window_bounds = array<i64: 4, 8, 32>}, {pipeline_mode = #tpu.pipeline_mode<synchronous>, transform_indices = @transform_6, window_bounds = array<i64: 1, 32>}, {pipeline_mode = #tpu.pipeline_mode<synchronous>, transform_indices = @transform_7, window_bounds = array<i64: 1, 32>}, {pipeline_mode = #tpu.pipeline_mode<synchronous>, transform_indices = @transform_8, window_bounds = array<i64: 1, 32>}, {transform_indices = @transform_9, window_bounds = array<i64: 1, 8, 32>}]} {
    %c0 = arith.constant 0 : index
    %c0_0 = arith.constant 0 : index
    %c0_1 = arith.constant 0 : index
    %0 = vector.load %arg1[%c0, %c0_0, %c0_1] : memref<1x8x32xf32, #tpu.memory_space<vmem>>, vector<1x8x32xf32>
    %1 = vector.shape_cast %0 : vector<1x8x32xf32> to vector<8x32xf32>
    %c0_2 = arith.constant 0 : index
    %c0_3 = arith.constant 0 : index
    %c0_4 = arith.constant 0 : index
    %2 = vector.load %arg1[%c0_2, %c0_3, %c0_4] : memref<1x8x32xf32, #tpu.memory_space<vmem>>, vector<1x8x32xf32>
    %3 = vector.shape_cast %2 : vector<1x8x32xf32> to vector<8x32xf32>
    %c0_5 = arith.constant 0 : index
    %c0_6 = arith.constant 0 : index
    %c0_7 = arith.constant 0 : index
    %4 = vector.load %arg1[%c0_5, %c0_6, %c0_7] : memref<1x8x32xf32, #tpu.memory_space<vmem>>, vector<1x8x32xf32>
    %5 = vector.shape_cast %4 : vector<1x8x32xf32> to vector<8x32xf32>
    %c0_8 = arith.constant 0 : index
    %c0_9 = arith.constant 0 : index
    %c0_10 = arith.constant 0 : index
    %6 = vector.load %arg2[%c0_8, %c0_9, %c0_10] : memref<1x8x8xf32, #tpu.memory_space<vmem>>, vector<1x8x8xf32>
    %7 = vector.shape_cast %6 : vector<1x8x8xf32> to vector<8x8xf32>
    %8 = arith.truncf %1 : vector<8x32xf32> to vector<8x32xbf16>
    %c0_11 = arith.constant 0 : index
    %c0_12 = arith.constant 0 : index
    %9 = vector.load %arg5[%c0_11, %c0_12] : memref<32x32xbf16, #tpu.memory_space<vmem>>, vector<32x32xbf16>
    %cst = arith.constant dense<0.000000e+00> : vector<8x32xf32>
    %10 = tpu.matmul %8, %9, %cst {dimension_numbers = #tpu.dot_dimension_numbers<[1], [0], [0], [1], [0, 0, 1, 1], [], []>} : vector<8x32xbf16>, vector<32x32xbf16>, vector<8x32xf32> -> vector<8x32xf32>
    %11 = arith.truncf %3 : vector<8x32xf32> to vector<8x32xbf16>
    %c0_13 = arith.constant 0 : index
    %c0_14 = arith.constant 0 : index
    %12 = vector.load %arg4[%c0_13, %c0_14] : memref<32x32xbf16, #tpu.memory_space<vmem>>, vector<32x32xbf16>
    %cst_15 = arith.constant dense<0.000000e+00> : vector<8x32xf32>
    %13 = tpu.matmul %11, %12, %cst_15 {dimension_numbers = #tpu.dot_dimension_numbers<[1], [0], [0], [1], [0, 0, 1, 1], [], []>} : vector<8x32xbf16>, vector<32x32xbf16>, vector<8x32xf32> -> vector<8x32xf32>
    %14 = arith.truncf %5 : vector<8x32xf32> to vector<8x32xbf16>
    %c0_16 = arith.constant 0 : index
    %c0_17 = arith.constant 0 : index
    %15 = vector.load %arg3[%c0_16, %c0_17] : memref<32x32xbf16, #tpu.memory_space<vmem>>, vector<32x32xbf16>
    %cst_18 = arith.constant dense<0.000000e+00> : vector<8x32xf32>
    %16 = tpu.matmul %14, %15, %cst_18 {dimension_numbers = #tpu.dot_dimension_numbers<[1], [0], [0], [1], [0, 0, 1, 1], [], []>} : vector<8x32xbf16>, vector<32x32xbf16>, vector<8x32xf32> -> vector<8x32xf32>
    %cst_19 = arith.constant 0.176776692 : f32
    %17 = vector.broadcast %cst_19 : f32 to vector<8x32xf32>
    %18 = arith.mulf %10, %17 : vector<8x32xf32>
    %19 = vector.extract_strided_slice %18 {offsets = [0, 0], sizes = [8, 8], strides = [1, 1]} : vector<8x32xf32> to vector<8x8xf32>
    %20 = vector.extract_strided_slice %18 {offsets = [0, 8], sizes = [8, 8], strides = [1, 1]} : vector<8x32xf32> to vector<8x8xf32>
    %21 = vector.extract_strided_slice %18 {offsets = [0, 16], sizes = [8, 8], strides = [1, 1]} : vector<8x32xf32> to vector<8x8xf32>
    %22 = vector.extract_strided_slice %18 {offsets = [0, 24], sizes = [8, 8], strides = [1, 1]} : vector<8x32xf32> to vector<8x8xf32>
    %23 = vector.shape_cast %19 : vector<8x8xf32> to vector<1x8x8xf32>
    %24 = vector.shape_cast %20 : vector<8x8xf32> to vector<1x8x8xf32>
    %25 = vector.shape_cast %21 : vector<8x8xf32> to vector<1x8x8xf32>
    %26 = vector.shape_cast %22 : vector<8x8xf32> to vector<1x8x8xf32>
    %27 = tpu.concatenate %23, %24, %25, %26 in 0 : vector<1x8x8xf32>, vector<1x8x8xf32>, vector<1x8x8xf32>, vector<1x8x8xf32> -> vector<4x8x8xf32>
    %28 = arith.truncf %27 : vector<4x8x8xf32> to vector<4x8x8xbf16>
    %29 = vector.extract_strided_slice %13 {offsets = [0, 0], sizes = [8, 8], strides = [1, 1]} : vector<8x32xf32> to vector<8x8xf32>
    %30 = vector.extract_strided_slice %13 {offsets = [0, 8], sizes = [8, 8], strides = [1, 1]} : vector<8x32xf32> to vector<8x8xf32>
    %31 = vector.extract_strided_slice %13 {offsets = [0, 16], sizes = [8, 8], strides = [1, 1]} : vector<8x32xf32> to vector<8x8xf32>
    %32 = vector.extract_strided_slice %13 {offsets = [0, 24], sizes = [8, 8], strides = [1, 1]} : vector<8x32xf32> to vector<8x8xf32>
    %33 = vector.shape_cast %29 : vector<8x8xf32> to vector<1x8x8xf32>
    %34 = vector.shape_cast %30 : vector<8x8xf32> to vector<1x8x8xf32>
    %35 = vector.shape_cast %31 : vector<8x8xf32> to vector<1x8x8xf32>
    %36 = vector.shape_cast %32 : vector<8x8xf32> to vector<1x8x8xf32>
    %37 = tpu.concatenate %33, %34, %35, %36 in 0 : vector<1x8x8xf32>, vector<1x8x8xf32>, vector<1x8x8xf32>, vector<1x8x8xf32> -> vector<4x8x8xf32>
    %38 = arith.truncf %37 : vector<4x8x8xf32> to vector<4x8x8xbf16>
    %39 = vector.extract_strided_slice %16 {offsets = [0, 0], sizes = [8, 8], strides = [1, 1]} : vector<8x32xf32> to vector<8x8xf32>
    %40 = vector.extract_strided_slice %16 {offsets = [0, 8], sizes = [8, 8], strides = [1, 1]} : vector<8x32xf32> to vector<8x8xf32>
    %41 = vector.extract_strided_slice %16 {offsets = [0, 16], sizes = [8, 8], strides = [1, 1]} : vector<8x32xf32> to vector<8x8xf32>
    %42 = vector.extract_strided_slice %16 {offsets = [0, 24], sizes = [8, 8], strides = [1, 1]} : vector<8x32xf32> to vector<8x8xf32>
    %43 = vector.shape_cast %39 : vector<8x8xf32> to vector<1x8x8xf32>
    %44 = vector.shape_cast %40 : vector<8x8xf32> to vector<1x8x8xf32>
    %45 = vector.shape_cast %41 : vector<8x8xf32> to vector<1x8x8xf32>
    %46 = vector.shape_cast %42 : vector<8x8xf32> to vector<1x8x8xf32>
    %47 = tpu.concatenate %43, %44, %45, %46 in 0 : vector<1x8x8xf32>, vector<1x8x8xf32>, vector<1x8x8xf32>, vector<1x8x8xf32> -> vector<4x8x8xf32>
    %48 = arith.truncf %47 : vector<4x8x8xf32> to vector<4x8x8xbf16>
    "tpu.trace_start"() <{level = 10 : i32, message = "hqd,hkd->hqk"}> : () -> ()
    %cst_20 = arith.constant dense<0.000000e+00> : vector<4x8x8xf32>
    %49 = tpu.matmul %28, %38, %cst_20 {dimension_numbers = #tpu.dot_dimension_numbers<[2], [2], [1], [1], [0, 0, 0, 1, 1, 1], [0], [0]>} : vector<4x8x8xbf16>, vector<4x8x8xbf16>, vector<4x8x8xf32> -> vector<4x8x8xf32>
    %cst_21 = arith.constant 0.000000e+00 : f32
    "tpu.trace_stop"() : () -> ()
    %50 = vector.broadcast %cst_21 : f32 to vector<8x8xf32>
    %51 = arith.cmpf oeq, %7, %50 : vector<8x8xf32>
    %cst_22 = arith.constant -1.000000e+20 : f32
    %cst_23 = arith.constant 0.176776692 : f32
    %52 = arith.mulf %cst_22, %cst_23 : f32
    %53 = vector.shape_cast %51 : vector<8x8xi1> to vector<1x8x8xi1>
    %54 = vector.broadcast %53 : vector<1x8x8xi1> to vector<4x8x8xi1>
    %55 = vector.broadcast %52 : f32 to vector<4x8x8xf32>
    %56 = arith.select %54, %55, %49 : vector<4x8x8xi1>, vector<4x8x8xf32>
    %cst_24 = arith.constant dense<0xFF800000> : vector<4x8xf32>
    %57 = vector.multi_reduction <maximumf>, %56, %cst_24 [2] : vector<4x8x8xf32> to vector<4x8xf32>
    %58 = vector.shape_cast %57 : vector<4x8xf32> to vector<4x8x1xf32>
    %59 = vector.broadcast %58 : vector<4x8x1xf32> to vector<4x8x8xf32>
    %60 = arith.subf %56, %59 : vector<4x8x8xf32>
    %61 = math.exp %60 : vector<4x8x8xf32>
    %cst_25 = arith.constant dense<0.000000e+00> : vector<4x8xf32>
    %62 = vector.multi_reduction <add>, %61, %cst_25 [2] : vector<4x8x8xf32> to vector<4x8xf32>
    %63 = vector.shape_cast %62 : vector<4x8xf32> to vector<4x8x1xf32>
    %64 = tpu.reciprocal %63 {approx = true} : vector<4x8x1xf32> -> vector<4x8x1xf32>
    %65 = vector.broadcast %64 : vector<4x8x1xf32> to vector<4x8x8xf32>
    %66 = arith.mulf %61, %65 : vector<4x8x8xf32>
    %67 = arith.truncf %66 : vector<4x8x8xf32> to vector<4x8x8xbf16>
    "tpu.trace_start"() <{level = 10 : i32, message = "hqk,hkd->hqd"}> : () -> ()
    %cst_26 = arith.constant dense<0.000000e+00> : vector<4x8x8xf32>
    %68 = tpu.matmul %67, %48, %cst_26 {dimension_numbers = #tpu.dot_dimension_numbers<[2], [1], [1], [2], [0, 0, 0, 1, 1, 2], [0], [0]>} : vector<4x8x8xbf16>, vector<4x8x8xbf16>, vector<4x8x8xf32> -> vector<4x8x8xf32>
    "tpu.trace_stop"() : () -> ()
    %69 = arith.truncf %68 : vector<4x8x8xf32> to vector<4x8x8xbf16>
    %c0_27 = arith.constant 0 : index
    %c0_28 = arith.constant 0 : index
    %c0_29 = arith.constant 0 : index
    %70 = vector.load %arg6[%c0_27, %c0_28, %c0_29] : memref<4x8x32xbf16, #tpu.memory_space<vmem>>, vector<4x8x32xbf16>
    "tpu.trace_start"() <{level = 10 : i32, message = "hqd,hde->hqe"}> : () -> ()
    %cst_30 = arith.constant dense<0.000000e+00> : vector<4x8x32xf32>
    %71 = tpu.matmul %69, %70, %cst_30 {dimension_numbers = #tpu.dot_dimension_numbers<[2], [1], [1], [2], [0, 0, 0, 1, 1, 2], [0], [0]>} : vector<4x8x8xbf16>, vector<4x8x32xbf16>, vector<4x8x32xf32> -> vector<4x8x32xf32>
    "tpu.trace_stop"() : () -> ()
    %cst_31 = arith.constant dense<0.000000e+00> : vector<8x32xf32>
    %72 = vector.multi_reduction <add>, %71, %cst_31 [0] : vector<4x8x32xf32> to vector<8x32xf32>
    %c0_32 = arith.constant 0 : index
    %c0_33 = arith.constant 0 : index
    %73 = vector.load %arg7[%c0_32, %c0_33] : memref<1x32xf32, #tpu.memory_space<vmem>>, vector<1x32xf32>
    %74 = vector.broadcast %73 : vector<1x32xf32> to vector<8x32xf32>
    %75 = arith.addf %72, %74 : vector<8x32xf32>
    %76 = arith.addf %75, %1 : vector<8x32xf32>
    %cst_34 = arith.constant dense<0.000000e+00> : vector<8xf32>
    %77 = vector.multi_reduction <add>, %76, %cst_34 [1] : vector<8x32xf32> to vector<8xf32>
    %78 = vector.shape_cast %77 : vector<8xf32> to vector<8x1xf32>
    %cst_35 = arith.constant 3.200000e+01 : f32
    %79 = vector.broadcast %cst_35 : f32 to vector<8x1xf32>
    %80 = arith.divf %78, %79 : vector<8x1xf32>
    %81 = vector.broadcast %80 : vector<8x1xf32> to vector<8x32xf32>
    %82 = arith.subf %76, %81 : vector<8x32xf32>
    %83 = arith.mulf %82, %82 : vector<8x32xf32>
    %cst_36 = arith.constant dense<0.000000e+00> : vector<8xf32>
    %84 = vector.multi_reduction <add>, %83, %cst_36 [1] : vector<8x32xf32> to vector<8xf32>
    %85 = vector.shape_cast %84 : vector<8xf32> to vector<8x1xf32>
    %cst_37 = arith.constant 3.200000e+01 : f32
    %86 = vector.broadcast %cst_37 : f32 to vector<8x1xf32>
    %87 = arith.divf %85, %86 : vector<8x1xf32>
    %cst_38 = arith.constant 9.99999974E-6 : f32
    %88 = vector.broadcast %cst_38 : f32 to vector<8x1xf32>
    %89 = arith.addf %87, %88 : vector<8x1xf32>
    %90 = math.rsqrt %89 : vector<8x1xf32>
    %91 = vector.broadcast %90 : vector<8x1xf32> to vector<8x32xf32>
    %92 = arith.mulf %82, %91 : vector<8x32xf32>
    %c0_39 = arith.constant 0 : index
    %c0_40 = arith.constant 0 : index
    %93 = vector.load %arg8[%c0_39, %c0_40] : memref<1x32xf32, #tpu.memory_space<vmem>>, vector<1x32xf32>
    %94 = vector.broadcast %93 : vector<1x32xf32> to vector<8x32xf32>
    %95 = arith.mulf %92, %94 : vector<8x32xf32>
    %c0_41 = arith.constant 0 : index
    %c0_42 = arith.constant 0 : index
    %96 = vector.load %arg9[%c0_41, %c0_42] : memref<1x32xf32, #tpu.memory_space<vmem>>, vector<1x32xf32>
    %97 = vector.broadcast %96 : vector<1x32xf32> to vector<8x32xf32>
    %98 = arith.addf %95, %97 : vector<8x32xf32>
    %c0_43 = arith.constant 0 : index
    %c0_44 = arith.constant 0 : index
    %c0_45 = arith.constant 0 : index
    %99 = vector.load %arg10[%c0_43, %c0_44, %c0_45] : memref<1x8x32xf32, #tpu.memory_space<vmem>>, vector<1x8x32xf32>
    %100 = vector.shape_cast %99 : vector<1x8x32xf32> to vector<8x32xf32>
    %101 = vector.shape_cast %98 : vector<8x32xf32> to vector<1x8x32xf32>
    tpu.vector_store %arg10[%c0_43, %c0_44, %c0_45], %101 {strides = array<i32>} : memref<1x8x32xf32, #tpu.memory_space<vmem>>, vector<1x8x32xf32>,
    return
  }
  func.func @transform_0(%arg0: i32) -> (i32, i32, i32) {
    %c0_i32 = arith.constant 0 : i32
    %c0_i32_0 = arith.constant 0 : i32
    %c0_i32_1 = arith.constant 0 : i32
    return %arg0, %c0_i32, %c0_i32_0 : i32, i32, i32
  }
  func.func @transform_1(%arg0: i32) -> (i32, i32, i32) {
    %c0_i32 = arith.constant 0 : i32
    %c0_i32_0 = arith.constant 0 : i32
    %c0_i32_1 = arith.constant 0 : i32
    return %arg0, %c0_i32, %c0_i32_0 : i32, i32, i32
  }
  func.func @transform_2(%arg0: i32) -> (i32, i32) {
    %c0_i32 = arith.constant 0 : i32
    %c0_i32_0 = arith.constant 0 : i32
    %c0_i32_1 = arith.constant 0 : i32
    return %c0_i32, %c0_i32_0 : i32, i32
  }
  func.func @transform_3(%arg0: i32) -> (i32, i32) {
    %c0_i32 = arith.constant 0 : i32
    %c0_i32_0 = arith.constant 0 : i32
    %c0_i32_1 = arith.constant 0 : i32
    return %c0_i32, %c0_i32_0 : i32, i32
  }
  func.func @transform_4(%arg0: i32) -> (i32, i32) {
    %c0_i32 = arith.constant 0 : i32
    %c0_i32_0 = arith.constant 0 : i32
    %c0_i32_1 = arith.constant 0 : i32
    return %c0_i32, %c0_i32_0 : i32, i32
  }
  func.func @transform_5(%arg0: i32) -> (i32, i32, i32) {
    %c0_i32 = arith.constant 0 : i32
    %c0_i32_0 = arith.constant 0 : i32
    %c0_i32_1 = arith.constant 0 : i32
    %c0_i32_2 = arith.constant 0 : i32
    return %c0_i32, %c0_i32_0, %c0_i32_1 : i32, i32, i32
  }
  func.func @transform_6(%arg0: i32) -> (i32, i32) {
    %c0_i32 = arith.constant 0 : i32
    %c0_i32_0 = arith.constant 0 : i32
    %c0_i32_1 = arith.constant 0 : i32
    return %c0_i32, %c0_i32_0 : i32, i32
  }
  func.func @transform_7(%arg0: i32) -> (i32, i32) {
    %c0_i32 = arith.constant 0 : i32
    %c0_i32_0 = arith.constant 0 : i32
    %c0_i32_1 = arith.constant 0 : i32
    return %c0_i32, %c0_i32_0 : i32, i32
  }
  func.func @transform_8(%arg0: i32) -> (i32, i32) {
    %c0_i32 = arith.constant 0 : i32
    %c0_i32_0 = arith.constant 0 : i32
    %c0_i32_1 = arith.constant 0 : i32
    return %c0_i32, %c0_i32_0 : i32, i32
  }
  func.func @transform_9(%arg0: i32) -> (i32, i32, i32) {
    %c0_i32 = arith.constant 0 : i32
    %c0_i32_0 = arith.constant 0 : i32
    %c0_i32_1 = arith.constant 0 : i32
    return %arg0, %c0_i32, %c0_i32_0 : i32, i32, i32
  }
}

module attributes {stable_mosaic.version = 11 : i64} {
  func.func @_ffn_addnorm_kernel(%arg0: i32, %arg1: memref<1x8x32xf32, #tpu.memory_space<vmem>>, %arg2: memref<32x128xbf16, #tpu.memory_space<vmem>>, %arg3: memref<1x128xf32, #tpu.memory_space<vmem>>, %arg4: memref<128x32xbf16, #tpu.memory_space<vmem>>, %arg5: memref<1x32xf32, #tpu.memory_space<vmem>>, %arg6: memref<1x32xf32, #tpu.memory_space<vmem>>, %arg7: memref<1x32xf32, #tpu.memory_space<vmem>>, %arg8: memref<1x8x32xf32, #tpu.memory_space<vmem>>) attributes {dimension_semantics = [#tpu.dimension_semantics<parallel>], iteration_bounds = array<i64: 2>, scalar_prefetch = 0 : i64, scratch_operands = 0 : i64, tpu.core_type = #tpu.core_type<tc>, window_params = [{transform_indices = @transform_0, window_bounds = array<i64: 1, 8, 32>}, {pipeline_mode = #tpu.pipeline_mode<synchronous>, transform_indices = @transform_1, window_bounds = array<i64: 32, 128>}, {pipeline_mode = #tpu.pipeline_mode<synchronous>, transform_indices = @transform_2, window_bounds = array<i64: 1, 128>}, {pipeline_mode = #tpu.pipeline_mode<synchronous>, transform_indices = @transform_3, window_bounds = array<i64: 128, 32>}, {pipeline_mode = #tpu.pipeline_mode<synchronous>, transform_indices = @transform_4, window_bounds = array<i64: 1, 32>}, {pipeline_mode = #tpu.pipeline_mode<synchronous>, transform_indices = @transform_5, window_bounds = array<i64: 1, 32>}, {pipeline_mode = #tpu.pipeline_mode<synchronous>, transform_indices = @transform_6, window_bounds = array<i64: 1, 32>}, {transform_indices = @transform_7, window_bounds = array<i64: 1, 8, 32>}]} {
    %c0 = arith.constant 0 : index
    %c0_0 = arith.constant 0 : index
    %c0_1 = arith.constant 0 : index
    %0 = vector.load %arg1[%c0, %c0_0, %c0_1] : memref<1x8x32xf32, #tpu.memory_space<vmem>>, vector<1x8x32xf32>
    %1 = vector.shape_cast %0 : vector<1x8x32xf32> to vector<8x32xf32>
    %2 = arith.truncf %1 : vector<8x32xf32> to vector<8x32xbf16>
    %c0_2 = arith.constant 0 : index
    %c0_3 = arith.constant 0 : index
    %3 = vector.load %arg2[%c0_2, %c0_3] : memref<32x128xbf16, #tpu.memory_space<vmem>>, vector<32x128xbf16>
    %cst = arith.constant dense<0.000000e+00> : vector<8x128xf32>
    %4 = tpu.matmul %2, %3, %cst {dimension_numbers = #tpu.dot_dimension_numbers<[1], [0], [0], [1], [0, 0, 1, 1], [], []>} : vector<8x32xbf16>, vector<32x128xbf16>, vector<8x128xf32> -> vector<8x128xf32>
    %c0_4 = arith.constant 0 : index
    %c0_5 = arith.constant 0 : index
    %5 = vector.load %arg3[%c0_4, %c0_5] : memref<1x128xf32, #tpu.memory_space<vmem>>, vector<1x128xf32>
    %6 = vector.broadcast %5 : vector<1x128xf32> to vector<8x128xf32>
    %7 = arith.addf %4, %6 : vector<8x128xf32>
    %cst_6 = arith.constant 0.000000e+00 : f32
    %8 = vector.broadcast %cst_6 : f32 to vector<8x128xf32>
    %9 = arith.maximumf %7, %8 : vector<8x128xf32>
    %10 = arith.truncf %9 : vector<8x128xf32> to vector<8x128xbf16>
    %c0_7 = arith.constant 0 : index
    %c0_8 = arith.constant 0 : index
    %11 = vector.load %arg4[%c0_7, %c0_8] : memref<128x32xbf16, #tpu.memory_space<vmem>>, vector<128x32xbf16>
    %cst_9 = arith.constant dense<0.000000e+00> : vector<8x32xf32>
    %12 = tpu.matmul %10, %11, %cst_9 {dimension_numbers = #tpu.dot_dimension_numbers<[1], [0], [0], [1], [0, 0, 1, 1], [], []>} : vector<8x128xbf16>, vector<128x32xbf16>, vector<8x32xf32> -> vector<8x32xf32>
    %c0_10 = arith.constant 0 : index
    %c0_11 = arith.constant 0 : index
    %13 = vector.load %arg5[%c0_10, %c0_11] : memref<1x32xf32, #tpu.memory_space<vmem>>, vector<1x32xf32>
    %14 = vector.broadcast %13 : vector<1x32xf32> to vector<8x32xf32>
    %15 = arith.addf %12, %14 : vector<8x32xf32>
    %16 = arith.addf %15, %1 : vector<8x32xf32>
    %cst_12 = arith.constant dense<0.000000e+00> : vector<8xf32>
    %17 = vector.multi_reduction <add>, %16, %cst_12 [1] : vector<8x32xf32> to vector<8xf32>
    %18 = vector.shape_cast %17 : vector<8xf32> to vector<8x1xf32>
    %cst_13 = arith.constant 3.200000e+01 : f32
    %19 = vector.broadcast %cst_13 : f32 to vector<8x1xf32>
    %20 = arith.divf %18, %19 : vector<8x1xf32>
    %21 = vector.broadcast %20 : vector<8x1xf32> to vector<8x32xf32>
    %22 = arith.subf %16, %21 : vector<8x32xf32>
    %23 = arith.mulf %22, %22 : vector<8x32xf32>
    %cst_14 = arith.constant dense<0.000000e+00> : vector<8xf32>
    %24 = vector.multi_reduction <add>, %23, %cst_14 [1] : vector<8x32xf32> to vector<8xf32>
    %25 = vector.shape_cast %24 : vector<8xf32> to vector<8x1xf32>
    %cst_15 = arith.constant 3.200000e+01 : f32
    %26 = vector.broadcast %cst_15 : f32 to vector<8x1xf32>
    %27 = arith.divf %25, %26 : vector<8x1xf32>
    %cst_16 = arith.constant 9.99999974E-6 : f32
    %28 = vector.broadcast %cst_16 : f32 to vector<8x1xf32>
    %29 = arith.addf %27, %28 : vector<8x1xf32>
    %30 = math.rsqrt %29 : vector<8x1xf32>
    %31 = vector.broadcast %30 : vector<8x1xf32> to vector<8x32xf32>
    %32 = arith.mulf %22, %31 : vector<8x32xf32>
    %c0_17 = arith.constant 0 : index
    %c0_18 = arith.constant 0 : index
    %33 = vector.load %arg6[%c0_17, %c0_18] : memref<1x32xf32, #tpu.memory_space<vmem>>, vector<1x32xf32>
    %34 = vector.broadcast %33 : vector<1x32xf32> to vector<8x32xf32>
    %35 = arith.mulf %32, %34 : vector<8x32xf32>
    %c0_19 = arith.constant 0 : index
    %c0_20 = arith.constant 0 : index
    %36 = vector.load %arg7[%c0_19, %c0_20] : memref<1x32xf32, #tpu.memory_space<vmem>>, vector<1x32xf32>
    %37 = vector.broadcast %36 : vector<1x32xf32> to vector<8x32xf32>
    %38 = arith.addf %35, %37 : vector<8x32xf32>
    %c0_21 = arith.constant 0 : index
    %c0_22 = arith.constant 0 : index
    %c0_23 = arith.constant 0 : index
    %39 = vector.load %arg8[%c0_21, %c0_22, %c0_23] : memref<1x8x32xf32, #tpu.memory_space<vmem>>, vector<1x8x32xf32>
    %40 = vector.shape_cast %39 : vector<1x8x32xf32> to vector<8x32xf32>
    %41 = vector.shape_cast %38 : vector<8x32xf32> to vector<1x8x32xf32>
    tpu.vector_store %arg8[%c0_21, %c0_22, %c0_23], %41 {strides = array<i32>} : memref<1x8x32xf32, #tpu.memory_space<vmem>>, vector<1x8x32xf32>,
    return
  }
  func.func @transform_0(%arg0: i32) -> (i32, i32, i32) {
    %c0_i32 = arith.constant 0 : i32
    %c0_i32_0 = arith.constant 0 : i32
    %c0_i32_1 = arith.constant 0 : i32
    return %arg0, %c0_i32, %c0_i32_0 : i32, i32, i32
  }
  func.func @transform_1(%arg0: i32) -> (i32, i32) {
    %c0_i32 = arith.constant 0 : i32
    %c0_i32_0 = arith.constant 0 : i32
    %c0_i32_1 = arith.constant 0 : i32
    return %c0_i32, %c0_i32_0 : i32, i32
  }
  func.func @transform_2(%arg0: i32) -> (i32, i32) {
    %c0_i32 = arith.constant 0 : i32
    %c0_i32_0 = arith.constant 0 : i32
    %c0_i32_1 = arith.constant 0 : i32
    return %c0_i32, %c0_i32_0 : i32, i32
  }
  func.func @transform_3(%arg0: i32) -> (i32, i32) {
    %c0_i32 = arith.constant 0 : i32
    %c0_i32_0 = arith.constant 0 : i32
    %c0_i32_1 = arith.constant 0 : i32
    return %c0_i32, %c0_i32_0 : i32, i32
  }
  func.func @transform_4(%arg0: i32) -> (i32, i32) {
    %c0_i32 = arith.constant 0 : i32
    %c0_i32_0 = arith.constant 0 : i32
    %c0_i32_1 = arith.constant 0 : i32
    return %c0_i32, %c0_i32_0 : i32, i32
  }
  func.func @transform_5(%arg0: i32) -> (i32, i32) {
    %c0_i32 = arith.constant 0 : i32
    %c0_i32_0 = arith.constant 0 : i32
    %c0_i32_1 = arith.constant 0 : i32
    return %c0_i32, %c0_i32_0 : i32, i32
  }
  func.func @transform_6(%arg0: i32) -> (i32, i32) {
    %c0_i32 = arith.constant 0 : i32
    %c0_i32_0 = arith.constant 0 : i32
    %c0_i32_1 = arith.constant 0 : i32
    return %c0_i32, %c0_i32_0 : i32, i32
  }
  func.func @transform_7(%arg0: i32) -> (i32, i32, i32) {
    %c0_i32 = arith.constant 0 : i32
    %c0_i32_0 = arith.constant 0 : i32
    %c0_i32_1 = arith.constant 0 : i32
    return %arg0, %c0_i32, %c0_i32_0 : i32, i32, i32
  }
}

module attributes {stable_mosaic.version = 11 : i64} {
  func.func @_mha_addnorm_kernel(%arg0: i32, %arg1: memref<1x8x32xf32, #tpu.memory_space<vmem>>, %arg2: memref<1x8x32xf32, #tpu.memory_space<vmem>>, %arg3: memref<1x8x32xf32, #tpu.memory_space<vmem>>, %arg4: memref<1x1x8xf32, #tpu.memory_space<vmem>>, %arg5: memref<32x32xbf16, #tpu.memory_space<vmem>>, %arg6: memref<32x32xbf16, #tpu.memory_space<vmem>>, %arg7: memref<32x32xbf16, #tpu.memory_space<vmem>>, %arg8: memref<4x8x32xbf16, #tpu.memory_space<vmem>>, %arg9: memref<1x32xf32, #tpu.memory_space<vmem>>, %arg10: memref<1x32xf32, #tpu.memory_space<vmem>>, %arg11: memref<1x32xf32, #tpu.memory_space<vmem>>, %arg12: memref<1x8x32xf32, #tpu.memory_space<vmem>>) attributes {dimension_semantics = [#tpu.dimension_semantics<parallel>], iteration_bounds = array<i64: 2>, scalar_prefetch = 0 : i64, scratch_operands = 0 : i64, tpu.core_type = #tpu.core_type<tc>, window_params = [{transform_indices = @transform_0, window_bounds = array<i64: 1, 8, 32>}, {transform_indices = @transform_1, window_bounds = array<i64: 1, 8, 32>}, {transform_indices = @transform_2, window_bounds = array<i64: 1, 8, 32>}, {transform_indices = @transform_3, window_bounds = array<i64: 1, 1, 8>}, {pipeline_mode = #tpu.pipeline_mode<synchronous>, transform_indices = @transform_4, window_bounds = array<i64: 32, 32>}, {pipeline_mode = #tpu.pipeline_mode<synchronous>, transform_indices = @transform_5, window_bounds = array<i64: 32, 32>}, {pipeline_mode = #tpu.pipeline_mode<synchronous>, transform_indices = @transform_6, window_bounds = array<i64: 32, 32>}, {pipeline_mode = #tpu.pipeline_mode<synchronous>, transform_indices = @transform_7, window_bounds = array<i64: 4, 8, 32>}, {pipeline_mode = #tpu.pipeline_mode<synchronous>, transform_indices = @transform_8, window_bounds = array<i64: 1, 32>}, {pipeline_mode = #tpu.pipeline_mode<synchronous>, transform_indices = @transform_9, window_bounds = array<i64: 1, 32>}, {pipeline_mode = #tpu.pipeline_mode<synchronous>, transform_indices = @transform_10, window_bounds = array<i64: 1, 32>}, {transform_indices = @transform_11, window_bounds = array<i64: 1, 8, 32>}]} {
    %c0 = arith.constant 0 : index
    %c0_0 = arith.constant 0 : index
    %c0_1 = arith.constant 0 : index
    %0 = vector.load %arg3[%c0, %c0_0, %c0_1] : memref<1x8x32xf32, #tpu.memory_space<vmem>>, vector<1x8x32xf32>
    %1 = vector.shape_cast %0 : vector<1x8x32xf32> to vector<8x32xf32>
    %c0_2 = arith.constant 0 : index
    %c0_3 = arith.constant 0 : index
    %c0_4 = arith.constant 0 : index
    %2 = vector.load %arg2[%c0_2, %c0_3, %c0_4] : memref<1x8x32xf32, #tpu.memory_space<vmem>>, vector<1x8x32xf32>
    %3 = vector.shape_cast %2 : vector<1x8x32xf32> to vector<8x32xf32>
    %c0_5 = arith.constant 0 : index
    %c0_6 = arith.constant 0 : index
    %c0_7 = arith.constant 0 : index
    %4 = vector.load %arg1[%c0_5, %c0_6, %c0_7] : memref<1x8x32xf32, #tpu.memory_space<vmem>>, vector<1x8x32xf32>
    %5 = vector.shape_cast %4 : vector<1x8x32xf32> to vector<8x32xf32>
    %c0_8 = arith.constant 0 : index
    %c0_9 = arith.constant 0 : index
    %c0_10 = arith.constant 0 : index
    %6 = vector.load %arg4[%c0_8, %c0_9, %c0_10] : memref<1x1x8xf32, #tpu.memory_space<vmem>>, vector<1x1x8xf32>
    %7 = vector.shape_cast %6 : vector<1x1x8xf32> to vector<1x8xf32>
    %8 = arith.truncf %1 : vector<8x32xf32> to vector<8x32xbf16>
    %c0_11 = arith.constant 0 : index
    %c0_12 = arith.constant 0 : index
    %9 = vector.load %arg7[%c0_11, %c0_12] : memref<32x32xbf16, #tpu.memory_space<vmem>>, vector<32x32xbf16>
    %cst = arith.constant dense<0.000000e+00> : vector<8x32xf32>
    %10 = tpu.matmul %8, %9, %cst {dimension_numbers = #tpu.dot_dimension_numbers<[1], [0], [0], [1], [0, 0, 1, 1], [], []>} : vector<8x32xbf16>, vector<32x32xbf16>, vector<8x32xf32> -> vector<8x32xf32>
    %11 = arith.truncf %3 : vector<8x32xf32> to vector<8x32xbf16>
    %c0_13 = arith.constant 0 : index
    %c0_14 = arith.constant 0 : index
    %12 = vector.load %arg6[%c0_13, %c0_14] : memref<32x32xbf16, #tpu.memory_space<vmem>>, vector<32x32xbf16>
    %cst_15 = arith.constant dense<0.000000e+00> : vector<8x32xf32>
    %13 = tpu.matmul %11, %12, %cst_15 {dimension_numbers = #tpu.dot_dimension_numbers<[1], [0], [0], [1], [0, 0, 1, 1], [], []>} : vector<8x32xbf16>, vector<32x32xbf16>, vector<8x32xf32> -> vector<8x32xf32>
    %14 = arith.truncf %5 : vector<8x32xf32> to vector<8x32xbf16>
    %c0_16 = arith.constant 0 : index
    %c0_17 = arith.constant 0 : index
    %15 = vector.load %arg5[%c0_16, %c0_17] : memref<32x32xbf16, #tpu.memory_space<vmem>>, vector<32x32xbf16>
    %cst_18 = arith.constant dense<0.000000e+00> : vector<8x32xf32>
    %16 = tpu.matmul %14, %15, %cst_18 {dimension_numbers = #tpu.dot_dimension_numbers<[1], [0], [0], [1], [0, 0, 1, 1], [], []>} : vector<8x32xbf16>, vector<32x32xbf16>, vector<8x32xf32> -> vector<8x32xf32>
    %cst_19 = arith.constant 0.176776692 : f32
    %17 = vector.broadcast %cst_19 : f32 to vector<8x32xf32>
    %18 = arith.mulf %10, %17 : vector<8x32xf32>
    %19 = vector.extract_strided_slice %18 {offsets = [0, 0], sizes = [8, 8], strides = [1, 1]} : vector<8x32xf32> to vector<8x8xf32>
    %20 = vector.extract_strided_slice %18 {offsets = [0, 8], sizes = [8, 8], strides = [1, 1]} : vector<8x32xf32> to vector<8x8xf32>
    %21 = vector.extract_strided_slice %18 {offsets = [0, 16], sizes = [8, 8], strides = [1, 1]} : vector<8x32xf32> to vector<8x8xf32>
    %22 = vector.extract_strided_slice %18 {offsets = [0, 24], sizes = [8, 8], strides = [1, 1]} : vector<8x32xf32> to vector<8x8xf32>
    %23 = vector.shape_cast %19 : vector<8x8xf32> to vector<1x8x8xf32>
    %24 = vector.shape_cast %20 : vector<8x8xf32> to vector<1x8x8xf32>
    %25 = vector.shape_cast %21 : vector<8x8xf32> to vector<1x8x8xf32>
    %26 = vector.shape_cast %22 : vector<8x8xf32> to vector<1x8x8xf32>
    %27 = tpu.concatenate %23, %24, %25, %26 in 0 : vector<1x8x8xf32>, vector<1x8x8xf32>, vector<1x8x8xf32>, vector<1x8x8xf32> -> vector<4x8x8xf32>
    %28 = arith.truncf %27 : vector<4x8x8xf32> to vector<4x8x8xbf16>
    %29 = vector.extract_strided_slice %13 {offsets = [0, 0], sizes = [8, 8], strides = [1, 1]} : vector<8x32xf32> to vector<8x8xf32>
    %30 = vector.extract_strided_slice %13 {offsets = [0, 8], sizes = [8, 8], strides = [1, 1]} : vector<8x32xf32> to vector<8x8xf32>
    %31 = vector.extract_strided_slice %13 {offsets = [0, 16], sizes = [8, 8], strides = [1, 1]} : vector<8x32xf32> to vector<8x8xf32>
    %32 = vector.extract_strided_slice %13 {offsets = [0, 24], sizes = [8, 8], strides = [1, 1]} : vector<8x32xf32> to vector<8x8xf32>
    %33 = vector.shape_cast %29 : vector<8x8xf32> to vector<1x8x8xf32>
    %34 = vector.shape_cast %30 : vector<8x8xf32> to vector<1x8x8xf32>
    %35 = vector.shape_cast %31 : vector<8x8xf32> to vector<1x8x8xf32>
    %36 = vector.shape_cast %32 : vector<8x8xf32> to vector<1x8x8xf32>
    %37 = tpu.concatenate %33, %34, %35, %36 in 0 : vector<1x8x8xf32>, vector<1x8x8xf32>, vector<1x8x8xf32>, vector<1x8x8xf32> -> vector<4x8x8xf32>
    %38 = arith.truncf %37 : vector<4x8x8xf32> to vector<4x8x8xbf16>
    %39 = vector.extract_strided_slice %16 {offsets = [0, 0], sizes = [8, 8], strides = [1, 1]} : vector<8x32xf32> to vector<8x8xf32>
    %40 = vector.extract_strided_slice %16 {offsets = [0, 8], sizes = [8, 8], strides = [1, 1]} : vector<8x32xf32> to vector<8x8xf32>
    %41 = vector.extract_strided_slice %16 {offsets = [0, 16], sizes = [8, 8], strides = [1, 1]} : vector<8x32xf32> to vector<8x8xf32>
    %42 = vector.extract_strided_slice %16 {offsets = [0, 24], sizes = [8, 8], strides = [1, 1]} : vector<8x32xf32> to vector<8x8xf32>
    %43 = vector.shape_cast %39 : vector<8x8xf32> to vector<1x8x8xf32>
    %44 = vector.shape_cast %40 : vector<8x8xf32> to vector<1x8x8xf32>
    %45 = vector.shape_cast %41 : vector<8x8xf32> to vector<1x8x8xf32>
    %46 = vector.shape_cast %42 : vector<8x8xf32> to vector<1x8x8xf32>
    %47 = tpu.concatenate %43, %44, %45, %46 in 0 : vector<1x8x8xf32>, vector<1x8x8xf32>, vector<1x8x8xf32>, vector<1x8x8xf32> -> vector<4x8x8xf32>
    %48 = arith.truncf %47 : vector<4x8x8xf32> to vector<4x8x8xbf16>
    "tpu.trace_start"() <{level = 10 : i32, message = "hqd,hkd->hqk"}> : () -> ()
    %cst_20 = arith.constant dense<0.000000e+00> : vector<4x8x8xf32>
    %49 = tpu.matmul %28, %38, %cst_20 {dimension_numbers = #tpu.dot_dimension_numbers<[2], [2], [1], [1], [0, 0, 0, 1, 1, 1], [0], [0]>} : vector<4x8x8xbf16>, vector<4x8x8xbf16>, vector<4x8x8xf32> -> vector<4x8x8xf32>
    %cst_21 = arith.constant 0.000000e+00 : f32
    "tpu.trace_stop"() : () -> ()
    %50 = vector.broadcast %cst_21 : f32 to vector<1x8xf32>
    %51 = arith.cmpf oeq, %7, %50 : vector<1x8xf32>
    %cst_22 = arith.constant -1.000000e+20 : f32
    %cst_23 = arith.constant 0.176776692 : f32
    %52 = arith.mulf %cst_22, %cst_23 : f32
    %53 = vector.shape_cast %51 : vector<1x8xi1> to vector<1x1x8xi1>
    %54 = vector.broadcast %53 : vector<1x1x8xi1> to vector<4x8x8xi1>
    %55 = vector.broadcast %52 : f32 to vector<4x8x8xf32>
    %56 = arith.select %54, %55, %49 : vector<4x8x8xi1>, vector<4x8x8xf32>
    %cst_24 = arith.constant dense<0xFF800000> : vector<4x8xf32>
    %57 = vector.multi_reduction <maximumf>, %56, %cst_24 [2] : vector<4x8x8xf32> to vector<4x8xf32>
    %58 = vector.shape_cast %57 : vector<4x8xf32> to vector<4x8x1xf32>
    %59 = vector.broadcast %58 : vector<4x8x1xf32> to vector<4x8x8xf32>
    %60 = arith.subf %56, %59 : vector<4x8x8xf32>
    %61 = math.exp %60 : vector<4x8x8xf32>
    %cst_25 = arith.constant dense<0.000000e+00> : vector<4x8xf32>
    %62 = vector.multi_reduction <add>, %61, %cst_25 [2] : vector<4x8x8xf32> to vector<4x8xf32>
    %63 = vector.shape_cast %62 : vector<4x8xf32> to vector<4x8x1xf32>
    %64 = tpu.reciprocal %63 {approx = true} : vector<4x8x1xf32> -> vector<4x8x1xf32>
    %65 = vector.broadcast %64 : vector<4x8x1xf32> to vector<4x8x8xf32>
    %66 = arith.mulf %61, %65 : vector<4x8x8xf32>
    %67 = arith.truncf %66 : vector<4x8x8xf32> to vector<4x8x8xbf16>
    "tpu.trace_start"() <{level = 10 : i32, message = "hqk,hkd->hqd"}> : () -> ()
    %cst_26 = arith.constant dense<0.000000e+00> : vector<4x8x8xf32>
    %68 = tpu.matmul %67, %48, %cst_26 {dimension_numbers = #tpu.dot_dimension_numbers<[2], [1], [1], [2], [0, 0, 0, 1, 1, 2], [0], [0]>} : vector<4x8x8xbf16>, vector<4x8x8xbf16>, vector<4x8x8xf32> -> vector<4x8x8xf32>
    "tpu.trace_stop"() : () -> ()
    %69 = arith.truncf %68 : vector<4x8x8xf32> to vector<4x8x8xbf16>
    %c0_27 = arith.constant 0 : index
    %c0_28 = arith.constant 0 : index
    %c0_29 = arith.constant 0 : index
    %70 = vector.load %arg8[%c0_27, %c0_28, %c0_29] : memref<4x8x32xbf16, #tpu.memory_space<vmem>>, vector<4x8x32xbf16>
    "tpu.trace_start"() <{level = 10 : i32, message = "hqd,hde->hqe"}> : () -> ()
    %cst_30 = arith.constant dense<0.000000e+00> : vector<4x8x32xf32>
    %71 = tpu.matmul %69, %70, %cst_30 {dimension_numbers = #tpu.dot_dimension_numbers<[2], [1], [1], [2], [0, 0, 0, 1, 1, 2], [0], [0]>} : vector<4x8x8xbf16>, vector<4x8x32xbf16>, vector<4x8x32xf32> -> vector<4x8x32xf32>
    "tpu.trace_stop"() : () -> ()
    %cst_31 = arith.constant dense<0.000000e+00> : vector<8x32xf32>
    %72 = vector.multi_reduction <add>, %71, %cst_31 [0] : vector<4x8x32xf32> to vector<8x32xf32>
    %c0_32 = arith.constant 0 : index
    %c0_33 = arith.constant 0 : index
    %73 = vector.load %arg9[%c0_32, %c0_33] : memref<1x32xf32, #tpu.memory_space<vmem>>, vector<1x32xf32>
    %74 = vector.broadcast %73 : vector<1x32xf32> to vector<8x32xf32>
    %75 = arith.addf %72, %74 : vector<8x32xf32>
    %76 = arith.addf %75, %1 : vector<8x32xf32>
    %cst_34 = arith.constant dense<0.000000e+00> : vector<8xf32>
    %77 = vector.multi_reduction <add>, %76, %cst_34 [1] : vector<8x32xf32> to vector<8xf32>
    %78 = vector.shape_cast %77 : vector<8xf32> to vector<8x1xf32>
    %cst_35 = arith.constant 3.200000e+01 : f32
    %79 = vector.broadcast %cst_35 : f32 to vector<8x1xf32>
    %80 = arith.divf %78, %79 : vector<8x1xf32>
    %81 = vector.broadcast %80 : vector<8x1xf32> to vector<8x32xf32>
    %82 = arith.subf %76, %81 : vector<8x32xf32>
    %83 = arith.mulf %82, %82 : vector<8x32xf32>
    %cst_36 = arith.constant dense<0.000000e+00> : vector<8xf32>
    %84 = vector.multi_reduction <add>, %83, %cst_36 [1] : vector<8x32xf32> to vector<8xf32>
    %85 = vector.shape_cast %84 : vector<8xf32> to vector<8x1xf32>
    %cst_37 = arith.constant 3.200000e+01 : f32
    %86 = vector.broadcast %cst_37 : f32 to vector<8x1xf32>
    %87 = arith.divf %85, %86 : vector<8x1xf32>
    %cst_38 = arith.constant 9.99999974E-6 : f32
    %88 = vector.broadcast %cst_38 : f32 to vector<8x1xf32>
    %89 = arith.addf %87, %88 : vector<8x1xf32>
    %90 = math.rsqrt %89 : vector<8x1xf32>
    %91 = vector.broadcast %90 : vector<8x1xf32> to vector<8x32xf32>
    %92 = arith.mulf %82, %91 : vector<8x32xf32>
    %c0_39 = arith.constant 0 : index
    %c0_40 = arith.constant 0 : index
    %93 = vector.load %arg10[%c0_39, %c0_40] : memref<1x32xf32, #tpu.memory_space<vmem>>, vector<1x32xf32>
    %94 = vector.broadcast %93 : vector<1x32xf32> to vector<8x32xf32>
    %95 = arith.mulf %92, %94 : vector<8x32xf32>
    %c0_41 = arith.constant 0 : index
    %c0_42 = arith.constant 0 : index
    %96 = vector.load %arg11[%c0_41, %c0_42] : memref<1x32xf32, #tpu.memory_space<vmem>>, vector<1x32xf32>
    %97 = vector.broadcast %96 : vector<1x32xf32> to vector<8x32xf32>
    %98 = arith.addf %95, %97 : vector<8x32xf32>
    %c0_43 = arith.constant 0 : index
    %c0_44 = arith.constant 0 : index
    %c0_45 = arith.constant 0 : index
    %99 = vector.load %arg12[%c0_43, %c0_44, %c0_45] : memref<1x8x32xf32, #tpu.memory_space<vmem>>, vector<1x8x32xf32>
    %100 = vector.shape_cast %99 : vector<1x8x32xf32> to vector<8x32xf32>
    %101 = vector.shape_cast %98 : vector<8x32xf32> to vector<1x8x32xf32>
    tpu.vector_store %arg12[%c0_43, %c0_44, %c0_45], %101 {strides = array<i32>} : memref<1x8x32xf32, #tpu.memory_space<vmem>>, vector<1x8x32xf32>,
    return
  }
  func.func @transform_0(%arg0: i32) -> (i32, i32, i32) {
    %c0_i32 = arith.constant 0 : i32
    %c0_i32_0 = arith.constant 0 : i32
    %c0_i32_1 = arith.constant 0 : i32
    return %arg0, %c0_i32, %c0_i32_0 : i32, i32, i32
  }
  func.func @transform_1(%arg0: i32) -> (i32, i32, i32) {
    %c0_i32 = arith.constant 0 : i32
    %c0_i32_0 = arith.constant 0 : i32
    %c0_i32_1 = arith.constant 0 : i32
    return %arg0, %c0_i32, %c0_i32_0 : i32, i32, i32
  }
  func.func @transform_2(%arg0: i32) -> (i32, i32, i32) {
    %c0_i32 = arith.constant 0 : i32
    %c0_i32_0 = arith.constant 0 : i32
    %c0_i32_1 = arith.constant 0 : i32
    return %arg0, %c0_i32, %c0_i32_0 : i32, i32, i32
  }
  func.func @transform_3(%arg0: i32) -> (i32, i32, i32) {
    %c0_i32 = arith.constant 0 : i32
    %c0_i32_0 = arith.constant 0 : i32
    %c0_i32_1 = arith.constant 0 : i32
    return %arg0, %c0_i32, %c0_i32_0 : i32, i32, i32
  }
  func.func @transform_4(%arg0: i32) -> (i32, i32) {
    %c0_i32 = arith.constant 0 : i32
    %c0_i32_0 = arith.constant 0 : i32
    %c0_i32_1 = arith.constant 0 : i32
    return %c0_i32, %c0_i32_0 : i32, i32
  }
  func.func @transform_5(%arg0: i32) -> (i32, i32) {
    %c0_i32 = arith.constant 0 : i32
    %c0_i32_0 = arith.constant 0 : i32
    %c0_i32_1 = arith.constant 0 : i32
    return %c0_i32, %c0_i32_0 : i32, i32
  }
  func.func @transform_6(%arg0: i32) -> (i32, i32) {
    %c0_i32 = arith.constant 0 : i32
    %c0_i32_0 = arith.constant 0 : i32
    %c0_i32_1 = arith.constant 0 : i32
    return %c0_i32, %c0_i32_0 : i32, i32
  }
  func.func @transform_7(%arg0: i32) -> (i32, i32, i32) {
    %c0_i32 = arith.constant 0 : i32
    %c0_i32_0 = arith.constant 0 : i32
    %c0_i32_1 = arith.constant 0 : i32
    %c0_i32_2 = arith.constant 0 : i32
    return %c0_i32, %c0_i32_0, %c0_i32_1 : i32, i32, i32
  }
  func.func @transform_8(%arg0: i32) -> (i32, i32) {
    %c0_i32 = arith.constant 0 : i32
    %c0_i32_0 = arith.constant 0 : i32
    %c0_i32_1 = arith.constant 0 : i32
    return %c0_i32, %c0_i32_0 : i32, i32
  }
  func.func @transform_9(%arg0: i32) -> (i32, i32) {
    %c0_i32 = arith.constant 0 : i32
    %c0_i32_0 = arith.constant 0 : i32
    %c0_i32_1 = arith.constant 0 : i32
    return %c0_i32, %c0_i32_0 : i32, i32
  }
  func.func @transform_10(%arg0: i32) -> (i32, i32) {
    %c0_i32 = arith.constant 0 : i32
    %c0_i32_0 = arith.constant 0 : i32
    %c0_i32_1 = arith.constant 0 : i32
    return %c0_i32, %c0_i32_0 : i32, i32
  }
  func.func @transform_11(%arg0: i32) -> (i32, i32, i32) {
    %c0_i32 = arith.constant 0 : i32
    %c0_i32_0 = arith.constant 0 : i32
    %c0_i32_1 = arith.constant 0 : i32
    return %arg0, %c0_i32, %c0_i32_0 : i32, i32, i32
  }
}

</mosaic_0001>

<llo_original>
// kernel: decoder_block.5
$region0: #{decoder_block.5}
  #allocation0 [shape = 'u32[]', space=smem, size = 0x4, offset = 0x4, fixed_abs, tag = 'smem constant byte address 0x4 - core index']
  #allocation1 [shape = 'u32[144,128]{1,0:T(1,128)}', space=vmem, size = 0x12000, scoped, tag = 'internal scratch']
  %s0 = inlined_call_operand.vmem [shape: f32[2,8,32], index: 0, kind: input, shape index: {}]
  %s1 = inlined_call_operand.vmem [shape: bf16[32,128], index: 1, kind: input, shape index: {}]
  %s2 = inlined_call_operand.vmem [shape: f32[1,128], index: 2, kind: input, shape index: {}]
  %s3 = inlined_call_operand.vmem [shape: bf16[128,32], index: 3, kind: input, shape index: {}]
  %s4 = inlined_call_operand.vmem [shape: f32[1,32], index: 4, kind: input, shape index: {}]
  %s5 = inlined_call_operand.vmem [shape: f32[1,32], index: 5, kind: input, shape index: {}]
  %s6 = inlined_call_operand.vmem [shape: f32[1,32], index: 6, kind: input, shape index: {}]
  %s7 = inlined_call_operand.hbm [shape: f32[2,8,32], index: 7, kind: output, shape index: {}]
  %s8 = sld [smem:[#allocation0]]
  $region61: #{decoder_block.5} parent=0
    _
  %s10 = ssub.s32 1, %s8
  %s11 = scalar_select 0, %s10, %s8
  $region1: #{decoder_block.5} parent=0
    #allocation2 [shape = 'u8[8192]{0}', space=vmem, size = 0x2000, scoped, tag = 'output window, operand 0']
    #allocation3 [shape = 's32[2]{0}', space=sflag, size = 0x8, scoped, tag = 'scoped memory for decoder_block.5']
    %12 = vsyncpa [#allocation3], 0
    %s13 = scalar_lea.sflag [#allocation3], 1
    %14 = vsyncpa %s13, 0
    loop: start=0, step=1, limit=4
    $region2: #{decoder_block.5} parent=1 // loop_pre_header
      _
    $region3: #{decoder_block.5} parent=1 // loop_header
      %s16 = sphi 0, %s20
      %p17 = scmp.ge.s32.totalorder %s16, 4
      %s26 = sphi 0, %s28
      %s29 = sphi 0, %s26
      %s30 = sphi 0, %s29
      %s46 = sphi 0, %s30
      %s50 = sphi 0, %s50
      %s52 = sphi 0, %s50
      %s53 = sphi 0, %s52
      %s67 = sphi 0, %s53
      %s71 = sphi 0, %s71
      %s73 = sphi 0, %s71
      %s74 = sphi 0, %s73
      %s88 = sphi 0, %s74
      %s92 = sphi 0, %s92
      %s94 = sphi 0, %s92
      %s95 = sphi 0, %s94
      %s109 = sphi 0, %s95
      %s113 = sphi 0, %s113
      %s115 = sphi 0, %s113
      %s116 = sphi 0, %s115
      %s130 = sphi 0, %s116
      %s134 = sphi 0, %s134
      %s136 = sphi 0, %s134
      %s137 = sphi 0, %s136
      %s151 = sphi 0, %s137
      %s155 = sphi 0, %s155
      %s157 = sphi 0, %s155
      %s158 = sphi 0, %s157
      %s172 = sphi 0, %s158
      %s178 = sphi 0, %s180
      %s181 = sphi 0, %s178
      %s182 = sphi 0, %s181
      %s198 = sphi 0, %s182
    $region4: #{decoder_block.5} parent=1 // loop_header_branch
      %19 = sbr.rel (%p17) target = $region8
    $region5: #{decoder_block.5} parent=1 // loop_body
      %s21 = ssub.s32 %s16, 1
      %s22 = ssub.s32 %s16, 2
      %s23 = sadd.s32 %s16, 1
      %s24 = ssub.s32 %s16, %s23
      %p25 = scmp.eq.s32.totalorder %s24, 0
      %s27 = sadd.s32 %s26, 1
      %s28 = scalar_select %p25, %s26, %s27
      %p31 = pneg %p25
      %p32 = scmp.eq.s32.totalorder %s16, 1
      %p33 = por %p31, %p32
      %p34 = scmp.ne.s32.totalorder %s26, %s29
      %p35 = scmp.eq.s32.totalorder %s16, 0
      %p36 = por %p34, %p35
      %p37 = scmp.ne.s32.totalorder %s26, %s29
      %p38 = scmp.eq.s32.totalorder %s21, 1
      %p39 = por %p37, %p38
      %p40 = scmp.ne.s32.totalorder %s29, %s30
      %p41 = scmp.eq.s32.totalorder %s21, 0
      %p42 = por %p40, %p41
      %p43 = scmp.ne.s32.totalorder %s29, %s30
      %p44 = scmp.eq.s32.totalorder %s22, 1
      %p45 = por %p43, %p44
      %p47 = scmp.ne.s32.totalorder %s30, %s46
      %p48 = scmp.eq.s32.totalorder %s22, 0
      %p49 = por %p47, %p48
      %s51 = sadd.s32 %s50, 1
      %p54 = scmp.eq.s32.totalorder %s16, 1
      %p55 = scmp.ne.s32.totalorder %s50, %s52
      %p56 = scmp.eq.s32.totalorder %s16, 0
      %p57 = por %p55, %p56
      %p58 = scmp.ne.s32.totalorder %s50, %s52
      %p59 = scmp.eq.s32.totalorder %s21, 1
      %p60 = por %p58, %p59
      %p61 = scmp.ne.s32.totalorder %s52, %s53
      %p62 = scmp.eq.s32.totalorder %s21, 0
      %p63 = por %p61, %p62
      %p64 = scmp.ne.s32.totalorder %s52, %s53
      %p65 = scmp.eq.s32.totalorder %s22, 1
      %p66 = por %p64, %p65
      %p68 = scmp.ne.s32.totalorder %s53, %s67
      %p69 = scmp.eq.s32.totalorder %s22, 0
      %p70 = por %p68, %p69
      %s72 = sadd.s32 %s71, 1
      %p75 = scmp.eq.s32.totalorder %s16, 1
      %p76 = scmp.ne.s32.totalorder %s71, %s73
      %p77 = scmp.eq.s32.totalorder %s16, 0
      %p78 = por %p76, %p77
      %p79 = scmp.ne.s32.totalorder %s71, %s73
      %p80 = scmp.eq.s32.totalorder %s21, 1
      %p81 = por %p79, %p80
      %p82 = scmp.ne.s32.totalorder %s73, %s74
      %p83 = scmp.eq.s32.totalorder %s21, 0
      %p84 = por %p82, %p83
      %p85 = scmp.ne.s32.totalorder %s73, %s74
      %p86 = scmp.eq.s32.totalorder %s22, 1
      %p87 = por %p85, %p86
      %p89 = scmp.ne.s32.totalorder %s74, %s88
      %p90 = scmp.eq.s32.totalorder %s22, 0
      %p91 = por %p89, %p90
      %s93 = sadd.s32 %s92, 1
      %p96 = scmp.eq.s32.totalorder %s16, 1
      %p97 = scmp.ne.s32.totalorder %s92, %s94
      %p98 = scmp.eq.s32.totalorder %s16, 0
      %p99 = por %p97, %p98
      %p100 = scmp.ne.s32.totalorder %s92, %s94
      %p101 = scmp.eq.s32.totalorder %s21, 1
      %p102 = por %p100, %p101
      %p103 = scmp.ne.s32.totalorder %s94, %s95
      %p104 = scmp.eq.s32.totalorder %s21, 0
      %p105 = por %p103, %p104
      %p106 = scmp.ne.s32.totalorder %s94, %s95
      %p107 = scmp.eq.s32.totalorder %s22, 1
      %p108 = por %p106, %p107
      %p110 = scmp.ne.s32.totalorder %s95, %s109
      %p111 = scmp.eq.s32.totalorder %s22, 0
      %p112 = por %p110, %p111
      %s114 = sadd.s32 %s113, 1
      %p117 = scmp.eq.s32.totalorder %s16, 1
      %p118 = scmp.ne.s32.totalorder %s113, %s115
      %p119 = scmp.eq.s32.totalorder %s16, 0
      %p120 = por %p118, %p119
      %p121 = scmp.ne.s32.totalorder %s113, %s115
      %p122 = scmp.eq.s32.totalorder %s21, 1
      %p123 = por %p121, %p122
      %p124 = scmp.ne.s32.totalorder %s115, %s116
      %p125 = scmp.eq.s32.totalorder %s21, 0
      %p126 = por %p124, %p125
      %p127 = scmp.ne.s32.totalorder %s115, %s116
      %p128 = scmp.eq.s32.totalorder %s22, 1
      %p129 = por %p127, %p128
      %p131 = scmp.ne.s32.totalorder %s116, %s130
      %p132 = scmp.eq.s32.totalorder %s22, 0
      %p133 = por %p131, %p132
      %s135 = sadd.s32 %s134, 1
      %p138 = scmp.eq.s32.totalorder %s16, 1
      %p139 = scmp.ne.s32.totalorder %s134, %s136
      %p140 = scmp.eq.s32.totalorder %s16, 0
      %p141 = por %p139, %p140
      %p142 = scmp.ne.s32.totalorder %s134, %s136
      %p143 = scmp.eq.s32.totalorder %s21, 1
      %p144 = por %p142, %p143
      %p145 = scmp.ne.s32.totalorder %s136, %s137
      %p146 = scmp.eq.s32.totalorder %s21, 0
      %p147 = por %p145, %p146
      %p148 = scmp.ne.s32.totalorder %s136, %s137
      %p149 = scmp.eq.s32.totalorder %s22, 1
      %p150 = por %p148, %p149
      %p152 = scmp.ne.s32.totalorder %s137, %s151
      %p153 = scmp.eq.s32.totalorder %s22, 0
      %p154 = por %p152, %p153
      %s156 = sadd.s32 %s155, 1
      %p159 = scmp.eq.s32.totalorder %s16, 1
      %p160 = scmp.ne.s32.totalorder %s155, %s157
      %p161 = scmp.eq.s32.totalorder %s16, 0
      %p162 = por %p160, %p161
      %p163 = scmp.ne.s32.totalorder %s155, %s157
      %p164 = scmp.eq.s32.totalorder %s21, 1
      %p165 = por %p163, %p164
      %p166 = scmp.ne.s32.totalorder %s157, %s158
      %p167 = scmp.eq.s32.totalorder %s21, 0
      %p168 = por %p166, %p167
      %p169 = scmp.ne.s32.totalorder %s157, %s158
      %p170 = scmp.eq.s32.totalorder %s22, 1
      %p171 = por %p169, %p170
      %p173 = scmp.ne.s32.totalorder %s158, %s172
      %p174 = scmp.eq.s32.totalorder %s22, 0
      %p175 = por %p173, %p174
      %s176 = ssub.s32 %s16, %s23
      %p177 = scmp.eq.s32.totalorder %s176, 0
      %s179 = sadd.s32 %s178, 1
      %s180 = scalar_select %p177, %s178, %s179
      %p183 = pneg %p177
      %p184 = scmp.eq.s32.totalorder %s16, 1
      %p185 = por %p183, %p184
      %p186 = scmp.ne.s32.totalorder %s178, %s181
      %p187 = scmp.eq.s32.totalorder %s16, 0
      %p188 = por %p186, %p187
      %p189 = scmp.ne.s32.totalorder %s178, %s181
      %p190 = scmp.eq.s32.totalorder %s21, 1
      %p191 = por %p189, %p190
      %p192 = scmp.ne.s32.totalorder %s181, %s182
      %p193 = scmp.eq.s32.totalorder %s21, 0
      %p194 = por %p192, %p193
      %p195 = scmp.ne.s32.totalorder %s181, %s182
      %p196 = scmp.eq.s32.totalorder %s22, 1
      %p197 = por %p195, %p196
      %p199 = scmp.ne.s32.totalorder %s182, %s198
      %p200 = scmp.eq.s32.totalorder %s22, 0
      %p201 = por %p199, %p200
      %p202 = scmp.le.s32.totalorder 1, %s16
      %p203 = scmp.lt.s32.totalorder %s16, 3
      %p204 = pnand %p202, %p203
      %p205 = pneg %p204
      // Predicated region
      $region9: #{decoder_block.5} parent=5 // pred_check
        _
      $region10: #{decoder_block.5} parent=5 // pred_check_branch
        %207 = sbr.rel (%p204) target = $region12
      $region11: #{decoder_block.5} parent=5 // pred_region
        %s208 = ssub.s32 %s16, 1
        // Predicated region
        $region13: #{decoder_block.5} parent=11 // pred_check
          %p209 = pneg %p63
        $region14: #{decoder_block.5} parent=11 // pred_check_branch
          %211 = sbr.rel (%p209) target = $region16
        $region15: #{decoder_block.5} parent=11 // pred_region
          _
        $region16: #{decoder_block.5} parent=11 // pred_fallthru
          _
        // Predicated region
        $region17: #{decoder_block.5} parent=11 // pred_check
          %p212 = pneg %p84
        $region18: #{decoder_block.5} parent=11 // pred_check_branch
          %214 = sbr.rel (%p212) target = $region20
        $region19: #{decoder_block.5} parent=11 // pred_region
          _
        $region20: #{decoder_block.5} parent=11 // pred_fallthru
          _
        // Predicated region
        $region21: #{decoder_block.5} parent=11 // pred_check
          %p215 = pneg %p105
        $region22: #{decoder_block.5} parent=11 // pred_check_branch
          %217 = sbr.rel (%p215) target = $region24
        $region23: #{decoder_block.5} parent=11 // pred_region
          _
        $region24: #{decoder_block.5} parent=11 // pred_fallthru
          _
        // Predicated region
        $region25: #{decoder_block.5} parent=11 // pred_check
          %p218 = pneg %p126
        $region26: #{decoder_block.5} parent=11 // pred_check_branch
          %220 = sbr.rel (%p218) target = $region28
        $region27: #{decoder_block.5} parent=11 // pred_region
          _
        $region28: #{decoder_block.5} parent=11 // pred_fallthru
          _
        // Predicated region
        $region29: #{decoder_block.5} parent=11 // pred_check
          %p221 = pneg %p147
        $region30: #{decoder_block.5} parent=11 // pred_check_branch
          %223 = sbr.rel (%p221) target = $region32
        $region31: #{decoder_block.5} parent=11 // pred_region
          _
        $region32: #{decoder_block.5} parent=11 // pred_fallthru
          _
        // Predicated region
        $region33: #{decoder_block.5} parent=11 // pred_check
          %p224 = pneg %p168
        $region34: #{decoder_block.5} parent=11 // pred_check_branch
          %226 = sbr.rel (%p224) target = $region36
        $region35: #{decoder_block.5} parent=11 // pred_region
          _
        $region36: #{decoder_block.5} parent=11 // pred_fallthru
          _
      $region12: #{decoder_block.5} parent=5 // pred_fallthru
        _
      %p227 = scmp.lt.s32.totalorder %s16, 2
      // Predicated region
      $region37: #{decoder_block.5} parent=5 // pred_check
        %p228 = pneg %p227
      $region38: #{decoder_block.5} parent=5 // pred_check_branch
        %230 = sbr.rel (%p228) target = $region40
      $region39: #{decoder_block.5} parent=5 // pred_region
        // Predicated region
        $region41: #{decoder_block.5} parent=39 // pred_check
          %p231 = pneg %p36
        $region42: #{decoder_block.5} parent=39 // pred_check_branch
          %233 = sbr.rel (%p231) target = $region44
        $region43: #{decoder_block.5} parent=39 // pred_region
          %p234 = scmp.lt.s32.totalorder %s16, 1
          %s235 = scalar_select %p234, %s16, 1
          %s236 = smul.addr %s235, 8
          %s237 = scalar_lea.vmem %s0, %s236
        $region44: #{decoder_block.5} parent=39 // pred_fallthru
          _
      $region40: #{decoder_block.5} parent=5 // pred_fallthru
        _
      %p238 = scmp.le.s32.totalorder 1, %s16
      %p239 = scmp.lt.s32.totalorder %s16, 3
      %p240 = pnand %p238, %p239
      %p241 = pneg %p240
      // Predicated region
      $region45: #{decoder_block.5} parent=5 // pred_check
        _
      $region46: #{decoder_block.5} parent=5 // pred_check_branch
        %243 = sbr.rel (%p240) target = $region48
      $region47: #{decoder_block.5} parent=5 // pred_region
        %s244 = ssub.s32 %s16, 1
        %p245 = scmp.lt.s32.totalorder %s21, 1
        %s246 = scalar_select %p245, %s21, 1
        %s247 = smul.addr %s246, 8
        %s248 = scalar_lea.vmem %s0, %s247
        %p249 = pneg %p42
        %p250 = pneg %p39
        %p251 = pneg %p63
        %p252 = pneg %p60
        %p253 = pneg %p84
        %p254 = pneg %p81
        %p255 = pneg %p105
        %p256 = pneg %p102
        %p257 = pneg %p126
        %p258 = pneg %p123
        %p259 = pneg %p147
        %p260 = pneg %p144
        %p261 = pneg %p168
        %p262 = pneg %p165
        %p263 = pneg %p194
        %p264 = pneg %p191
        %s265 = sand.u32 %s181, 1
        %s266 = scalar_lea.sflag [#allocation3], %s265
        %s267 = sand.u32 %s181, 1
        %s268 = smul.addr %s267, 8
        %s269 = scalar_lea.vmem [#allocation2], %s268
        %p270 = scmp.lt.s32.totalorder %s21, 1
        %s271 = scalar_select %p270, %s21, 1
        %s272 = smul.addr %s271, 8
        %s273 = scalar_lea.vmem %s0, %s272
        %v275 = vld [vmem:[%s273] sm:$0xff]
        %v276 = vpack.c.bf16 %v275, %v275
        %v277 = vld [vmem:[%s1] sm:$0xf]
        %v278 = vld [vmem:[%s1 + $0x4] sm:$0xf]
        %v279 = vld [vmem:[%s1 + $0x8] sm:$0xf]
        %v280 = vld [vmem:[%s1 + $0xc] sm:$0xf]
        %v281 = vld [vmem:[%s2] sm:$0x1]
        %v283 = vlaneseq
        %v284 = vshrl.u32 %v283, 7
        %v285 = vsub.s32 0, %v284
        %v286 = vrot.slane %v281, %v285
        %v292 = vunpack.c.l.b16 %v277
        %v293 = vunpack.c.l.b16 %v278
        %v294 = vunpack.c.l.b16 %v279
        %v295 = vunpack.c.l.b16 %v280
        %v296 = vpack.c.b16 %v293, %v292
        %v297 = vpack.c.b16 %v295, %v294
        %vm300 = vcmask 261120
        %v302 = vsel %vm300, %v276, 0
        %304 = vmatprep.subr.bf16.mxu0 0
        %305 = vmatpush1.bf16.msra.mxu0 %v296
        %306 = vmatprep.subr.bf16.mxu0 0
        %307 = vmatpush1.bf16.msra.mxu0 %v297
        %308 = vmatprep.subr.bf16.mxu0 0
        %309 = vmatpush1.bf16.msra.mxu0 0
        %310 = vmatprep.subr.bf16.mxu0 0
        %311 = vmatpush1.bf16.msra.mxu0 0
        %312 = vmatprep.subr.bf16.mxu0 0
        %313 = vmatpush1.bf16.msra.mxu0 0
        %314 = vmatprep.subr.bf16.mxu0 0
        %315 = vmatpush1.bf16.msra.mxu0 0
        %316 = vmatprep.subr.bf16.mxu0 0
        %317 = vmatpush1.bf16.msra.mxu0 0
        %318 = vmatprep.subr.bf16.mxu0 0
        %319 = vmatpush1.bf16.msra.mxu0 0
        %320 = vmatprep.subr.bf16.mxu0 0
        %321 = vmatpush1.bf16.msra.mxu0 0
        %322 = vmatprep.subr.bf16.mxu0 0
        %323 = vmatpush1.bf16.msra.mxu0 0
        %324 = vmatprep.subr.bf16.mxu0 0
        %325 = vmatpush1.bf16.msra.mxu0 0
        %326 = vmatprep.subr.bf16.mxu0 0
        %327 = vmatpush1.bf16.msra.mxu0 0
        %328 = vmatprep.subr.bf16.mxu0 0
        %329 = vmatpush1.bf16.msra.mxu0 0
        %330 = vmatprep.subr.bf16.mxu0 0
        %331 = vmatpush1.bf16.msra.mxu0 0
        %332 = vmatprep.subr.bf16.mxu0 0
        %333 = vmatpush1.bf16.msra.mxu0 0
        %334 = vmatprep.subr.bf16.mxu0 0
        %335 = vmatpush1.bf16.msra.mxu0 0
        %336 = vmatprep.mubr.bf16.mxu0 0
        %337 = vmatmul.mubr.bf16.gmra.mrb[0].mxu0 %v302
        %v338 = vpop.f32.mrb[0].mxu0
        %v339 = vadd.f32 %v286, %v338
        %v340 = vpop.f32.mrb[0].mxu0
        %v341 = vpop.f32.mrb[0].mxu0
        %v342 = vpop.f32.mrb[0].mxu0
        %343 = vdwg.mxu0
        %v344 = vmax.f32 %v339, 0.0
        %v345 = vpack.c.bf16 %v344, %v344
        %v346 = vld [vmem:[%s3] sm:$0xf]
        %v347 = vld [vmem:[%s3 + $0x4] sm:$0xf]
        %v348 = vld [vmem:[%s3 + $0x8] sm:$0xf]
        %v349 = vld [vmem:[%s3 + $0xc] sm:$0xf]
        %v350 = vld [vmem:[%s3 + $0x10] sm:$0xf]
        %v351 = vld [vmem:[%s3 + $0x14] sm:$0xf]
        %v352 = vld [vmem:[%s3 + $0x18] sm:$0xf]
        %v353 = vld [vmem:[%s3 + $0x1c] sm:$0xf]
        %v354 = vld [vmem:[%s3 + $0x20] sm:$0xf]
        %v355 = vld [vmem:[%s3 + $0x24] sm:$0xf]
        %v356 = vld [vmem:[%s3 + $0x28] sm:$0xf]
        %v357 = vld [vmem:[%s3 + $0x2c] sm:$0xf]
        %v358 = vld [vmem:[%s3 + $0x30] sm:$0xf]
        %v359 = vld [vmem:[%s3 + $0x34] sm:$0xf]
        %v360 = vld [vmem:[%s3 + $0x38] sm:$0xf]
        %v361 = vld [vmem:[%s3 + $0x3c] sm:$0xf]
        %v362 = vld [vmem:[%s4] sm:$0x1]
        %v364 = vlaneseq
        %v365 = vshrl.u32 %v364, 7
        %v366 = vsub.s32 0, %v365
        %v367 = vrot.slane %v362, %v366
        %v385 = vunpack.c.l.b16 %v346
        %v386 = vunpack.c.l.b16 %v347
        %v387 = vunpack.c.l.b16 %v348
        %v388 = vunpack.c.l.b16 %v349
        %v389 = vunpack.c.l.b16 %v350
        %v390 = vunpack.c.l.b16 %v351
        %v391 = vunpack.c.l.b16 %v352
        %v392 = vunpack.c.l.b16 %v353
        %v393 = vunpack.c.l.b16 %v354
        %v394 = vunpack.c.l.b16 %v355
        %v395 = vunpack.c.l.b16 %v356
        %v396 = vunpack.c.l.b16 %v357
        %v397 = vunpack.c.l.b16 %v358
        %v398 = vunpack.c.l.b16 %v359
        %v399 = vunpack.c.l.b16 %v360
        %v400 = vunpack.c.l.b16 %v361
        %v401 = vpack.c.b16 %v386, %v385
        %v402 = vpack.c.b16 %v388, %v387
        %v403 = vpack.c.b16 %v390, %v389
        %v404 = vpack.c.b16 %v392, %v391
        %v405 = vpack.c.b16 %v394, %v393
        %v406 = vpack.c.b16 %v396, %v395
        %v407 = vpack.c.b16 %v398, %v397
        %v408 = vpack.c.b16 %v400, %v399
        %417 = vmatprep.subr.bf16.mxu0 0
        %418 = vmatpush1.bf16.msra.mxu0 %v401
        %419 = vmatprep.subr.bf16.mxu0 0
        %420 = vmatpush1.bf16.msra.mxu0 %v402
        %421 = vmatprep.subr.bf16.mxu0 0
        %422 = vmatpush1.bf16.msra.mxu0 %v403
        %423 = vmatprep.subr.bf16.mxu0 0
        %424 = vmatpush1.bf16.msra.mxu0 %v404
        %425 = vmatprep.subr.bf16.mxu0 0
        %426 = vmatpush1.bf16.msra.mxu0 %v405
        %427 = vmatprep.subr.bf16.mxu0 0
        %428 = vmatpush1.bf16.msra.mxu0 %v406
        %429 = vmatprep.subr.bf16.mxu0 0
        %430 = vmatpush1.bf16.msra.mxu0 %v407
        %431 = vmatprep.subr.bf16.mxu0 0
        %432 = vmatpush1.bf16.msra.mxu0 %v408
        %433 = vmatprep.subr.bf16.mxu0 0
        %434 = vmatpush1.bf16.msra.mxu0 0
        %435 = vmatprep.subr.bf16.mxu0 0
        %436 = vmatpush1.bf16.msra.mxu0 0
        %437 = vmatprep.subr.bf16.mxu0 0
        %438 = vmatpush1.bf16.msra.mxu0 0
        %439 = vmatprep.subr.bf16.mxu0 0
        %440 = vmatpush1.bf16.msra.mxu0 0
        %441 = vmatprep.subr.bf16.mxu0 0
        %442 = vmatpush1.bf16.msra.mxu0 0
        %443 = vmatprep.subr.bf16.mxu0 0
        %444 = vmatpush1.bf16.msra.mxu0 0
        %445 = vmatprep.subr.bf16.mxu0 0
        %446 = vmatpush1.bf16.msra.mxu0 0
        %447 = vmatprep.subr.bf16.mxu0 0
        %448 = vmatpush1.bf16.msra.mxu0 0
        %449 = vmatprep.mubr.bf16.mxu0 0
        %450 = vmatmul.mubr.bf16.gmra.mrb[0].mxu0 %v345
        %v451 = vpop.f32.mrb[0].mxu0
        %v452 = vadd.f32 %v367, %v451
        %v453 = vpop.f32.mrb[0].mxu0
        %v454 = vpop.f32.mrb[0].mxu0
        %v455 = vpop.f32.mrb[0].mxu0
        %456 = vdwg.mxu0
        %v457 = vadd.f32 %v452, %v275
        %v458 = vsel %vm300, %v457, 0.0
        %459 = vadd.xlane.f32.xlu0 %v458
        %v460 = vpop.xlane.xlu0 %459
        %v461 = vrcp.pop 32.0
        %v462 = vmul.f32 %v460, %v461
        %v463 = vsub.f32 %v457, %v462
        %v464 = vmul.f32 %v463, %v463
        %v465 = vsel %vm300, %v464, 0.0
        %466 = vadd.xlane.f32.xlu0 %v465
        %v467 = vpop.xlane.xlu0 %466
        %v468 = vmul.f32 %v467, %v461
        %v469 = vadd.f32 %v468, 1e-05
        %v470 = vrsqrt.pop %v469
        %v471 = vmul.f32 %v463, %v470
        %v472 = vld [vmem:[%s5] sm:$0x1]
        %v474 = vlaneseq
        %v475 = vshrl.u32 %v474, 7
        %v476 = vsub.s32 0, %v475
        %v477 = vrot.slane %v472, %v476
        %v479 = vmul.f32 %v471, %v477
        %v480 = vld [vmem:[%s6] sm:$0x1]
        %v482 = vlaneseq
        %v483 = vshrl.u32 %v482, 7
        %v484 = vsub.s32 0, %v483
        %v485 = vrot.slane %v480, %v484
        %v487 = vadd.f32 %v479, %v485
        %488 = vst.msk [vmem:[%s269] sm:$0xff] %vm300, %v487
        %s489 = sand.u32 %s181, 1
        %s490 = scalar_lea.sflag [#allocation3], %s489
        %s491 = sand.u32 %s181, 1
        %s492 = smul.addr %s491, 8
        %s493 = scalar_lea.vmem [#allocation2], %s492
        // Predicated region
        $region49: #{decoder_block.5} parent=47 // pred_check
          %p494 = pneg %p191
        $region50: #{decoder_block.5} parent=47 // pred_check_branch
          %496 = sbr.rel (%p494) target = $region52
        $region51: #{decoder_block.5} parent=47 // pred_region
          %s498 = ssub.s32 128, 128
          %499 = vsyncadd %s490, %s498
          %s500 = smul.addr %s21, 128
          %s501 = scalar_lea.hbm %s7, %s500
          %s503 = sshll.u32 %s493, 4
          %s504 = int_to_ptr.vmem [resolvable:$true] %s503
          %506 = dma.vmem_to_hbm [thread:$0]  %s504, 128, %s501, %s490
        $region52: #{decoder_block.5} parent=47 // pred_fallthru
          _
      $region48: #{decoder_block.5} parent=5 // pred_fallthru
        _
      %p507 = scmp.le.s32.totalorder 2, %s16
      // Predicated region
      $region53: #{decoder_block.5} parent=5 // pred_check
        %p508 = pneg %p507
      $region54: #{decoder_block.5} parent=5 // pred_check_branch
        %510 = sbr.rel (%p508) target = $region56
      $region55: #{decoder_block.5} parent=5 // pred_region
        %s511 = ssub.s32 %s16, 2
        // Predicated region
        $region57: #{decoder_block.5} parent=55 // pred_check
          %p512 = pneg %p197
        $region58: #{decoder_block.5} parent=55 // pred_check_branch
          %514 = sbr.rel (%p512) target = $region60
        $region59: #{decoder_block.5} parent=55 // pred_region
          %s515 = sand.u32 %s182, 1
          %s516 = scalar_lea.sflag [#allocation3], %s515
          %s517 = sand.u32 %s182, 1
          %s518 = smul.addr %s517, 8
          %s519 = scalar_lea.vmem [#allocation2], %s518
          %520 = dma.done %s516, 128
        $region60: #{decoder_block.5} parent=55 // pred_fallthru
          _
      $region56: #{decoder_block.5} parent=5 // pred_fallthru
        _
    $region6: #{decoder_block.5} parent=1 // loop_footer
      %s20 = sadd.s32 1, %s16
    $region7: #{decoder_block.5} parent=1 // loop_footer_branch
      %15 = sbr.rel target = $region3
    $region8: #{decoder_block.5} parent=1 // loop_exit
      _
    %521 = vsyncpa [#allocation3], 1
    %s522 = scalar_lea.sflag [#allocation3], 1
    %523 = vsyncpa %s522, 1

// kernel: decoder_block.4
$region0: #{decoder_block.4}
  #allocation0 [shape = 'u32[]', space=smem, size = 0x4, offset = 0x4, fixed_abs, tag = 'smem constant byte address 0x4 - core index']
  #allocation1 [shape = 'u32[144,128]{1,0:T(1,128)}', space=vmem, size = 0x12000, scoped, tag = 'internal scratch']
  %s0 = inlined_call_operand.vmem [shape: f32[2,8,32], index: 0, kind: input, shape index: {}]
  %s1 = inlined_call_operand.vmem [shape: f32[2,8,32], index: 1, kind: input, shape index: {}]
  %s2 = inlined_call_operand.vmem [shape: f32[2,8,32], index: 2, kind: input, shape index: {}]
  %s3 = inlined_call_operand.vmem [shape: f32[2,1,8], index: 3, kind: input, shape index: {}]
  %s4 = inlined_call_operand.vmem [shape: bf16[32,32], index: 4, kind: input, shape index: {}]
  %s5 = inlined_call_operand.vmem [shape: bf16[32,32], index: 5, kind: input, shape index: {}]
  %s6 = inlined_call_operand.vmem [shape: bf16[32,32], index: 6, kind: input, shape index: {}]
  %s7 = inlined_call_operand.vmem [shape: bf16[4,8,32], index: 7, kind: input, shape index: {}]
  %s8 = inlined_call_operand.vmem [shape: f32[1,32], index: 8, kind: input, shape index: {}]
  %s9 = inlined_call_operand.vmem [shape: f32[1,32], index: 9, kind: input, shape index: {}]
  %s10 = inlined_call_operand.vmem [shape: f32[1,32], index: 10, kind: input, shape index: {}]
  %s11 = inlined_call_operand.vmem [shape: f32[2,8,32], index: 11, kind: output, shape index: {}]
  %s12 = sld [smem:[#allocation0]]
  $region77: #{decoder_block.4} parent=0
    _
  %s14 = ssub.s32 1, %s12
  %s15 = scalar_select 0, %s14, %s12
  loop: start=0, step=1, limit=4
  $region2: #{decoder_block.4} parent=0 // loop_pre_header
    _
  $region3: #{decoder_block.4} parent=0 // loop_header
    %s17 = sphi 0, %s21
    %p18 = scmp.ge.s32.totalorder %s17, 4
    %s27 = sphi 0, %s29
    %s30 = sphi 0, %s27
    %s31 = sphi 0, %s30
    %s47 = sphi 0, %s31
    %s53 = sphi 0, %s55
    %s56 = sphi 0, %s53
    %s57 = sphi 0, %s56
    %s73 = sphi 0, %s57
    %s79 = sphi 0, %s81
    %s82 = sphi 0, %s79
    %s83 = sphi 0, %s82
    %s99 = sphi 0, %s83
    %s105 = sphi 0, %s107
    %s108 = sphi 0, %s105
    %s109 = sphi 0, %s108
    %s125 = sphi 0, %s109
    %s129 = sphi 0, %s129
    %s131 = sphi 0, %s129
    %s132 = sphi 0, %s131
    %s146 = sphi 0, %s132
    %s150 = sphi 0, %s150
    %s152 = sphi 0, %s150
    %s153 = sphi 0, %s152
    %s167 = sphi 0, %s153
    %s171 = sphi 0, %s171
    %s173 = sphi 0, %s171
    %s174 = sphi 0, %s173
    %s188 = sphi 0, %s174
    %s192 = sphi 0, %s192
    %s194 = sphi 0, %s192
    %s195 = sphi 0, %s194
    %s209 = sphi 0, %s195
    %s213 = sphi 0, %s213
    %s215 = sphi 0, %s213
    %s216 = sphi 0, %s215
    %s230 = sphi 0, %s216
    %s234 = sphi 0, %s234
    %s236 = sphi 0, %s234
    %s237 = sphi 0, %s236
    %s251 = sphi 0, %s237
    %s255 = sphi 0, %s255
    %s257 = sphi 0, %s255
    %s258 = sphi 0, %s257
    %s272 = sphi 0, %s258
    %s278 = sphi 0, %s280
    %s281 = sphi 0, %s278
    %s282 = sphi 0, %s281
    %s298 = sphi 0, %s282
  $region4: #{decoder_block.4} parent=0 // loop_header_branch
    %20 = sbr.rel (%p18) target = $region8
  $region5: #{decoder_block.4} parent=0 // loop_body
    %s22 = ssub.s32 %s17, 1
    %s23 = ssub.s32 %s17, 2
    %s24 = sadd.s32 %s17, 1
    %s25 = ssub.s32 %s17, %s24
    %p26 = scmp.eq.s32.totalorder %s25, 0
    %s28 = sadd.s32 %s27, 1
    %s29 = scalar_select %p26, %s27, %s28
    %p32 = pneg %p26
    %p33 = scmp.eq.s32.totalorder %s17, 1
    %p34 = por %p32, %p33
    %p35 = scmp.ne.s32.totalorder %s27, %s30
    %p36 = scmp.eq.s32.totalorder %s17, 0
    %p37 = por %p35, %p36
    %p38 = scmp.ne.s32.totalorder %s27, %s30
    %p39 = scmp.eq.s32.totalorder %s22, 1
    %p40 = por %p38, %p39
    %p41 = scmp.ne.s32.totalorder %s30, %s31
    %p42 = scmp.eq.s32.totalorder %s22, 0
    %p43 = por %p41, %p42
    %p44 = scmp.ne.s32.totalorder %s30, %s31
    %p45 = scmp.eq.s32.totalorder %s23, 1
    %p46 = por %p44, %p45
    %p48 = scmp.ne.s32.totalorder %s31, %s47
    %p49 = scmp.eq.s32.totalorder %s23, 0
    %p50 = por %p48, %p49
    %s51 = ssub.s32 %s17, %s24
    %p52 = scmp.eq.s32.totalorder %s51, 0
    %s54 = sadd.s32 %s53, 1
    %s55 = scalar_select %p52, %s53, %s54
    %p58 = pneg %p52
    %p59 = scmp.eq.s32.totalorder %s17, 1
    %p60 = por %p58, %p59
    %p61 = scmp.ne.s32.totalorder %s53, %s56
    %p62 = scmp.eq.s32.totalorder %s17, 0
    %p63 = por %p61, %p62
    %p64 = scmp.ne.s32.totalorder %s53, %s56
    %p65 = scmp.eq.s32.totalorder %s22, 1
    %p66 = por %p64, %p65
    %p67 = scmp.ne.s32.totalorder %s56, %s57
    %p68 = scmp.eq.s32.totalorder %s22, 0
    %p69 = por %p67, %p68
    %p70 = scmp.ne.s32.totalorder %s56, %s57
    %p71 = scmp.eq.s32.totalorder %s23, 1
    %p72 = por %p70, %p71
    %p74 = scmp.ne.s32.totalorder %s57, %s73
    %p75 = scmp.eq.s32.totalorder %s23, 0
    %p76 = por %p74, %p75
    %s77 = ssub.s32 %s17, %s24
    %p78 = scmp.eq.s32.totalorder %s77, 0
    %s80 = sadd.s32 %s79, 1
    %s81 = scalar_select %p78, %s79, %s80
    %p84 = pneg %p78
    %p85 = scmp.eq.s32.totalorder %s17, 1
    %p86 = por %p84, %p85
    %p87 = scmp.ne.s32.totalorder %s79, %s82
    %p88 = scmp.eq.s32.totalorder %s17, 0
    %p89 = por %p87, %p88
    %p90 = scmp.ne.s32.totalorder %s79, %s82
    %p91 = scmp.eq.s32.totalorder %s22, 1
    %p92 = por %p90, %p91
    %p93 = scmp.ne.s32.totalorder %s82, %s83
    %p94 = scmp.eq.s32.totalorder %s22, 0
    %p95 = por %p93, %p94
    %p96 = scmp.ne.s32.totalorder %s82, %s83
    %p97 = scmp.eq.s32.totalorder %s23, 1
    %p98 = por %p96, %p97
    %p100 = scmp.ne.s32.totalorder %s83, %s99
    %p101 = scmp.eq.s32.totalorder %s23, 0
    %p102 = por %p100, %p101
    %s103 = ssub.s32 %s17, %s24
    %p104 = scmp.eq.s32.totalorder %s103, 0
    %s106 = sadd.s32 %s105, 1
    %s107 = scalar_select %p104, %s105, %s106
    %p110 = pneg %p104
    %p111 = scmp.eq.s32.totalorder %s17, 1
    %p112 = por %p110, %p111
    %p113 = scmp.ne.s32.totalorder %s105, %s108
    %p114 = scmp.eq.s32.totalorder %s17, 0
    %p115 = por %p113, %p114
    %p116 = scmp.ne.s32.totalorder %s105, %s108
    %p117 = scmp.eq.s32.totalorder %s22, 1
    %p118 = por %p116, %p117
    %p119 = scmp.ne.s32.totalorder %s108, %s109
    %p120 = scmp.eq.s32.totalorder %s22, 0
    %p121 = por %p119, %p120
    %p122 = scmp.ne.s32.totalorder %s108, %s109
    %p123 = scmp.eq.s32.totalorder %s23, 1
    %p124 = por %p122, %p123
    %p126 = scmp.ne.s32.totalorder %s109, %s125
    %p127 = scmp.eq.s32.totalorder %s23, 0
    %p128 = por %p126, %p127
    %s130 = sadd.s32 %s129, 1
    %p133 = scmp.eq.s32.totalorder %s17, 1
    %p134 = scmp.ne.s32.totalorder %s129, %s131
    %p135 = scmp.eq.s32.totalorder %s17, 0
    %p136 = por %p134, %p135
    %p137 = scmp.ne.s32.totalorder %s129, %s131
    %p138 = scmp.eq.s32.totalorder %s22, 1
    %p139 = por %p137, %p138
    %p140 = scmp.ne.s32.totalorder %s131, %s132
    %p141 = scmp.eq.s32.totalorder %s22, 0
    %p142 = por %p140, %p141
    %p143 = scmp.ne.s32.totalorder %s131, %s132
    %p144 = scmp.eq.s32.totalorder %s23, 1
    %p145 = por %p143, %p144
    %p147 = scmp.ne.s32.totalorder %s132, %s146
    %p148 = scmp.eq.s32.totalorder %s23, 0
    %p149 = por %p147, %p148
    %s151 = sadd.s32 %s150, 1
    %p154 = scmp.eq.s32.totalorder %s17, 1
    %p155 = scmp.ne.s32.totalorder %s150, %s152
    %p156 = scmp.eq.s32.totalorder %s17, 0
    %p157 = por %p155, %p156
    %p158 = scmp.ne.s32.totalorder %s150, %s152
    %p159 = scmp.eq.s32.totalorder %s22, 1
    %p160 = por %p158, %p159
    %p161 = scmp.ne.s32.totalorder %s152, %s153
    %p162 = scmp.eq.s32.totalorder %s22, 0
    %p163 = por %p161, %p162
    %p164 = scmp.ne.s32.totalorder %s152, %s153
    %p165 = scmp.eq.s32.totalorder %s23, 1
    %p166 = por %p164, %p165
    %p168 = scmp.ne.s32.totalorder %s153, %s167
    %p169 = scmp.eq.s32.totalorder %s23, 0
    %p170 = por %p168, %p169
    %s172 = sadd.s32 %s171, 1
    %p175 = scmp.eq.s32.totalorder %s17, 1
    %p176 = scmp.ne.s32.totalorder %s171, %s173
    %p177 = scmp.eq.s32.totalorder %s17, 0
    %p178 = por %p176, %p177
    %p179 = scmp.ne.s32.totalorder %s171, %s173
    %p180 = scmp.eq.s32.totalorder %s22, 1
    %p181 = por %p179, %p180
    %p182 = scmp.ne.s32.totalorder %s173, %s174
    %p183 = scmp.eq.s32.totalorder %s22, 0
    %p184 = por %p182, %p183
    %p185 = scmp.ne.s32.totalorder %s173, %s174
    %p186 = scmp.eq.s32.totalorder %s23, 1
    %p187 = por %p185, %p186
    %p189 = scmp.ne.s32.totalorder %s174, %s188
    %p190 = scmp.eq.s32.totalorder %s23, 0
    %p191 = por %p189, %p190
    %s193 = sadd.s32 %s192, 1
    %p196 = scmp.eq.s32.totalorder %s17, 1
    %p197 = scmp.ne.s32.totalorder %s192, %s194
    %p198 = scmp.eq.s32.totalorder %s17, 0
    %p199 = por %p197, %p198
    %p200 = scmp.ne.s32.totalorder %s192, %s194
    %p201 = scmp.eq.s32.totalorder %s22, 1
    %p202 = por %p200, %p201
    %p203 = scmp.ne.s32.totalorder %s194, %s195
    %p204 = scmp.eq.s32.totalorder %s22, 0
    %p205 = por %p203, %p204
    %p206 = scmp.ne.s32.totalorder %s194, %s195
    %p207 = scmp.eq.s32.totalorder %s23, 1
    %p208 = por %p206, %p207
    %p210 = scmp.ne.s32.totalorder %s195, %s209
    %p211 = scmp.eq.s32.totalorder %s23, 0
    %p212 = por %p210, %p211
    %s214 = sadd.s32 %s213, 1
    %p217 = scmp.eq.s32.totalorder %s17, 1
    %p218 = scmp.ne.s32.totalorder %s213, %s215
    %p219 = scmp.eq.s32.totalorder %s17, 0
    %p220 = por %p218, %p219
    %p221 = scmp.ne.s32.totalorder %s213, %s215
    %p222 = scmp.eq.s32.totalorder %s22, 1
    %p223 = por %p221, %p222
    %p224 = scmp.ne.s32.totalorder %s215, %s216
    %p225 = scmp.eq.s32.totalorder %s22, 0
    %p226 = por %p224, %p225
    %p227 = scmp.ne.s32.totalorder %s215, %s216
    %p228 = scmp.eq.s32.totalorder %s23, 1
    %p229 = por %p227, %p228
    %p231 = scmp.ne.s32.totalorder %s216, %s230
    %p232 = scmp.eq.s32.totalorder %s23, 0
    %p233 = por %p231, %p232
    %s235 = sadd.s32 %s234, 1
    %p238 = scmp.eq.s32.totalorder %s17, 1
    %p239 = scmp.ne.s32.totalorder %s234, %s236
    %p240 = scmp.eq.s32.totalorder %s17, 0
    %p241 = por %p239, %p240
    %p242 = scmp.ne.s32.totalorder %s234, %s236
    %p243 = scmp.eq.s32.totalorder %s22, 1
    %p244 = por %p242, %p243
    %p245 = scmp.ne.s32.totalorder %s236, %s237
    %p246 = scmp.eq.s32.totalorder %s22, 0
    %p247 = por %p245, %p246
    %p248 = scmp.ne.s32.totalorder %s236, %s237
    %p249 = scmp.eq.s32.totalorder %s23, 1
    %p250 = por %p248, %p249
    %p252 = scmp.ne.s32.totalorder %s237, %s251
    %p253 = scmp.eq.s32.totalorder %s23, 0
    %p254 = por %p252, %p253
    %s256 = sadd.s32 %s255, 1
    %p259 = scmp.eq.s32.totalorder %s17, 1
    %p260 = scmp.ne.s32.totalorder %s255, %s257
    %p261 = scmp.eq.s32.totalorder %s17, 0
    %p262 = por %p260, %p261
    %p263 = scmp.ne.s32.totalorder %s255, %s257
    %p264 = scmp.eq.s32.totalorder %s22, 1
    %p265 = por %p263, %p264
    %p266 = scmp.ne.s32.totalorder %s257, %s258
    %p267 = scmp.eq.s32.totalorder %s22, 0
    %p268 = por %p266, %p267
    %p269 = scmp.ne.s32.totalorder %s257, %s258
    %p270 = scmp.eq.s32.totalorder %s23, 1
    %p271 = por %p269, %p270
    %p273 = scmp.ne.s32.totalorder %s258, %s272
    %p274 = scmp.eq.s32.totalorder %s23, 0
    %p275 = por %p273, %p274
    %s276 = ssub.s32 %s17, %s24
    %p277 = scmp.eq.s32.totalorder %s276, 0
    %s279 = sadd.s32 %s278, 1
    %s280 = scalar_select %p277, %s278, %s279
    %p283 = pneg %p277
    %p284 = scmp.eq.s32.totalorder %s17, 1
    %p285 = por %p283, %p284
    %p286 = scmp.ne.s32.totalorder %s278, %s281
    %p287 = scmp.eq.s32.totalorder %s17, 0
    %p288 = por %p286, %p287
    %p289 = scmp.ne.s32.totalorder %s278, %s281
    %p290 = scmp.eq.s32.totalorder %s22, 1
    %p291 = por %p289, %p290
    %p292 = scmp.ne.s32.totalorder %s281, %s282
    %p293 = scmp.eq.s32.totalorder %s22, 0
    %p294 = por %p292, %p293
    %p295 = scmp.ne.s32.totalorder %s281, %s282
    %p296 = scmp.eq.s32.totalorder %s23, 1
    %p297 = por %p295, %p296
    %p299 = scmp.ne.s32.totalorder %s282, %s298
    %p300 = scmp.eq.s32.totalorder %s23, 0
    %p301 = por %p299, %p300
    %p302 = scmp.le.s32.totalorder 1, %s17
    %p303 = scmp.lt.s32.totalorder %s17, 3
    %p304 = pnand %p302, %p303
    %p305 = pneg %p304
    // Predicated region
    $region9: #{decoder_block.4} parent=5 // pred_check
      _
    $region10: #{decoder_block.4} parent=5 // pred_check_branch
      %307 = sbr.rel (%p304) target = $region12
    $region11: #{decoder_block.4} parent=5 // pred_region
      %s308 = ssub.s32 %s17, 1
      // Predicated region
      $region13: #{decoder_block.4} parent=11 // pred_check
        %p309 = pneg %p142
      $region14: #{decoder_block.4} parent=11 // pred_check_branch
        %311 = sbr.rel (%p309) target = $region16
      $region15: #{decoder_block.4} parent=11 // pred_region
        _
      $region16: #{decoder_block.4} parent=11 // pred_fallthru
        _
      // Predicated region
      $region17: #{decoder_block.4} parent=11 // pred_check
        %p312 = pneg %p163
      $region18: #{decoder_block.4} parent=11 // pred_check_branch
        %314 = sbr.rel (%p312) target = $region20
      $region19: #{decoder_block.4} parent=11 // pred_region
        _
      $region20: #{decoder_block.4} parent=11 // pred_fallthru
        _
      // Predicated region
      $region21: #{decoder_block.4} parent=11 // pred_check
        %p315 = pneg %p184
      $region22: #{decoder_block.4} parent=11 // pred_check_branch
        %317 = sbr.rel (%p315) target = $region24
      $region23: #{decoder_block.4} parent=11 // pred_region
        _
      $region24: #{decoder_block.4} parent=11 // pred_fallthru
        _
      // Predicated region
      $region25: #{decoder_block.4} parent=11 // pred_check
        %p318 = pneg %p205
      $region26: #{decoder_block.4} parent=11 // pred_check_branch
        %320 = sbr.rel (%p318) target = $region28
      $region27: #{decoder_block.4} parent=11 // pred_region
        _
      $region28: #{decoder_block.4} parent=11 // pred_fallthru
        _
      // Predicated region
      $region29: #{decoder_block.4} parent=11 // pred_check
        %p321 = pneg %p226
      $region30: #{decoder_block.4} parent=11 // pred_check_branch
        %323 = sbr.rel (%p321) target = $region32
      $region31: #{decoder_block.4} parent=11 // pred_region
        _
      $region32: #{decoder_block.4} parent=11 // pred_fallthru
        _
      // Predicated region
      $region33: #{decoder_block.4} parent=11 // pred_check
        %p324 = pneg %p247
      $region34: #{decoder_block.4} parent=11 // pred_check_branch
        %326 = sbr.rel (%p324) target = $region36
      $region35: #{decoder_block.4} parent=11 // pred_region
        _
      $region36: #{decoder_block.4} parent=11 // pred_fallthru
        _
      // Predicated region
      $region37: #{decoder_block.4} parent=11 // pred_check
        %p327 = pneg %p268
      $region38: #{decoder_block.4} parent=11 // pred_check_branch
        %329 = sbr.rel (%p327) target = $region40
      $region39: #{decoder_block.4} parent=11 // pred_region
        _
      $region40: #{decoder_block.4} parent=11 // pred_fallthru
        _
    $region12: #{decoder_block.4} parent=5 // pred_fallthru
      _
    %p330 = scmp.lt.s32.totalorder %s17, 2
    // Predicated region
    $region41: #{decoder_block.4} parent=5 // pred_check
      %p331 = pneg %p330
    $region42: #{decoder_block.4} parent=5 // pred_check_branch
      %333 = sbr.rel (%p331) target = $region44
    $region43: #{decoder_block.4} parent=5 // pred_region
      // Predicated region
      $region45: #{decoder_block.4} parent=43 // pred_check
        %p334 = pneg %p37
      $region46: #{decoder_block.4} parent=43 // pred_check_branch
        %336 = sbr.rel (%p334) target = $region48
      $region47: #{decoder_block.4} parent=43 // pred_region
        %p337 = scmp.lt.s32.totalorder %s17, 1
        %s338 = scalar_select %p337, %s17, 1
        %s339 = smul.addr %s338, 8
        %s340 = scalar_lea.vmem %s0, %s339
      $region48: #{decoder_block.4} parent=43 // pred_fallthru
        _
      // Predicated region
      $region49: #{decoder_block.4} parent=43 // pred_check
        %p341 = pneg %p63
      $region50: #{decoder_block.4} parent=43 // pred_check_branch
        %343 = sbr.rel (%p341) target = $region52
      $region51: #{decoder_block.4} parent=43 // pred_region
        %p344 = scmp.lt.s32.totalorder %s17, 1
        %s345 = scalar_select %p344, %s17, 1
        %s346 = smul.addr %s345, 8
        %s347 = scalar_lea.vmem %s1, %s346
      $region52: #{decoder_block.4} parent=43 // pred_fallthru
        _
      // Predicated region
      $region53: #{decoder_block.4} parent=43 // pred_check
        %p348 = pneg %p89
      $region54: #{decoder_block.4} parent=43 // pred_check_branch
        %350 = sbr.rel (%p348) target = $region56
      $region55: #{decoder_block.4} parent=43 // pred_region
        %p351 = scmp.lt.s32.totalorder %s17, 1
        %s352 = scalar_select %p351, %s17, 1
        %s353 = smul.addr %s352, 8
        %s354 = scalar_lea.vmem %s2, %s353
      $region56: #{decoder_block.4} parent=43 // pred_fallthru
        _
      // Predicated region
      $region57: #{decoder_block.4} parent=43 // pred_check
        %p355 = pneg %p115
      $region58: #{decoder_block.4} parent=43 // pred_check_branch
        %357 = sbr.rel (%p355) target = $region60
      $region59: #{decoder_block.4} parent=43 // pred_region
        %p358 = scmp.lt.s32.totalorder %s17, 1
        %s359 = scalar_select %p358, %s17, 1
        %s360 = scalar_lea.vmem %s3, %s359
      $region60: #{decoder_block.4} parent=43 // pred_fallthru
        _
    $region44: #{decoder_block.4} parent=5 // pred_fallthru
      _
    %p361 = scmp.le.s32.totalorder 1, %s17
    %p362 = scmp.lt.s32.totalorder %s17, 3
    %p363 = pnand %p361, %p362
    %p364 = pneg %p363
    // Predicated region
    $region61: #{decoder_block.4} parent=5 // pred_check
      _
    $region62: #{decoder_block.4} parent=5 // pred_check_branch
      %366 = sbr.rel (%p363) target = $region64
    $region63: #{decoder_block.4} parent=5 // pred_region
      %s367 = ssub.s32 %s17, 1
      %p368 = scmp.lt.s32.totalorder %s22, 1
      %s369 = scalar_select %p368, %s22, 1
      %s370 = smul.addr %s369, 8
      %s371 = scalar_lea.vmem %s0, %s370
      %p372 = pneg %p43
      %p373 = pneg %p40
      %p374 = scmp.lt.s32.totalorder %s22, 1
      %s375 = scalar_select %p374, %s22, 1
      %s376 = smul.addr %s375, 8
      %s377 = scalar_lea.vmem %s1, %s376
      %p378 = pneg %p69
      %p379 = pneg %p66
      %p380 = scmp.lt.s32.totalorder %s22, 1
      %s381 = scalar_select %p380, %s22, 1
      %s382 = smul.addr %s381, 8
      %s383 = scalar_lea.vmem %s2, %s382
      %p384 = pneg %p95
      %p385 = pneg %p92
      %p386 = scmp.lt.s32.totalorder %s22, 1
      %s387 = scalar_select %p386, %s22, 1
      %s388 = scalar_lea.vmem %s3, %s387
      %p389 = pneg %p121
      %p390 = pneg %p118
      %p391 = pneg %p142
      %p392 = pneg %p139
      %p393 = pneg %p163
      %p394 = pneg %p160
      %p395 = pneg %p184
      %p396 = pneg %p181
      %p397 = pneg %p205
      %p398 = pneg %p202
      %p399 = pneg %p226
      %p400 = pneg %p223
      %p401 = pneg %p247
      %p402 = pneg %p244
      %p403 = pneg %p268
      %p404 = pneg %p265
      %p405 = pneg %p294
      %p406 = pneg %p291
      %p407 = scmp.lt.s32.totalorder %s22, 1
      %s408 = scalar_select %p407, %s22, 1
      %s409 = smul.addr %s408, 8
      %s410 = scalar_lea.vmem %s11, %s409
      %p411 = scmp.lt.s32.totalorder %s22, 1
      %s412 = scalar_select %p411, %s22, 1
      %s413 = smul.addr %s412, 8
      %s414 = scalar_lea.vmem %s0, %s413
      %p415 = scmp.lt.s32.totalorder %s22, 1
      %s416 = scalar_select %p415, %s22, 1
      %s417 = smul.addr %s416, 8
      %s418 = scalar_lea.vmem %s1, %s417
      %p419 = scmp.lt.s32.totalorder %s22, 1
      %s420 = scalar_select %p419, %s22, 1
      %s421 = smul.addr %s420, 8
      %s422 = scalar_lea.vmem %s2, %s421
      %p423 = scmp.lt.s32.totalorder %s22, 1
      %s424 = scalar_select %p423, %s22, 1
      %s425 = scalar_lea.vmem %s3, %s424
      %p426 = scmp.lt.s32.totalorder %s22, 1
      %s427 = scalar_select %p426, %s22, 1
      %s428 = smul.addr %s427, 8
      %s429 = scalar_lea.vmem %s11, %s428
      %v431 = vld [vmem:[%s422] sm:$0xff]
      %v432 = vld [vmem:[%s418] sm:$0xff]
      %v433 = vld [vmem:[%s414] sm:$0xff]
      %v434 = vld [vmem:[%s425] sm:$0x1]
      %v435 = vpack.c.bf16 %v431, %v431
      %v436 = vld [vmem:[%s6] sm:$0xf]
      %v437 = vld [vmem:[%s6 + $0x4] sm:$0xf]
      %v438 = vld [vmem:[%s6 + $0x8] sm:$0xf]
      %v439 = vld [vmem:[%s6 + $0xc] sm:$0xf]
      %v444 = vunpack.c.l.b16 %v436
      %v445 = vunpack.c.l.b16 %v437
      %v446 = vunpack.c.l.b16 %v438
      %v447 = vunpack.c.l.b16 %v439
      %v448 = vpack.c.b16 %v445, %v444
      %v449 = vpack.c.b16 %v447, %v446
      %vm452 = vcmask 261120
      %v454 = vsel %vm452, %v435, 0
      %456 = vmatprep.subr.bf16.mxu0 0
      %457 = vmatpush1.bf16.msra.mxu0 %v448
      %458 = vmatprep.subr.bf16.mxu0 0
      %459 = vmatpush1.bf16.msra.mxu0 %v449
      %460 = vmatprep.subr.bf16.mxu0 0
      %461 = vmatpush1.bf16.msra.mxu0 0
      %462 = vmatprep.subr.bf16.mxu0 0
      %463 = vmatpush1.bf16.msra.mxu0 0
      %464 = vmatprep.subr.bf16.mxu0 0
      %465 = vmatpush1.bf16.msra.mxu0 0
      %466 = vmatprep.subr.bf16.mxu0 0
      %467 = vmatpush1.bf16.msra.mxu0 0
      %468 = vmatprep.subr.bf16.mxu0 0
      %469 = vmatpush1.bf16.msra.mxu0 0
      %470 = vmatprep.subr.bf16.mxu0 0
      %471 = vmatpush1.bf16.msra.mxu0 0
      %472 = vmatprep.subr.bf16.mxu0 0
      %473 = vmatpush1.bf16.msra.mxu0 0
      %474 = vmatprep.subr.bf16.mxu0 0
      %475 = vmatpush1.bf16.msra.mxu0 0
      %476 = vmatprep.subr.bf16.mxu0 0
      %477 = vmatpush1.bf16.msra.mxu0 0
      %478 = vmatprep.subr.bf16.mxu0 0
      %479 = vmatpush1.bf16.msra.mxu0 0
      %480 = vmatprep.subr.bf16.mxu0 0
      %481 = vmatpush1.bf16.msra.mxu0 0
      %482 = vmatprep.subr.bf16.mxu0 0
      %483 = vmatpush1.bf16.msra.mxu0 0
      %484 = vmatprep.subr.bf16.mxu0 0
      %485 = vmatpush1.bf16.msra.mxu0 0
      %486 = vmatprep.subr.bf16.mxu0 0
      %487 = vmatpush1.bf16.msra.mxu0 0
      %488 = vmatprep.mubr.bf16.mxu0 0
      %489 = vmatmul.mubr.bf16.gmra.mrb[0].mxu0 %v454
      %v490 = vpop.f32.mrb[0].mxu0
      %v491 = vadd.f32 0.0, %v490
      %v492 = vpop.f32.mrb[0].mxu0
      %v493 = vpop.f32.mrb[0].mxu0
      %v494 = vpop.f32.mrb[0].mxu0
      %495 = vdwg.mxu0
      %v496 = vpack.c.bf16 %v432, %v432
      %v497 = vld [vmem:[%s5] sm:$0xf]
      %v498 = vld [vmem:[%s5 + $0x4] sm:$0xf]
      %v499 = vld [vmem:[%s5 + $0x8] sm:$0xf]
      %v500 = vld [vmem:[%s5 + $0xc] sm:$0xf]
      %v505 = vunpack.c.l.b16 %v497
      %v506 = vunpack.c.l.b16 %v498
      %v507 = vunpack.c.l.b16 %v499
      %v508 = vunpack.c.l.b16 %v500
      %v509 = vpack.c.b16 %v506, %v505
      %v510 = vpack.c.b16 %v508, %v507
      %v514 = vsel %vm452, %v496, 0
      %516 = vmatprep.subr.bf16.mxu0 0
      %517 = vmatpush1.bf16.msra.mxu0 %v509
      %518 = vmatprep.subr.bf16.mxu0 0
      %519 = vmatpush1.bf16.msra.mxu0 %v510
      %520 = vmatprep.subr.bf16.mxu0 0
      %521 = vmatpush1.bf16.msra.mxu0 0
      %522 = vmatprep.subr.bf16.mxu0 0
      %523 = vmatpush1.bf16.msra.mxu0 0
      %524 = vmatprep.subr.bf16.mxu0 0
      %525 = vmatpush1.bf16.msra.mxu0 0
      %526 = vmatprep.subr.bf16.mxu0 0
      %527 = vmatpush1.bf16.msra.mxu0 0
      %528 = vmatprep.subr.bf16.mxu0 0
      %529 = vmatpush1.bf16.msra.mxu0 0
      %530 = vmatprep.subr.bf16.mxu0 0
      %531 = vmatpush1.bf16.msra.mxu0 0
      %532 = vmatprep.subr.bf16.mxu0 0
      %533 = vmatpush1.bf16.msra.mxu0 0
      %534 = vmatprep.subr.bf16.mxu0 0
      %535 = vmatpush1.bf16.msra.mxu0 0
      %536 = vmatprep.subr.bf16.mxu0 0
      %537 = vmatpush1.bf16.msra.mxu0 0
      %538 = vmatprep.subr.bf16.mxu0 0
      %539 = vmatpush1.bf16.msra.mxu0 0
      %540 = vmatprep.subr.bf16.mxu0 0
      %541 = vmatpush1.bf16.msra.mxu0 0
      %542 = vmatprep.subr.bf16.mxu0 0
      %543 = vmatpush1.bf16.msra.mxu0 0
      %544 = vmatprep.subr.bf16.mxu0 0
      %545 = vmatpush1.bf16.msra.mxu0 0
      %546 = vmatprep.subr.bf16.mxu0 0
      %547 = vmatpush1.bf16.msra.mxu0 0
      %548 = vmatprep.mubr.bf16.mxu0 0
      %549 = vmatmul.mubr.bf16.gmra.mrb[0].mxu0 %v514
      %v550 = vpop.f32.mrb[0].mxu0
      %v551 = vadd.f32 0.0, %v550
      %v552 = vpop.f32.mrb[0].mxu0
      %v553 = vpop.f32.mrb[0].mxu0
      %v554 = vpop.f32.mrb[0].mxu0
      %555 = vdwg.mxu0
      %v556 = vpack.c.bf16 %v433, %v433
      %v557 = vld [vmem:[%s4] sm:$0xf]
      %v558 = vld [vmem:[%s4 + $0x4] sm:$0xf]
      %v559 = vld [vmem:[%s4 + $0x8] sm:$0xf]
      %v560 = vld [vmem:[%s4 + $0xc] sm:$0xf]
      %v565 = vunpack.c.l.b16 %v557
      %v566 = vunpack.c.l.b16 %v558
      %v567 = vunpack.c.l.b16 %v559
      %v568 = vunpack.c.l.b16 %v560
      %v569 = vpack.c.b16 %v566, %v565
      %v570 = vpack.c.b16 %v568, %v567
      %v574 = vsel %vm452, %v556, 0
      %576 = vmatprep.subr.bf16.mxu0 0
      %577 = vmatpush1.bf16.msra.mxu0 %v569
      %578 = vmatprep.subr.bf16.mxu0 0
      %579 = vmatpush1.bf16.msra.mxu0 %v570
      %580 = vmatprep.subr.bf16.mxu0 0
      %581 = vmatpush1.bf16.msra.mxu0 0
      %582 = vmatprep.subr.bf16.mxu0 0
      %583 = vmatpush1.bf16.msra.mxu0 0
      %584 = vmatprep.subr.bf16.mxu0 0
      %585 = vmatpush1.bf16.msra.mxu0 0
      %586 = vmatprep.subr.bf16.mxu0 0
      %587 = vmatpush1.bf16.msra.mxu0 0
      %588 = vmatprep.subr.bf16.mxu0 0
      %589 = vmatpush1.bf16.msra.mxu0 0
      %590 = vmatprep.subr.bf16.mxu0 0
      %591 = vmatpush1.bf16.msra.mxu0 0
      %592 = vmatprep.subr.bf16.mxu0 0
      %593 = vmatpush1.bf16.msra.mxu0 0
      %594 = vmatprep.subr.bf16.mxu0 0
      %595 = vmatpush1.bf16.msra.mxu0 0
      %596 = vmatprep.subr.bf16.mxu0 0
      %597 = vmatpush1.bf16.msra.mxu0 0
      %598 = vmatprep.subr.bf16.mxu0 0
      %599 = vmatpush1.bf16.msra.mxu0 0
      %600 = vmatprep.subr.bf16.mxu0 0
      %601 = vmatpush1.bf16.msra.mxu0 0
      %602 = vmatprep.subr.bf16.mxu0 0
      %603 = vmatpush1.bf16.msra.mxu0 0
      %604 = vmatprep.subr.bf16.mxu0 0
      %605 = vmatpush1.bf16.msra.mxu0 0
      %606 = vmatprep.subr.bf16.mxu0 0
      %607 = vmatpush1.bf16.msra.mxu0 0
      %608 = vmatprep.mubr.bf16.mxu0 0
      %609 = vmatmul.mubr.bf16.gmra.mrb[0].mxu0 %v574
      %v610 = vpop.f32.mrb[0].mxu0
      %v611 = vadd.f32 0.0, %v610
      %v612 = vpop.f32.mrb[0].mxu0
      %v613 = vpop.f32.mrb[0].mxu0
      %v614 = vpop.f32.mrb[0].mxu0
      %615 = vdwg.mxu0
      %v616 = vmul.f32 %v491, 0.17677669
      %618 = vrot.lane.b32.xlu0 %v616, 120
      %v619 = vpop.permute.xlu0 %618
      %621 = vrot.lane.b32.xlu0 %v616, 112
      %v622 = vpop.permute.xlu0 %621
      %624 = vrot.lane.b32.xlu0 %v616, 104
      %v625 = vpop.permute.xlu0 %624
      %v627 = vpack.c.bf16 %v616, %v616
      %v628 = vpack.c.bf16 %v619, %v619
      %v629 = vpack.c.bf16 %v622, %v622
      %v630 = vpack.c.bf16 %v625, %v625
      %632 = vrot.lane.b32.xlu0 %v551, 120
      %v633 = vpop.permute.xlu0 %632
      %635 = vrot.lane.b32.xlu0 %v551, 112
      %v636 = vpop.permute.xlu0 %635
      %638 = vrot.lane.b32.xlu0 %v551, 104
      %v639 = vpop.permute.xlu0 %638
      %v641 = vpack.c.bf16 %v551, %v551
      %v642 = vpack.c.bf16 %v633, %v633
      %v643 = vpack.c.bf16 %v636, %v636
      %v644 = vpack.c.bf16 %v639, %v639
      %646 = vrot.lane.b32.xlu0 %v611, 120
      %v647 = vpop.permute.xlu0 %646
      %649 = vrot.lane.b32.xlu0 %v611, 112
      %v650 = vpop.permute.xlu0 %649
      %652 = vrot.lane.b32.xlu0 %v611, 104
      %v653 = vpop.permute.xlu0 %652
      %v655 = vpack.c.bf16 %v611, %v611
      %v656 = vpack.c.bf16 %v647, %v647
      %v657 = vpack.c.bf16 %v650, %v650
      %v658 = vpack.c.bf16 %v653, %v653
      %vm659 = vcmask 64512
      %v661 = vsel %vm659, %v627, 0
      %v664 = vsel %vm659, %v641, 0
      %666 = vmatprep.subr.bf16.mxu0 0
      %667 = vmatpush1.bf16.xpose.msra.mxu0 %v664
      %668 = vmatprep.subr.bf16.mxu0 0
      %669 = vmatpush1.bf16.xpose.msra.mxu0 0
      %670 = vmatprep.subr.bf16.mxu0 0
      %671 = vmatpush1.bf16.xpose.msra.mxu0 0
      %672 = vmatprep.subr.bf16.mxu0 0
      %673 = vmatpush1.bf16.xpose.msra.mxu0 0
      %674 = vmatprep.subr.bf16.mxu0 0
      %675 = vmatpush1.bf16.xpose.msra.mxu0 0
      %676 = vmatprep.subr.bf16.mxu0 0
      %677 = vmatpush1.bf16.xpose.msra.mxu0 0
      %678 = vmatprep.subr.bf16.mxu0 0
      %679 = vmatpush1.bf16.xpose.msra.mxu0 0
      %680 = vmatprep.subr.bf16.mxu0 0
      %681 = vmatpush1.bf16.xpose.msra.mxu0 0
      %682 = vmatprep.subr.bf16.mxu0 0
      %683 = vmatpush1.bf16.xpose.msra.mxu0 0
      %684 = vmatprep.subr.bf16.mxu0 0
      %685 = vmatpush1.bf16.xpose.msra.mxu0 0
      %686 = vmatprep.subr.bf16.mxu0 0
      %687 = vmatpush1.bf16.xpose.msra.mxu0 0
      %688 = vmatprep.subr.bf16.mxu0 0
      %689 = vmatpush1.bf16.xpose.msra.mxu0 0
      %690 = vmatprep.subr.bf16.mxu0 0
      %691 = vmatpush1.bf16.xpose.msra.mxu0 0
      %692 = vmatprep.subr.bf16.mxu0 0
      %693 = vmatpush1.bf16.xpose.msra.mxu0 0
      %694 = vmatprep.subr.bf16.mxu0 0
      %695 = vmatpush1.bf16.xpose.msra.mxu0 0
      %696 = vmatprep.subr.bf16.mxu0 0
      %697 = vmatpush1.bf16.xpose.msra.mxu0 0
      %698 = vmatprep.mubr.bf16.mxu0 0
      %699 = vmatmul.mubr.bf16.gmra.mrb[0].mxu0 %v661
      %v700 = vpop.f32.mrb[0].mxu0
      %v701 = vadd.f32 0.0, %v700
      %v702 = vpop.f32.mrb[0].mxu0
      %v703 = vpop.f32.mrb[0].mxu0
      %v704 = vpop.f32.mrb[0].mxu0
      %705 = vdwg.mxu0
      %v707 = vsel %vm659, %v628, 0
      %v710 = vsel %vm659, %v642, 0
      %712 = vmatprep.subr.bf16.mxu0 0
      %713 = vmatpush1.bf16.xpose.msra.mxu0 %v710
      %714 = vmatprep.subr.bf16.mxu0 0
      %715 = vmatpush1.bf16.xpose.msra.mxu0 0
      %716 = vmatprep.subr.bf16.mxu0 0
      %717 = vmatpush1.bf16.xpose.msra.mxu0 0
      %718 = vmatprep.subr.bf16.mxu0 0
      %719 = vmatpush1.bf16.xpose.msra.mxu0 0
      %720 = vmatprep.subr.bf16.mxu0 0
      %721 = vmatpush1.bf16.xpose.msra.mxu0 0
      %722 = vmatprep.subr.bf16.mxu0 0
      %723 = vmatpush1.bf16.xpose.msra.mxu0 0
      %724 = vmatprep.subr.bf16.mxu0 0
      %725 = vmatpush1.bf16.xpose.msra.mxu0 0
      %726 = vmatprep.subr.bf16.mxu0 0
      %727 = vmatpush1.bf16.xpose.msra.mxu0 0
      %728 = vmatprep.subr.bf16.mxu0 0
      %729 = vmatpush1.bf16.xpose.msra.mxu0 0
      %730 = vmatprep.subr.bf16.mxu0 0
      %731 = vmatpush1.bf16.xpose.msra.mxu0 0
      %732 = vmatprep.subr.bf16.mxu0 0
      %733 = vmatpush1.bf16.xpose.msra.mxu0 0
      %734 = vmatprep.subr.bf16.mxu0 0
      %735 = vmatpush1.bf16.xpose.msra.mxu0 0
      %736 = vmatprep.subr.bf16.mxu0 0
      %737 = vmatpush1.bf16.xpose.msra.mxu0 0
      %738 = vmatprep.subr.bf16.mxu0 0
      %739 = vmatpush1.bf16.xpose.msra.mxu0 0
      %740 = vmatprep.subr.bf16.mxu0 0
      %741 = vmatpush1.bf16.xpose.msra.mxu0 0
      %742 = vmatprep.subr.bf16.mxu0 0
      %743 = vmatpush1.bf16.xpose.msra.mxu0 0
      %744 = vmatprep.mubr.bf16.mxu0 0
      %745 = vmatmul.mubr.bf16.gmra.mrb[0].mxu0 %v707
      %v746 = vpop.f32.mrb[0].mxu0
      %v747 = vadd.f32 0.0, %v746
      %v748 = vpop.f32.mrb[0].mxu0
      %v749 = vpop.f32.mrb[0].mxu0
      %v750 = vpop.f32.mrb[0].mxu0
      %751 = vdwg.mxu0
      %v753 = vsel %vm659, %v629, 0
      %v756 = vsel %vm659, %v643, 0
      %758 = vmatprep.subr.bf16.mxu0 0
      %759 = vmatpush1.bf16.xpose.msra.mxu0 %v756
      %760 = vmatprep.subr.bf16.mxu0 0
      %761 = vmatpush1.bf16.xpose.msra.mxu0 0
      %762 = vmatprep.subr.bf16.mxu0 0
      %763 = vmatpush1.bf16.xpose.msra.mxu0 0
      %764 = vmatprep.subr.bf16.mxu0 0
      %765 = vmatpush1.bf16.xpose.msra.mxu0 0
      %766 = vmatprep.subr.bf16.mxu0 0
      %767 = vmatpush1.bf16.xpose.msra.mxu0 0
      %768 = vmatprep.subr.bf16.mxu0 0
      %769 = vmatpush1.bf16.xpose.msra.mxu0 0
      %770 = vmatprep.subr.bf16.mxu0 0
      %771 = vmatpush1.bf16.xpose.msra.mxu0 0
      %772 = vmatprep.subr.bf16.mxu0 0
      %773 = vmatpush1.bf16.xpose.msra.mxu0 0
      %774 = vmatprep.subr.bf16.mxu0 0
      %775 = vmatpush1.bf16.xpose.msra.mxu0 0
      %776 = vmatprep.subr.bf16.mxu0 0
      %777 = vmatpush1.bf16.xpose.msra.mxu0 0
      %778 = vmatprep.subr.bf16.mxu0 0
      %779 = vmatpush1.bf16.xpose.msra.mxu0 0
      %780 = vmatprep.subr.bf16.mxu0 0
      %781 = vmatpush1.bf16.xpose.msra.mxu0 0
      %782 = vmatprep.subr.bf16.mxu0 0
      %783 = vmatpush1.bf16.xpose.msra.mxu0 0
      %784 = vmatprep.subr.bf16.mxu0 0
      %785 = vmatpush1.bf16.xpose.msra.mxu0 0
      %786 = vmatprep.subr.bf16.mxu0 0
      %787 = vmatpush1.bf16.xpose.msra.mxu0 0
      %788 = vmatprep.subr.bf16.mxu0 0
      %789 = vmatpush1.bf16.xpose.msra.mxu0 0
      %790 = vmatprep.mubr.bf16.mxu0 0
      %791 = vmatmul.mubr.bf16.gmra.mrb[0].mxu0 %v753
      %v792 = vpop.f32.mrb[0].mxu0
      %v793 = vadd.f32 0.0, %v792
      %v794 = vpop.f32.mrb[0].mxu0
      %v795 = vpop.f32.mrb[0].mxu0
      %v796 = vpop.f32.mrb[0].mxu0
      %797 = vdwg.mxu0
      %v799 = vsel %vm659, %v630, 0
      %v802 = vsel %vm659, %v644, 0
      %804 = vmatprep.subr.bf16.mxu0 0
      %805 = vmatpush1.bf16.xpose.msra.mxu0 %v802
      %806 = vmatprep.subr.bf16.mxu0 0
      %807 = vmatpush1.bf16.xpose.msra.mxu0 0
      %808 = vmatprep.subr.bf16.mxu0 0
      %809 = vmatpush1.bf16.xpose.msra.mxu0 0
      %810 = vmatprep.subr.bf16.mxu0 0
      %811 = vmatpush1.bf16.xpose.msra.mxu0 0
      %812 = vmatprep.subr.bf16.mxu0 0
      %813 = vmatpush1.bf16.xpose.msra.mxu0 0
      %814 = vmatprep.subr.bf16.mxu0 0
      %815 = vmatpush1.bf16.xpose.msra.mxu0 0
      %816 = vmatprep.subr.bf16.mxu0 0
      %817 = vmatpush1.bf16.xpose.msra.mxu0 0
      %818 = vmatprep.subr.bf16.mxu0 0
      %819 = vmatpush1.bf16.xpose.msra.mxu0 0
      %820 = vmatprep.subr.bf16.mxu0 0
      %821 = vmatpush1.bf16.xpose.msra.mxu0 0
      %822 = vmatprep.subr.bf16.mxu0 0
      %823 = vmatpush1.bf16.xpose.msra.mxu0 0
      %824 = vmatprep.subr.bf16.mxu0 0
      %825 = vmatpush1.bf16.xpose.msra.mxu0 0
      %826 = vmatprep.subr.bf16.mxu0 0
      %827 = vmatpush1.bf16.xpose.msra.mxu0 0
      %828 = vmatprep.subr.bf16.mxu0 0
      %829 = vmatpush1.bf16.xpose.msra.mxu0 0
      %830 = vmatprep.subr.bf16.mxu0 0
      %831 = vmatpush1.bf16.xpose.msra.mxu0 0
      %832 = vmatprep.subr.bf16.mxu0 0
      %833 = vmatpush1.bf16.xpose.msra.mxu0 0
      %834 = vmatprep.subr.bf16.mxu0 0
      %835 = vmatpush1.bf16.xpose.msra.mxu0 0
      %836 = vmatprep.mubr.bf16.mxu0 0
      %837 = vmatmul.mubr.bf16.gmra.mrb[0].mxu0 %v799
      %v838 = vpop.f32.mrb[0].mxu0
      %v839 = vadd.f32 0.0, %v838
      %v840 = vpop.f32.mrb[0].mxu0
      %v841 = vpop.f32.mrb[0].mxu0
      %v842 = vpop.f32.mrb[0].mxu0
      %843 = vdwg.mxu0
      %vm844 = vcmp.eq.f32.partialorder %v434, 0.0
      %v845 = vsel %vm844, 1, 0
      %v846 = vlaneseq
      %v847 = vshrl.u32 %v846, 7
      %v848 = vsub.s32 0, %v847
      %v849 = vrot.slane %v845, %v848
      %vm850 = vcmp.eq.s32.totalorder %v849, 1
      %v851 = vsel %vm850, -1.767767e+19, %v701
      %v852 = vsel %vm850, -1.767767e+19, %v747
      %v853 = vsel %vm850, -1.767767e+19, %v793
      %v854 = vsel %vm850, -1.767767e+19, %v839
      %v855 = vsel %vm659, %v851, -inf
      %856 = vmax.xlane.f32.xlu0 %v855
      %v857 = vpop.xlane.xlu0 %856
      %v858 = vsel %vm659, %v852, -inf
      %859 = vmax.xlane.f32.xlu0 %v858
      %v860 = vpop.xlane.xlu0 %859
      %v861 = vsel %vm659, %v853, -inf
      %862 = vmax.xlane.f32.xlu0 %v861
      %v863 = vpop.xlane.xlu0 %862
      %v864 = vsel %vm659, %v854, -inf
      %865 = vmax.xlane.f32.xlu0 %v864
      %v866 = vpop.xlane.xlu0 %865
      %v867 = vsub.f32 %v851, %v857
      %v868 = vsub.f32 %v852, %v860
      %v869 = vsub.f32 %v853, %v863
      %v870 = vsub.f32 %v854, %v866
      %v871 = vmul.f32 %v867, 1.442695
      %v872 = vpow.pop %v871
      %v873 = vmul.f32 %v868, 1.442695
      %v874 = vpow.pop %v873
      %v875 = vmul.f32 %v869, 1.442695
      %v876 = vpow.pop %v875
      %v877 = vmul.f32 %v870, 1.442695
      %v878 = vpow.pop %v877
      %v879 = vsel %vm659, %v872, 0.0
      %880 = vadd.xlane.f32.xlu0 %v879
      %v881 = vpop.xlane.xlu0 %880
      %v882 = vsel %vm659, %v874, 0.0
      %883 = vadd.xlane.f32.xlu0 %v882
      %v884 = vpop.xlane.xlu0 %883
      %v885 = vsel %vm659, %v876, 0.0
      %886 = vadd.xlane.f32.xlu0 %v885
      %v887 = vpop.xlane.xlu0 %886
      %v888 = vsel %vm659, %v878, 0.0
      %889 = vadd.xlane.f32.xlu0 %v888
      %v890 = vpop.xlane.xlu0 %889
      %v891 = vrcp.pop %v881
      %v892 = vrcp.pop %v884
      %v893 = vrcp.pop %v887
      %v894 = vrcp.pop %v890
      %v895 = vmul.f32 %v872, %v891
      %v896 = vmul.f32 %v874, %v892
      %v897 = vmul.f32 %v876, %v893
      %v898 = vmul.f32 %v878, %v894
      %v899 = vpack.c.bf16 %v895, %v895
      %v900 = vpack.c.bf16 %v896, %v896
      %v901 = vpack.c.bf16 %v897, %v897
      %v902 = vpack.c.bf16 %v898, %v898
      %v904 = vsel %vm659, %v899, 0
      %vm906 = vcmask 1043456
      %v908 = vsel %vm906, %v655, 0
      %910 = vmatprep.subr.bf16.mxu0 0
      %911 = vmatpush1.bf16.msra.mxu0 %v908
      %912 = vmatprep.subr.bf16.mxu0 0
      %913 = vmatpush1.bf16.msra.mxu0 0
      %914 = vmatprep.subr.bf16.mxu0 0
      %915 = vmatpush1.bf16.msra.mxu0 0
      %916 = vmatprep.subr.bf16.mxu0 0
      %917 = vmatpush1.bf16.msra.mxu0 0
      %918 = vmatprep.subr.bf16.mxu0 0
      %919 = vmatpush1.bf16.msra.mxu0 0
      %920 = vmatprep.subr.bf16.mxu0 0
      %921 = vmatpush1.bf16.msra.mxu0 0
      %922 = vmatprep.subr.bf16.mxu0 0
      %923 = vmatpush1.bf16.msra.mxu0 0
      %924 = vmatprep.subr.bf16.mxu0 0
      %925 = vmatpush1.bf16.msra.mxu0 0
      %926 = vmatprep.subr.bf16.mxu0 0
      %927 = vmatpush1.bf16.msra.mxu0 0
      %928 = vmatprep.subr.bf16.mxu0 0
      %929 = vmatpush1.bf16.msra.mxu0 0
      %930 = vmatprep.subr.bf16.mxu0 0
      %931 = vmatpush1.bf16.msra.mxu0 0
      %932 = vmatprep.subr.bf16.mxu0 0
      %933 = vmatpush1.bf16.msra.mxu0 0
      %934 = vmatprep.subr.bf16.mxu0 0
      %935 = vmatpush1.bf16.msra.mxu0 0
      %936 = vmatprep.subr.bf16.mxu0 0
      %937 = vmatpush1.bf16.msra.mxu0 0
      %938 = vmatprep.subr.bf16.mxu0 0
      %939 = vmatpush1.bf16.msra.mxu0 0
      %940 = vmatprep.subr.bf16.mxu0 0
      %941 = vmatpush1.bf16.msra.mxu0 0
      %942 = vmatprep.mubr.bf16.mxu0 0
      %943 = vmatmul.mubr.bf16.gmra.mrb[0].mxu0 %v904
      %v944 = vpop.f32.mrb[0].mxu0
      %v945 = vadd.f32 0.0, %v944
      %v946 = vpop.f32.mrb[0].mxu0
      %v947 = vpop.f32.mrb[0].mxu0
      %v948 = vpop.f32.mrb[0].mxu0
      %949 = vdwg.mxu0
      %v951 = vsel %vm659, %v900, 0
      %v954 = vsel %vm906, %v656, 0
      %956 = vmatprep.subr.bf16.mxu0 0
      %957 = vmatpush1.bf16.msra.mxu0 %v954
      %958 = vmatprep.subr.bf16.mxu0 0
      %959 = vmatpush1.bf16.msra.mxu0 0
      %960 = vmatprep.subr.bf16.mxu0 0
      %961 = vmatpush1.bf16.msra.mxu0 0
      %962 = vmatprep.subr.bf16.mxu0 0
      %963 = vmatpush1.bf16.msra.mxu0 0
      %964 = vmatprep.subr.bf16.mxu0 0
      %965 = vmatpush1.bf16.msra.mxu0 0
      %966 = vmatprep.subr.bf16.mxu0 0
      %967 = vmatpush1.bf16.msra.mxu0 0
      %968 = vmatprep.subr.bf16.mxu0 0
      %969 = vmatpush1.bf16.msra.mxu0 0
      %970 = vmatprep.subr.bf16.mxu0 0
      %971 = vmatpush1.bf16.msra.mxu0 0
      %972 = vmatprep.subr.bf16.mxu0 0
      %973 = vmatpush1.bf16.msra.mxu0 0
      %974 = vmatprep.subr.bf16.mxu0 0
      %975 = vmatpush1.bf16.msra.mxu0 0
      %976 = vmatprep.subr.bf16.mxu0 0
      %977 = vmatpush1.bf16.msra.mxu0 0
      %978 = vmatprep.subr.bf16.mxu0 0
      %979 = vmatpush1.bf16.msra.mxu0 0
      %980 = vmatprep.subr.bf16.mxu0 0
      %981 = vmatpush1.bf16.msra.mxu0 0
      %982 = vmatprep.subr.bf16.mxu0 0
      %983 = vmatpush1.bf16.msra.mxu0 0
      %984 = vmatprep.subr.bf16.mxu0 0
      %985 = vmatpush1.bf16.msra.mxu0 0
      %986 = vmatprep.subr.bf16.mxu0 0
      %987 = vmatpush1.bf16.msra.mxu0 0
      %988 = vmatprep.mubr.bf16.mxu0 0
      %989 = vmatmul.mubr.bf16.gmra.mrb[0].mxu0 %v951
      %v990 = vpop.f32.mrb[0].mxu0
      %v991 = vadd.f32 0.0, %v990
      %v992 = vpop.f32.mrb[0].mxu0
      %v993 = vpop.f32.mrb[0].mxu0
      %v994 = vpop.f32.mrb[0].mxu0
      %995 = vdwg.mxu0
      %v997 = vsel %vm659, %v901, 0
      %v1000 = vsel %vm906, %v657, 0
      %1002 = vmatprep.subr.bf16.mxu0 0
      %1003 = vmatpush1.bf16.msra.mxu0 %v1000
      %1004 = vmatprep.subr.bf16.mxu0 0
      %1005 = vmatpush1.bf16.msra.mxu0 0
      %1006 = vmatprep.subr.bf16.mxu0 0
      %1007 = vmatpush1.bf16.msra.mxu0 0
      %1008 = vmatprep.subr.bf16.mxu0 0
      %1009 = vmatpush1.bf16.msra.mxu0 0
      %1010 = vmatprep.subr.bf16.mxu0 0
      %1011 = vmatpush1.bf16.msra.mxu0 0
      %1012 = vmatprep.subr.bf16.mxu0 0
      %1013 = vmatpush1.bf16.msra.mxu0 0
      %1014 = vmatprep.subr.bf16.mxu0 0
      %1015 = vmatpush1.bf16.msra.mxu0 0
      %1016 = vmatprep.subr.bf16.mxu0 0
      %1017 = vmatpush1.bf16.msra.mxu0 0
      %1018 = vmatprep.subr.bf16.mxu0 0
      %1019 = vmatpush1.bf16.msra.mxu0 0
      %1020 = vmatprep.subr.bf16.mxu0 0
      %1021 = vmatpush1.bf16.msra.mxu0 0
      %1022 = vmatprep.subr.bf16.mxu0 0
      %1023 = vmatpush1.bf16.msra.mxu0 0
      %1024 = vmatprep.subr.bf16.mxu0 0
      %1025 = vmatpush1.bf16.msra.mxu0 0
      %1026 = vmatprep.subr.bf16.mxu0 0
      %1027 = vmatpush1.bf16.msra.mxu0 0
      %1028 = vmatprep.subr.bf16.mxu0 0
      %1029 = vmatpush1.bf16.msra.mxu0 0
      %1030 = vmatprep.subr.bf16.mxu0 0
      %1031 = vmatpush1.bf16.msra.mxu0 0
      %1032 = vmatprep.subr.bf16.mxu0 0
      %1033 = vmatpush1.bf16.msra.mxu0 0
      %1034 = vmatprep.mubr.bf16.mxu0 0
      %1035 = vmatmul.mubr.bf16.gmra.mrb[0].mxu0 %v997
      %v1036 = vpop.f32.mrb[0].mxu0
      %v1037 = vadd.f32 0.0, %v1036
      %v1038 = vpop.f32.mrb[0].mxu0
      %v1039 = vpop.f32.mrb[0].mxu0
      %v1040 = vpop.f32.mrb[0].mxu0
      %1041 = vdwg.mxu0
      %v1043 = vsel %vm659, %v902, 0
      %v1046 = vsel %vm906, %v658, 0
      %1048 = vmatprep.subr.bf16.mxu0 0
      %1049 = vmatpush1.bf16.msra.mxu0 %v1046
      %1050 = vmatprep.subr.bf16.mxu0 0
      %1051 = vmatpush1.bf16.msra.mxu0 0
      %1052 = vmatprep.subr.bf16.mxu0 0
      %1053 = vmatpush1.bf16.msra.mxu0 0
      %1054 = vmatprep.subr.bf16.mxu0 0
      %1055 = vmatpush1.bf16.msra.mxu0 0
      %1056 = vmatprep.subr.bf16.mxu0 0
      %1057 = vmatpush1.bf16.msra.mxu0 0
      %1058 = vmatprep.subr.bf16.mxu0 0
      %1059 = vmatpush1.bf16.msra.mxu0 0
      %1060 = vmatprep.subr.bf16.mxu0 0
      %1061 = vmatpush1.bf16.msra.mxu0 0
      %1062 = vmatprep.subr.bf16.mxu0 0
      %1063 = vmatpush1.bf16.msra.mxu0 0
      %1064 = vmatprep.subr.bf16.mxu0 0
      %1065 = vmatpush1.bf16.msra.mxu0 0
      %1066 = vmatprep.subr.bf16.mxu0 0
      %1067 = vmatpush1.bf16.msra.mxu0 0
      %1068 = vmatprep.subr.bf16.mxu0 0
      %1069 = vmatpush1.bf16.msra.mxu0 0
      %1070 = vmatprep.subr.bf16.mxu0 0
      %1071 = vmatpush1.bf16.msra.mxu0 0
      %1072 = vmatprep.subr.bf16.mxu0 0
      %1073 = vmatpush1.bf16.msra.mxu0 0
      %1074 = vmatprep.subr.bf16.mxu0 0
      %1075 = vmatpush1.bf16.msra.mxu0 0
      %1076 = vmatprep.subr.bf16.mxu0 0
      %1077 = vmatpush1.bf16.msra.mxu0 0
      %1078 = vmatprep.subr.bf16.mxu0 0
      %1079 = vmatpush1.bf16.msra.mxu0 0
      %1080 = vmatprep.mubr.bf16.mxu0 0
      %1081 = vmatmul.mubr.bf16.gmra.mrb[0].mxu0 %v1043
      %v1082 = vpop.f32.mrb[0].mxu0
      %v1083 = vadd.f32 0.0, %v1082
      %v1084 = vpop.f32.mrb[0].mxu0
      %v1085 = vpop.f32.mrb[0].mxu0
      %v1086 = vpop.f32.mrb[0].mxu0
      %1087 = vdwg.mxu0
      %v1088 = vpack.c.bf16 %v945, %v945
      %v1089 = vpack.c.bf16 %v991, %v991
      %v1090 = vpack.c.bf16 %v1037, %v1037
      %v1091 = vpack.c.bf16 %v1083, %v1083
      %v1092 = vld [vmem:[%s7] sm:$0xf]
      %v1093 = vld [vmem:[%s7 + $0x4] sm:$0xf]
      %v1094 = vld [vmem:[%s7 + $0x8] sm:$0xf]
      %v1095 = vld [vmem:[%s7 + $0xc] sm:$0xf]
      %v1097 = vsel %vm659, %v1088, 0
      %v1100 = vsel %vm906, %v1092, 0
      %1102 = vmatprep.subr.bf16.mxu0 0
      %1103 = vmatpush1.bf16.msra.mxu0 %v1100
      %1104 = vmatprep.subr.bf16.mxu0 0
      %1105 = vmatpush1.bf16.msra.mxu0 0
      %1106 = vmatprep.subr.bf16.mxu0 0
      %1107 = vmatpush1.bf16.msra.mxu0 0
      %1108 = vmatprep.subr.bf16.mxu0 0
      %1109 = vmatpush1.bf16.msra.mxu0 0
      %1110 = vmatprep.subr.bf16.mxu0 0
      %1111 = vmatpush1.bf16.msra.mxu0 0
      %1112 = vmatprep.subr.bf16.mxu0 0
      %1113 = vmatpush1.bf16.msra.mxu0 0
      %1114 = vmatprep.subr.bf16.mxu0 0
      %1115 = vmatpush1.bf16.msra.mxu0 0
      %1116 = vmatprep.subr.bf16.mxu0 0
      %1117 = vmatpush1.bf16.msra.mxu0 0
      %1118 = vmatprep.subr.bf16.mxu0 0
      %1119 = vmatpush1.bf16.msra.mxu0 0
      %1120 = vmatprep.subr.bf16.mxu0 0
      %1121 = vmatpush1.bf16.msra.mxu0 0
      %1122 = vmatprep.subr.bf16.mxu0 0
      %1123 = vmatpush1.bf16.msra.mxu0 0
      %1124 = vmatprep.subr.bf16.mxu0 0
      %1125 = vmatpush1.bf16.msra.mxu0 0
      %1126 = vmatprep.subr.bf16.mxu0 0
      %1127 = vmatpush1.bf16.msra.mxu0 0
      %1128 = vmatprep.subr.bf16.mxu0 0
      %1129 = vmatpush1.bf16.msra.mxu0 0
      %1130 = vmatprep.subr.bf16.mxu0 0
      %1131 = vmatpush1.bf16.msra.mxu0 0
      %1132 = vmatprep.subr.bf16.mxu0 0
      %1133 = vmatpush1.bf16.msra.mxu0 0
      %1134 = vmatprep.mubr.bf16.mxu0 0
      %1135 = vmatmul.mubr.bf16.gmra.mrb[0].mxu0 %v1097
      %v1136 = vpop.f32.mrb[0].mxu0
      %v1137 = vadd.f32 0.0, %v1136
      %v1138 = vpop.f32.mrb[0].mxu0
      %v1139 = vpop.f32.mrb[0].mxu0
      %v1140 = vpop.f32.mrb[0].mxu0
      %1141 = vdwg.mxu0
      %v1143 = vsel %vm659, %v1089, 0
      %v1146 = vsel %vm906, %v1093, 0
      %1148 = vmatprep.subr.bf16.mxu0 0
      %1149 = vmatpush1.bf16.msra.mxu0 %v1146
      %1150 = vmatprep.subr.bf16.mxu0 0
      %1151 = vmatpush1.bf16.msra.mxu0 0
      %1152 = vmatprep.subr.bf16.mxu0 0
      %1153 = vmatpush1.bf16.msra.mxu0 0
      %1154 = vmatprep.subr.bf16.mxu0 0
      %1155 = vmatpush1.bf16.msra.mxu0 0
      %1156 = vmatprep.subr.bf16.mxu0 0
      %1157 = vmatpush1.bf16.msra.mxu0 0
      %1158 = vmatprep.subr.bf16.mxu0 0
      %1159 = vmatpush1.bf16.msra.mxu0 0
      %1160 = vmatprep.subr.bf16.mxu0 0
      %1161 = vmatpush1.bf16.msra.mxu0 0
      %1162 = vmatprep.subr.bf16.mxu0 0
      %1163 = vmatpush1.bf16.msra.mxu0 0
      %1164 = vmatprep.subr.bf16.mxu0 0
      %1165 = vmatpush1.bf16.msra.mxu0 0
      %1166 = vmatprep.subr.bf16.mxu0 0
      %1167 = vmatpush1.bf16.msra.mxu0 0
      %1168 = vmatprep.subr.bf16.mxu0 0
      %1169 = vmatpush1.bf16.msra.mxu0 0
      %1170 = vmatprep.subr.bf16.mxu0 0
      %1171 = vmatpush1.bf16.msra.mxu0 0
      %1172 = vmatprep.subr.bf16.mxu0 0
      %1173 = vmatpush1.bf16.msra.mxu0 0
      %1174 = vmatprep.subr.bf16.mxu0 0
      %1175 = vmatpush1.bf16.msra.mxu0 0
      %1176 = vmatprep.subr.bf16.mxu0 0
      %1177 = vmatpush1.bf16.msra.mxu0 0
      %1178 = vmatprep.subr.bf16.mxu0 0
      %1179 = vmatpush1.bf16.msra.mxu0 0
      %1180 = vmatprep.mubr.bf16.mxu0 0
      %1181 = vmatmul.mubr.bf16.gmra.mrb[0].mxu0 %v1143
      %v1182 = vpop.f32.mrb[0].mxu0
      %v1183 = vadd.f32 0.0, %v1182
      %v1184 = vpop.f32.mrb[0].mxu0
      %v1185 = vpop.f32.mrb[0].mxu0
      %v1186 = vpop.f32.mrb[0].mxu0
      %1187 = vdwg.mxu0
      %v1189 = vsel %vm659, %v1090, 0
      %v1192 = vsel %vm906, %v1094, 0
      %1194 = vmatprep.subr.bf16.mxu0 0
      %1195 = vmatpush1.bf16.msra.mxu0 %v1192
      %1196 = vmatprep.subr.bf16.mxu0 0
      %1197 = vmatpush1.bf16.msra.mxu0 0
      %1198 = vmatprep.subr.bf16.mxu0 0
      %1199 = vmatpush1.bf16.msra.mxu0 0
      %1200 = vmatprep.subr.bf16.mxu0 0
      %1201 = vmatpush1.bf16.msra.mxu0 0
      %1202 = vmatprep.subr.bf16.mxu0 0
      %1203 = vmatpush1.bf16.msra.mxu0 0
      %1204 = vmatprep.subr.bf16.mxu0 0
      %1205 = vmatpush1.bf16.msra.mxu0 0
      %1206 = vmatprep.subr.bf16.mxu0 0
      %1207 = vmatpush1.bf16.msra.mxu0 0
      %1208 = vmatprep.subr.bf16.mxu0 0
      %1209 = vmatpush1.bf16.msra.mxu0 0
      %1210 = vmatprep.subr.bf16.mxu0 0
      %1211 = vmatpush1.bf16.msra.mxu0 0
      %1212 = vmatprep.subr.bf16.mxu0 0
      %1213 = vmatpush1.bf16.msra.mxu0 0
      %1214 = vmatprep.subr.bf16.mxu0 0
      %1215 = vmatpush1.bf16.msra.mxu0 0
      %1216 = vmatprep.subr.bf16.mxu0 0
      %1217 = vmatpush1.bf16.msra.mxu0 0
      %1218 = vmatprep.subr.bf16.mxu0 0
      %1219 = vmatpush1.bf16.msra.mxu0 0
      %1220 = vmatprep.subr.bf16.mxu0 0
      %1221 = vmatpush1.bf16.msra.mxu0 0
      %1222 = vmatprep.subr.bf16.mxu0 0
      %1223 = vmatpush1.bf16.msra.mxu0 0
      %1224 = vmatprep.subr.bf16.mxu0 0
      %1225 = vmatpush1.bf16.msra.mxu0 0
      %1226 = vmatprep.mubr.bf16.mxu0 0
      %1227 = vmatmul.mubr.bf16.gmra.mrb[0].mxu0 %v1189
      %v1228 = vpop.f32.mrb[0].mxu0
      %v1229 = vadd.f32 0.0, %v1228
      %v1230 = vpop.f32.mrb[0].mxu0
      %v1231 = vpop.f32.mrb[0].mxu0
      %v1232 = vpop.f32.mrb[0].mxu0
      %1233 = vdwg.mxu0
      %v1235 = vsel %vm659, %v1091, 0
      %v1238 = vsel %vm906, %v1095, 0
      %1240 = vmatprep.subr.bf16.mxu0 0
      %1241 = vmatpush1.bf16.msra.mxu0 %v1238
      %1242 = vmatprep.subr.bf16.mxu0 0
      %1243 = vmatpush1.bf16.msra.mxu0 0
      %1244 = vmatprep.subr.bf16.mxu0 0
      %1245 = vmatpush1.bf16.msra.mxu0 0
      %1246 = vmatprep.subr.bf16.mxu0 0
      %1247 = vmatpush1.bf16.msra.mxu0 0
      %1248 = vmatprep.subr.bf16.mxu0 0
      %1249 = vmatpush1.bf16.msra.mxu0 0
      %1250 = vmatprep.subr.bf16.mxu0 0
      %1251 = vmatpush1.bf16.msra.mxu0 0
      %1252 = vmatprep.subr.bf16.mxu0 0
      %1253 = vmatpush1.bf16.msra.mxu0 0
      %1254 = vmatprep.subr.bf16.mxu0 0
      %1255 = vmatpush1.bf16.msra.mxu0 0
      %1256 = vmatprep.subr.bf16.mxu0 0
      %1257 = vmatpush1.bf16.msra.mxu0 0
      %1258 = vmatprep.subr.bf16.mxu0 0
      %1259 = vmatpush1.bf16.msra.mxu0 0
      %1260 = vmatprep.subr.bf16.mxu0 0
      %1261 = vmatpush1.bf16.msra.mxu0 0
      %1262 = vmatprep.subr.bf16.mxu0 0
      %1263 = vmatpush1.bf16.msra.mxu0 0
      %1264 = vmatprep.subr.bf16.mxu0 0
      %1265 = vmatpush1.bf16.msra.mxu0 0
      %1266 = vmatprep.subr.bf16.mxu0 0
      %1267 = vmatpush1.bf16.msra.mxu0 0
      %1268 = vmatprep.subr.bf16.mxu0 0
      %1269 = vmatpush1.bf16.msra.mxu0 0
      %1270 = vmatprep.subr.bf16.mxu0 0
      %1271 = vmatpush1.bf16.msra.mxu0 0
      %1272 = vmatprep.mubr.bf16.mxu0 0
      %1273 = vmatmul.mubr.bf16.gmra.mrb[0].mxu0 %v1235
      %v1274 = vpop.f32.mrb[0].mxu0
      %v1275 = vadd.f32 0.0, %v1274
      %v1276 = vpop.f32.mrb[0].mxu0
      %v1277 = vpop.f32.mrb[0].mxu0
      %v1278 = vpop.f32.mrb[0].mxu0
      %1279 = vdwg.mxu0
      %v1280 = vsel %vm452, %v1137, 0.0
      %v1281 = vsel %vm452, %v1183, 0.0
      %v1282 = vadd.f32 %v1280, %v1281
      %v1283 = vsel %vm452, %v1229, 0.0
      %v1284 = vadd.f32 %v1282, %v1283
      %v1285 = vsel %vm452, %v1275, 0.0
      %v1286 = vadd.f32 %v1284, %v1285
      %v1287 = vld [vmem:[%s8] sm:$0x1]
      %v1289 = vlaneseq
      %v1290 = vshrl.u32 %v1289, 7
      %v1291 = vsub.s32 0, %v1290
      %v1292 = vrot.slane %v1287, %v1291
      %v1294 = vadd.f32 %v1286, %v1292
      %v1295 = vadd.f32 %v1294, %v431
      %v1296 = vsel %vm452, %v1295, 0.0
      %1297 = vadd.xlane.f32.xlu0 %v1296
      %v1298 = vpop.xlane.xlu0 %1297
      %v1299 = vrcp.pop 32.0
      %v1300 = vmul.f32 %v1298, %v1299
      %v1301 = vsub.f32 %v1295, %v1300
      %v1302 = vmul.f32 %v1301, %v1301
      %v1303 = vsel %vm452, %v1302, 0.0
      %1304 = vadd.xlane.f32.xlu0 %v1303
      %v1305 = vpop.xlane.xlu0 %1304
      %v1306 = vmul.f32 %v1305, %v1299
      %v1307 = vadd.f32 %v1306, 1e-05
      %v1308 = vrsqrt.pop %v1307
      %v1309 = vmul.f32 %v1301, %v1308
      %v1310 = vld [vmem:[%s9] sm:$0x1]
      %v1312 = vlaneseq
      %v1313 = vshrl.u32 %v1312, 7
      %v1314 = vsub.s32 0, %v1313
      %v1315 = vrot.slane %v1310, %v1314
      %v1317 = vmul.f32 %v1309, %v1315
      %v1318 = vld [vmem:[%s10] sm:$0x1]
      %v1320 = vlaneseq
      %v1321 = vshrl.u32 %v1320, 7
      %v1322 = vsub.s32 0, %v1321
      %v1323 = vrot.slane %v1318, %v1322
      %v1325 = vadd.f32 %v1317, %v1323
      %1326 = vst.msk [vmem:[%s429] sm:$0xff] %vm452, %v1325
      %p1327 = scmp.lt.s32.totalorder %s22, 1
      %s1328 = scalar_select %p1327, %s22, 1
      %s1329 = smul.addr %s1328, 8
      %s1330 = scalar_lea.vmem %s11, %s1329
      // Predicated region
      $region65: #{decoder_block.4} parent=63 // pred_check
        %p1331 = pneg %p291
      $region66: #{decoder_block.4} parent=63 // pred_check_branch
        %1333 = sbr.rel (%p1331) target = $region68
      $region67: #{decoder_block.4} parent=63 // pred_region
        _
      $region68: #{decoder_block.4} parent=63 // pred_fallthru
        _
    $region64: #{decoder_block.4} parent=5 // pred_fallthru
      _
    %p1334 = scmp.le.s32.totalorder 2, %s17
    // Predicated region
    $region69: #{decoder_block.4} parent=5 // pred_check
      %p1335 = pneg %p1334
    $region70: #{decoder_block.4} parent=5 // pred_check_branch
      %1337 = sbr.rel (%p1335) target = $region72
    $region71: #{decoder_block.4} parent=5 // pred_region
      %s1338 = ssub.s32 %s17, 2
      // Predicated region
      $region73: #{decoder_block.4} parent=71 // pred_check
        %p1339 = pneg %p297
      $region74: #{decoder_block.4} parent=71 // pred_check_branch
        %1341 = sbr.rel (%p1339) target = $region76
      $region75: #{decoder_block.4} parent=71 // pred_region
        %p1342 = scmp.lt.s32.totalorder %s23, 1
        %s1343 = scalar_select %p1342, %s23, 1
        %s1344 = smul.addr %s1343, 8
        %s1345 = scalar_lea.vmem %s11, %s1344
      $region76: #{decoder_block.4} parent=71 // pred_fallthru
        _
    $region72: #{decoder_block.4} parent=5 // pred_fallthru
      _
  $region6: #{decoder_block.4} parent=0 // loop_footer
    %s21 = sadd.s32 1, %s17
  $region7: #{decoder_block.4} parent=0 // loop_footer_branch
    %16 = sbr.rel target = $region3
  $region8: #{decoder_block.4} parent=0 // loop_exit
    _

// kernel: decoder_block.3
$region0: #{decoder_block.3}
  #allocation0 [shape = 'u32[]', space=smem, size = 0x4, offset = 0x4, fixed_abs, tag = 'smem constant byte address 0x4 - core index']
  #allocation1 [shape = 'u32[144,128]{1,0:T(1,128)}', space=vmem, size = 0x12000, scoped, tag = 'internal scratch']
  %s0 = inlined_call_operand.vmem [shape: f32[2,8,32], index: 0, kind: input, shape index: {}]
  %s1 = inlined_call_operand.vmem [shape: f32[2,8,8], index: 1, kind: input, shape index: {}]
  %s2 = inlined_call_operand.vmem [shape: bf16[32,32], index: 2, kind: input, shape index: {}]
  %s3 = inlined_call_operand.vmem [shape: bf16[32,32], index: 3, kind: input, shape index: {}]
  %s4 = inlined_call_operand.vmem [shape: bf16[32,32], index: 4, kind: input, shape index: {}]
  %s5 = inlined_call_operand.vmem [shape: bf16[4,8,32], index: 5, kind: input, shape index: {}]
  %s6 = inlined_call_operand.vmem [shape: f32[1,32], index: 6, kind: input, shape index: {}]
  %s7 = inlined_call_operand.vmem [shape: f32[1,32], index: 7, kind: input, shape index: {}]
  %s8 = inlined_call_operand.vmem [shape: f32[1,32], index: 8, kind: input, shape index: {}]
  %s9 = inlined_call_operand.vmem [shape: f32[2,8,32], index: 9, kind: output, shape index: {}]
  %s10 = sld [smem:[#allocation0]]
  $region69: #{decoder_block.3} parent=0
    _
  %s12 = ssub.s32 1, %s10
  %s13 = scalar_select 0, %s12, %s10
  loop: start=0, step=1, limit=4
  $region2: #{decoder_block.3} parent=0 // loop_pre_header
    _
  $region3: #{decoder_block.3} parent=0 // loop_header
    %s15 = sphi 0, %s19
    %p16 = scmp.ge.s32.totalorder %s15, 4
    %s25 = sphi 0, %s27
    %s28 = sphi 0, %s25
    %s29 = sphi 0, %s28
    %s45 = sphi 0, %s29
    %s51 = sphi 0, %s53
    %s54 = sphi 0, %s51
    %s55 = sphi 0, %s54
    %s71 = sphi 0, %s55
    %s75 = sphi 0, %s75
    %s77 = sphi 0, %s75
    %s78 = sphi 0, %s77
    %s92 = sphi 0, %s78
    %s96 = sphi 0, %s96
    %s98 = sphi 0, %s96
    %s99 = sphi 0, %s98
    %s113 = sphi 0, %s99
    %s117 = sphi 0, %s117
    %s119 = sphi 0, %s117
    %s120 = sphi 0, %s119
    %s134 = sphi 0, %s120
    %s138 = sphi 0, %s138
    %s140 = sphi 0, %s138
    %s141 = sphi 0, %s140
    %s155 = sphi 0, %s141
    %s159 = sphi 0, %s159
    %s161 = sphi 0, %s159
    %s162 = sphi 0, %s161
    %s176 = sphi 0, %s162
    %s180 = sphi 0, %s180
    %s182 = sphi 0, %s180
    %s183 = sphi 0, %s182
    %s197 = sphi 0, %s183
    %s201 = sphi 0, %s201
    %s203 = sphi 0, %s201
    %s204 = sphi 0, %s203
    %s218 = sphi 0, %s204
    %s224 = sphi 0, %s226
    %s227 = sphi 0, %s224
    %s228 = sphi 0, %s227
    %s244 = sphi 0, %s228
  $region4: #{decoder_block.3} parent=0 // loop_header_branch
    %18 = sbr.rel (%p16) target = $region8
  $region5: #{decoder_block.3} parent=0 // loop_body
    %s20 = ssub.s32 %s15, 1
    %s21 = ssub.s32 %s15, 2
    %s22 = sadd.s32 %s15, 1
    %s23 = ssub.s32 %s15, %s22
    %p24 = scmp.eq.s32.totalorder %s23, 0
    %s26 = sadd.s32 %s25, 1
    %s27 = scalar_select %p24, %s25, %s26
    %p30 = pneg %p24
    %p31 = scmp.eq.s32.totalorder %s15, 1
    %p32 = por %p30, %p31
    %p33 = scmp.ne.s32.totalorder %s25, %s28
    %p34 = scmp.eq.s32.totalorder %s15, 0
    %p35 = por %p33, %p34
    %p36 = scmp.ne.s32.totalorder %s25, %s28
    %p37 = scmp.eq.s32.totalorder %s20, 1
    %p38 = por %p36, %p37
    %p39 = scmp.ne.s32.totalorder %s28, %s29
    %p40 = scmp.eq.s32.totalorder %s20, 0
    %p41 = por %p39, %p40
    %p42 = scmp.ne.s32.totalorder %s28, %s29
    %p43 = scmp.eq.s32.totalorder %s21, 1
    %p44 = por %p42, %p43
    %p46 = scmp.ne.s32.totalorder %s29, %s45
    %p47 = scmp.eq.s32.totalorder %s21, 0
    %p48 = por %p46, %p47
    %s49 = ssub.s32 %s15, %s22
    %p50 = scmp.eq.s32.totalorder %s49, 0
    %s52 = sadd.s32 %s51, 1
    %s53 = scalar_select %p50, %s51, %s52
    %p56 = pneg %p50
    %p57 = scmp.eq.s32.totalorder %s15, 1
    %p58 = por %p56, %p57
    %p59 = scmp.ne.s32.totalorder %s51, %s54
    %p60 = scmp.eq.s32.totalorder %s15, 0
    %p61 = por %p59, %p60
    %p62 = scmp.ne.s32.totalorder %s51, %s54
    %p63 = scmp.eq.s32.totalorder %s20, 1
    %p64 = por %p62, %p63
    %p65 = scmp.ne.s32.totalorder %s54, %s55
    %p66 = scmp.eq.s32.totalorder %s20, 0
    %p67 = por %p65, %p66
    %p68 = scmp.ne.s32.totalorder %s54, %s55
    %p69 = scmp.eq.s32.totalorder %s21, 1
    %p70 = por %p68, %p69
    %p72 = scmp.ne.s32.totalorder %s55, %s71
    %p73 = scmp.eq.s32.totalorder %s21, 0
    %p74 = por %p72, %p73
    %s76 = sadd.s32 %s75, 1
    %p79 = scmp.eq.s32.totalorder %s15, 1
    %p80 = scmp.ne.s32.totalorder %s75, %s77
    %p81 = scmp.eq.s32.totalorder %s15, 0
    %p82 = por %p80, %p81
    %p83 = scmp.ne.s32.totalorder %s75, %s77
    %p84 = scmp.eq.s32.totalorder %s20, 1
    %p85 = por %p83, %p84
    %p86 = scmp.ne.s32.totalorder %s77, %s78
    %p87 = scmp.eq.s32.totalorder %s20, 0
    %p88 = por %p86, %p87
    %p89 = scmp.ne.s32.totalorder %s77, %s78
    %p90 = scmp.eq.s32.totalorder %s21, 1
    %p91 = por %p89, %p90
    %p93 = scmp.ne.s32.totalorder %s78, %s92
    %p94 = scmp.eq.s32.totalorder %s21, 0
    %p95 = por %p93, %p94
    %s97 = sadd.s32 %s96, 1
    %p100 = scmp.eq.s32.totalorder %s15, 1
    %p101 = scmp.ne.s32.totalorder %s96, %s98
    %p102 = scmp.eq.s32.totalorder %s15, 0
    %p103 = por %p101, %p102
    %p104 = scmp.ne.s32.totalorder %s96, %s98
    %p105 = scmp.eq.s32.totalorder %s20, 1
    %p106 = por %p104, %p105
    %p107 = scmp.ne.s32.totalorder %s98, %s99
    %p108 = scmp.eq.s32.totalorder %s20, 0
    %p109 = por %p107, %p108
    %p110 = scmp.ne.s32.totalorder %s98, %s99
    %p111 = scmp.eq.s32.totalorder %s21, 1
    %p112 = por %p110, %p111
    %p114 = scmp.ne.s32.totalorder %s99, %s113
    %p115 = scmp.eq.s32.totalorder %s21, 0
    %p116 = por %p114, %p115
    %s118 = sadd.s32 %s117, 1
    %p121 = scmp.eq.s32.totalorder %s15, 1
    %p122 = scmp.ne.s32.totalorder %s117, %s119
    %p123 = scmp.eq.s32.totalorder %s15, 0
    %p124 = por %p122, %p123
    %p125 = scmp.ne.s32.totalorder %s117, %s119
    %p126 = scmp.eq.s32.totalorder %s20, 1
    %p127 = por %p125, %p126
    %p128 = scmp.ne.s32.totalorder %s119, %s120
    %p129 = scmp.eq.s32.totalorder %s20, 0
    %p130 = por %p128, %p129
    %p131 = scmp.ne.s32.totalorder %s119, %s120
    %p132 = scmp.eq.s32.totalorder %s21, 1
    %p133 = por %p131, %p132
    %p135 = scmp.ne.s32.totalorder %s120, %s134
    %p136 = scmp.eq.s32.totalorder %s21, 0
    %p137 = por %p135, %p136
    %s139 = sadd.s32 %s138, 1
    %p142 = scmp.eq.s32.totalorder %s15, 1
    %p143 = scmp.ne.s32.totalorder %s138, %s140
    %p144 = scmp.eq.s32.totalorder %s15, 0
    %p145 = por %p143, %p144
    %p146 = scmp.ne.s32.totalorder %s138, %s140
    %p147 = scmp.eq.s32.totalorder %s20, 1
    %p148 = por %p146, %p147
    %p149 = scmp.ne.s32.totalorder %s140, %s141
    %p150 = scmp.eq.s32.totalorder %s20, 0
    %p151 = por %p149, %p150
    %p152 = scmp.ne.s32.totalorder %s140, %s141
    %p153 = scmp.eq.s32.totalorder %s21, 1
    %p154 = por %p152, %p153
    %p156 = scmp.ne.s32.totalorder %s141, %s155
    %p157 = scmp.eq.s32.totalorder %s21, 0
    %p158 = por %p156, %p157
    %s160 = sadd.s32 %s159, 1
    %p163 = scmp.eq.s32.totalorder %s15, 1
    %p164 = scmp.ne.s32.totalorder %s159, %s161
    %p165 = scmp.eq.s32.totalorder %s15, 0
    %p166 = por %p164, %p165
    %p167 = scmp.ne.s32.totalorder %s159, %s161
    %p168 = scmp.eq.s32.totalorder %s20, 1
    %p169 = por %p167, %p168
    %p170 = scmp.ne.s32.totalorder %s161, %s162
    %p171 = scmp.eq.s32.totalorder %s20, 0
    %p172 = por %p170, %p171
    %p173 = scmp.ne.s32.totalorder %s161, %s162
    %p174 = scmp.eq.s32.totalorder %s21, 1
    %p175 = por %p173, %p174
    %p177 = scmp.ne.s32.totalorder %s162, %s176
    %p178 = scmp.eq.s32.totalorder %s21, 0
    %p179 = por %p177, %p178
    %s181 = sadd.s32 %s180, 1
    %p184 = scmp.eq.s32.totalorder %s15, 1
    %p185 = scmp.ne.s32.totalorder %s180, %s182
    %p186 = scmp.eq.s32.totalorder %s15, 0
    %p187 = por %p185, %p186
    %p188 = scmp.ne.s32.totalorder %s180, %s182
    %p189 = scmp.eq.s32.totalorder %s20, 1
    %p190 = por %p188, %p189
    %p191 = scmp.ne.s32.totalorder %s182, %s183
    %p192 = scmp.eq.s32.totalorder %s20, 0
    %p193 = por %p191, %p192
    %p194 = scmp.ne.s32.totalorder %s182, %s183
    %p195 = scmp.eq.s32.totalorder %s21, 1
    %p196 = por %p194, %p195
    %p198 = scmp.ne.s32.totalorder %s183, %s197
    %p199 = scmp.eq.s32.totalorder %s21, 0
    %p200 = por %p198, %p199
    %s202 = sadd.s32 %s201, 1
    %p205 = scmp.eq.s32.totalorder %s15, 1
    %p206 = scmp.ne.s32.totalorder %s201, %s203
    %p207 = scmp.eq.s32.totalorder %s15, 0
    %p208 = por %p206, %p207
    %p209 = scmp.ne.s32.totalorder %s201, %s203
    %p210 = scmp.eq.s32.totalorder %s20, 1
    %p211 = por %p209, %p210
    %p212 = scmp.ne.s32.totalorder %s203, %s204
    %p213 = scmp.eq.s32.totalorder %s20, 0
    %p214 = por %p212, %p213
    %p215 = scmp.ne.s32.totalorder %s203, %s204
    %p216 = scmp.eq.s32.totalorder %s21, 1
    %p217 = por %p215, %p216
    %p219 = scmp.ne.s32.totalorder %s204, %s218
    %p220 = scmp.eq.s32.totalorder %s21, 0
    %p221 = por %p219, %p220
    %s222 = ssub.s32 %s15, %s22
    %p223 = scmp.eq.s32.totalorder %s222, 0
    %s225 = sadd.s32 %s224, 1
    %s226 = scalar_select %p223, %s224, %s225
    %p229 = pneg %p223
    %p230 = scmp.eq.s32.totalorder %s15, 1
    %p231 = por %p229, %p230
    %p232 = scmp.ne.s32.totalorder %s224, %s227
    %p233 = scmp.eq.s32.totalorder %s15, 0
    %p234 = por %p232, %p233
    %p235 = scmp.ne.s32.totalorder %s224, %s227
    %p236 = scmp.eq.s32.totalorder %s20, 1
    %p237 = por %p235, %p236
    %p238 = scmp.ne.s32.totalorder %s227, %s228
    %p239 = scmp.eq.s32.totalorder %s20, 0
    %p240 = por %p238, %p239
    %p241 = scmp.ne.s32.totalorder %s227, %s228
    %p242 = scmp.eq.s32.totalorder %s21, 1
    %p243 = por %p241, %p242
    %p245 = scmp.ne.s32.totalorder %s228, %s244
    %p246 = scmp.eq.s32.totalorder %s21, 0
    %p247 = por %p245, %p246
    %p248 = scmp.le.s32.totalorder 1, %s15
    %p249 = scmp.lt.s32.totalorder %s15, 3
    %p250 = pnand %p248, %p249
    %p251 = pneg %p250
    // Predicated region
    $region9: #{decoder_block.3} parent=5 // pred_check
      _
    $region10: #{decoder_block.3} parent=5 // pred_check_branch
      %253 = sbr.rel (%p250) target = $region12
    $region11: #{decoder_block.3} parent=5 // pred_region
      %s254 = ssub.s32 %s15, 1
      // Predicated region
      $region13: #{decoder_block.3} parent=11 // pred_check
        %p255 = pneg %p88
      $region14: #{decoder_block.3} parent=11 // pred_check_branch
        %257 = sbr.rel (%p255) target = $region16
      $region15: #{decoder_block.3} parent=11 // pred_region
        _
      $region16: #{decoder_block.3} parent=11 // pred_fallthru
        _
      // Predicated region
      $region17: #{decoder_block.3} parent=11 // pred_check
        %p258 = pneg %p109
      $region18: #{decoder_block.3} parent=11 // pred_check_branch
        %260 = sbr.rel (%p258) target = $region20
      $region19: #{decoder_block.3} parent=11 // pred_region
        _
      $region20: #{decoder_block.3} parent=11 // pred_fallthru
        _
      // Predicated region
      $region21: #{decoder_block.3} parent=11 // pred_check
        %p261 = pneg %p130
      $region22: #{decoder_block.3} parent=11 // pred_check_branch
        %263 = sbr.rel (%p261) target = $region24
      $region23: #{decoder_block.3} parent=11 // pred_region
        _
      $region24: #{decoder_block.3} parent=11 // pred_fallthru
        _
      // Predicated region
      $region25: #{decoder_block.3} parent=11 // pred_check
        %p264 = pneg %p151
      $region26: #{decoder_block.3} parent=11 // pred_check_branch
        %266 = sbr.rel (%p264) target = $region28
      $region27: #{decoder_block.3} parent=11 // pred_region
        _
      $region28: #{decoder_block.3} parent=11 // pred_fallthru
        _
      // Predicated region
      $region29: #{decoder_block.3} parent=11 // pred_check
        %p267 = pneg %p172
      $region30: #{decoder_block.3} parent=11 // pred_check_branch
        %269 = sbr.rel (%p267) target = $region32
      $region31: #{decoder_block.3} parent=11 // pred_region
        _
      $region32: #{decoder_block.3} parent=11 // pred_fallthru
        _
      // Predicated region
      $region33: #{decoder_block.3} parent=11 // pred_check
        %p270 = pneg %p193
      $region34: #{decoder_block.3} parent=11 // pred_check_branch
        %272 = sbr.rel (%p270) target = $region36
      $region35: #{decoder_block.3} parent=11 // pred_region
        _
      $region36: #{decoder_block.3} parent=11 // pred_fallthru
        _
      // Predicated region
      $region37: #{decoder_block.3} parent=11 // pred_check
        %p273 = pneg %p214
      $region38: #{decoder_block.3} parent=11 // pred_check_branch
        %275 = sbr.rel (%p273) target = $region40
      $region39: #{decoder_block.3} parent=11 // pred_region
        _
      $region40: #{decoder_block.3} parent=11 // pred_fallthru
        _
    $region12: #{decoder_block.3} parent=5 // pred_fallthru
      _
    %p276 = scmp.lt.s32.totalorder %s15, 2
    // Predicated region
    $region41: #{decoder_block.3} parent=5 // pred_check
      %p277 = pneg %p276
    $region42: #{decoder_block.3} parent=5 // pred_check_branch
      %279 = sbr.rel (%p277) target = $region44
    $region43: #{decoder_block.3} parent=5 // pred_region
      // Predicated region
      $region45: #{decoder_block.3} parent=43 // pred_check
        %p280 = pneg %p35
      $region46: #{decoder_block.3} parent=43 // pred_check_branch
        %282 = sbr.rel (%p280) target = $region48
      $region47: #{decoder_block.3} parent=43 // pred_region
        %p283 = scmp.lt.s32.totalorder %s15, 1
        %s284 = scalar_select %p283, %s15, 1
        %s285 = smul.addr %s284, 8
        %s286 = scalar_lea.vmem %s0, %s285
      $region48: #{decoder_block.3} parent=43 // pred_fallthru
        _
      // Predicated region
      $region49: #{decoder_block.3} parent=43 // pred_check
        %p287 = pneg %p61
      $region50: #{decoder_block.3} parent=43 // pred_check_branch
        %289 = sbr.rel (%p287) target = $region52
      $region51: #{decoder_block.3} parent=43 // pred_region
        %p290 = scmp.lt.s32.totalorder %s15, 1
        %s291 = scalar_select %p290, %s15, 1
        %s292 = smul.addr %s291, 8
        %s293 = scalar_lea.vmem %s1, %s292
      $region52: #{decoder_block.3} parent=43 // pred_fallthru
        _
    $region44: #{decoder_block.3} parent=5 // pred_fallthru
      _
    %p294 = scmp.le.s32.totalorder 1, %s15
    %p295 = scmp.lt.s32.totalorder %s15, 3
    %p296 = pnand %p294, %p295
    %p297 = pneg %p296
    // Predicated region
    $region53: #{decoder_block.3} parent=5 // pred_check
      _
    $region54: #{decoder_block.3} parent=5 // pred_check_branch
      %299 = sbr.rel (%p296) target = $region56
    $region55: #{decoder_block.3} parent=5 // pred_region
      %s300 = ssub.s32 %s15, 1
      %p301 = scmp.lt.s32.totalorder %s20, 1
      %s302 = scalar_select %p301, %s20, 1
      %s303 = smul.addr %s302, 8
      %s304 = scalar_lea.vmem %s0, %s303
      %p305 = pneg %p41
      %p306 = pneg %p38
      %p307 = scmp.lt.s32.totalorder %s20, 1
      %s308 = scalar_select %p307, %s20, 1
      %s309 = smul.addr %s308, 8
      %s310 = scalar_lea.vmem %s1, %s309
      %p311 = pneg %p67
      %p312 = pneg %p64
      %p313 = pneg %p88
      %p314 = pneg %p85
      %p315 = pneg %p109
      %p316 = pneg %p106
      %p317 = pneg %p130
      %p318 = pneg %p127
      %p319 = pneg %p151
      %p320 = pneg %p148
      %p321 = pneg %p172
      %p322 = pneg %p169
      %p323 = pneg %p193
      %p324 = pneg %p190
      %p325 = pneg %p214
      %p326 = pneg %p211
      %p327 = pneg %p240
      %p328 = pneg %p237
      %p329 = scmp.lt.s32.totalorder %s20, 1
      %s330 = scalar_select %p329, %s20, 1
      %s331 = smul.addr %s330, 8
      %s332 = scalar_lea.vmem %s9, %s331
      %p333 = scmp.lt.s32.totalorder %s20, 1
      %s334 = scalar_select %p333, %s20, 1
      %s335 = smul.addr %s334, 8
      %s336 = scalar_lea.vmem %s0, %s335
      %p337 = scmp.lt.s32.totalorder %s20, 1
      %s338 = scalar_select %p337, %s20, 1
      %s339 = smul.addr %s338, 8
      %s340 = scalar_lea.vmem %s1, %s339
      %p341 = scmp.lt.s32.totalorder %s20, 1
      %s342 = scalar_select %p341, %s20, 1
      %s343 = smul.addr %s342, 8
      %s344 = scalar_lea.vmem %s9, %s343
      %v346 = vld [vmem:[%s336] sm:$0xff]
      %v347 = vld [vmem:[%s340] sm:$0xff]
      %v348 = vpack.c.bf16 %v346, %v346
      %v349 = vld [vmem:[%s4] sm:$0xf]
      %v350 = vld [vmem:[%s4 + $0x4] sm:$0xf]
      %v351 = vld [vmem:[%s4 + $0x8] sm:$0xf]
      %v352 = vld [vmem:[%s4 + $0xc] sm:$0xf]
      %v357 = vunpack.c.l.b16 %v349
      %v358 = vunpack.c.l.b16 %v350
      %v359 = vunpack.c.l.b16 %v351
      %v360 = vunpack.c.l.b16 %v352
      %v361 = vpack.c.b16 %v358, %v357
      %v362 = vpack.c.b16 %v360, %v359
      %vm365 = vcmask 261120
      %v367 = vsel %vm365, %v348, 0
      %369 = vmatprep.subr.bf16.mxu0 0
      %370 = vmatpush1.bf16.msra.mxu0 %v361
      %371 = vmatprep.subr.bf16.mxu0 0
      %372 = vmatpush1.bf16.msra.mxu0 %v362
      %373 = vmatprep.subr.bf16.mxu0 0
      %374 = vmatpush1.bf16.msra.mxu0 0
      %375 = vmatprep.subr.bf16.mxu0 0
      %376 = vmatpush1.bf16.msra.mxu0 0
      %377 = vmatprep.subr.bf16.mxu0 0
      %378 = vmatpush1.bf16.msra.mxu0 0
      %379 = vmatprep.subr.bf16.mxu0 0
      %380 = vmatpush1.bf16.msra.mxu0 0
      %381 = vmatprep.subr.bf16.mxu0 0
      %382 = vmatpush1.bf16.msra.mxu0 0
      %383 = vmatprep.subr.bf16.mxu0 0
      %384 = vmatpush1.bf16.msra.mxu0 0
      %385 = vmatprep.subr.bf16.mxu0 0
      %386 = vmatpush1.bf16.msra.mxu0 0
      %387 = vmatprep.subr.bf16.mxu0 0
      %388 = vmatpush1.bf16.msra.mxu0 0
      %389 = vmatprep.subr.bf16.mxu0 0
      %390 = vmatpush1.bf16.msra.mxu0 0
      %391 = vmatprep.subr.bf16.mxu0 0
      %392 = vmatpush1.bf16.msra.mxu0 0
      %393 = vmatprep.subr.bf16.mxu0 0
      %394 = vmatpush1.bf16.msra.mxu0 0
      %395 = vmatprep.subr.bf16.mxu0 0
      %396 = vmatpush1.bf16.msra.mxu0 0
      %397 = vmatprep.subr.bf16.mxu0 0
      %398 = vmatpush1.bf16.msra.mxu0 0
      %399 = vmatprep.subr.bf16.mxu0 0
      %400 = vmatpush1.bf16.msra.mxu0 0
      %401 = vmatprep.mubr.bf16.mxu0 0
      %402 = vmatmul.mubr.bf16.gmra.mrb[0].mxu0 %v367
      %v403 = vpop.f32.mrb[0].mxu0
      %v404 = vadd.f32 0.0, %v403
      %v405 = vpop.f32.mrb[0].mxu0
      %v406 = vpop.f32.mrb[0].mxu0
      %v407 = vpop.f32.mrb[0].mxu0
      %408 = vdwg.mxu0
      %v409 = vld [vmem:[%s3] sm:$0xf]
      %v410 = vld [vmem:[%s3 + $0x4] sm:$0xf]
      %v411 = vld [vmem:[%s3 + $0x8] sm:$0xf]
      %v412 = vld [vmem:[%s3 + $0xc] sm:$0xf]
      %v417 = vunpack.c.l.b16 %v409
      %v418 = vunpack.c.l.b16 %v410
      %v419 = vunpack.c.l.b16 %v411
      %v420 = vunpack.c.l.b16 %v412
      %v421 = vpack.c.b16 %v418, %v417
      %v422 = vpack.c.b16 %v420, %v419
      %425 = vmatprep.subr.bf16.mxu0 0
      %426 = vmatpush1.bf16.msra.mxu0 %v421
      %427 = vmatprep.subr.bf16.mxu0 0
      %428 = vmatpush1.bf16.msra.mxu0 %v422
      %429 = vmatprep.subr.bf16.mxu0 0
      %430 = vmatpush1.bf16.msra.mxu0 0
      %431 = vmatprep.subr.bf16.mxu0 0
      %432 = vmatpush1.bf16.msra.mxu0 0
      %433 = vmatprep.subr.bf16.mxu0 0
      %434 = vmatpush1.bf16.msra.mxu0 0
      %435 = vmatprep.subr.bf16.mxu0 0
      %436 = vmatpush1.bf16.msra.mxu0 0
      %437 = vmatprep.subr.bf16.mxu0 0
      %438 = vmatpush1.bf16.msra.mxu0 0
      %439 = vmatprep.subr.bf16.mxu0 0
      %440 = vmatpush1.bf16.msra.mxu0 0
      %441 = vmatprep.subr.bf16.mxu0 0
      %442 = vmatpush1.bf16.msra.mxu0 0
      %443 = vmatprep.subr.bf16.mxu0 0
      %444 = vmatpush1.bf16.msra.mxu0 0
      %445 = vmatprep.subr.bf16.mxu0 0
      %446 = vmatpush1.bf16.msra.mxu0 0
      %447 = vmatprep.subr.bf16.mxu0 0
      %448 = vmatpush1.bf16.msra.mxu0 0
      %449 = vmatprep.subr.bf16.mxu0 0
      %450 = vmatpush1.bf16.msra.mxu0 0
      %451 = vmatprep.subr.bf16.mxu0 0
      %452 = vmatpush1.bf16.msra.mxu0 0
      %453 = vmatprep.subr.bf16.mxu0 0
      %454 = vmatpush1.bf16.msra.mxu0 0
      %455 = vmatprep.subr.bf16.mxu0 0
      %456 = vmatpush1.bf16.msra.mxu0 0
      %457 = vmatprep.mubr.bf16.mxu0 0
      %458 = vmatmul.mubr.bf16.gmra.mrb[0].mxu0 %v367
      %v459 = vpop.f32.mrb[0].mxu0
      %v460 = vadd.f32 0.0, %v459
      %v461 = vpop.f32.mrb[0].mxu0
      %v462 = vpop.f32.mrb[0].mxu0
      %v463 = vpop.f32.mrb[0].mxu0
      %464 = vdwg.mxu0
      %v465 = vld [vmem:[%s2] sm:$0xf]
      %v466 = vld [vmem:[%s2 + $0x4] sm:$0xf]
      %v467 = vld [vmem:[%s2 + $0x8] sm:$0xf]
      %v468 = vld [vmem:[%s2 + $0xc] sm:$0xf]
      %v473 = vunpack.c.l.b16 %v465
      %v474 = vunpack.c.l.b16 %v466
      %v475 = vunpack.c.l.b16 %v467
      %v476 = vunpack.c.l.b16 %v468
      %v477 = vpack.c.b16 %v474, %v473
      %v478 = vpack.c.b16 %v476, %v475
      %481 = vmatprep.subr.bf16.mxu0 0
      %482 = vmatpush1.bf16.msra.mxu0 %v477
      %483 = vmatprep.subr.bf16.mxu0 0
      %484 = vmatpush1.bf16.msra.mxu0 %v478
      %485 = vmatprep.subr.bf16.mxu0 0
      %486 = vmatpush1.bf16.msra.mxu0 0
      %487 = vmatprep.subr.bf16.mxu0 0
      %488 = vmatpush1.bf16.msra.mxu0 0
      %489 = vmatprep.subr.bf16.mxu0 0
      %490 = vmatpush1.bf16.msra.mxu0 0
      %491 = vmatprep.subr.bf16.mxu0 0
      %492 = vmatpush1.bf16.msra.mxu0 0
      %493 = vmatprep.subr.bf16.mxu0 0
      %494 = vmatpush1.bf16.msra.mxu0 0
      %495 = vmatprep.subr.bf16.mxu0 0
      %496 = vmatpush1.bf16.msra.mxu0 0
      %497 = vmatprep.subr.bf16.mxu0 0
      %498 = vmatpush1.bf16.msra.mxu0 0
      %499 = vmatprep.subr.bf16.mxu0 0
      %500 = vmatpush1.bf16.msra.mxu0 0
      %501 = vmatprep.subr.bf16.mxu0 0
      %502 = vmatpush1.bf16.msra.mxu0 0
      %503 = vmatprep.subr.bf16.mxu0 0
      %504 = vmatpush1.bf16.msra.mxu0 0
      %505 = vmatprep.subr.bf16.mxu0 0
      %506 = vmatpush1.bf16.msra.mxu0 0
      %507 = vmatprep.subr.bf16.mxu0 0
      %508 = vmatpush1.bf16.msra.mxu0 0
      %509 = vmatprep.subr.bf16.mxu0 0
      %510 = vmatpush1.bf16.msra.mxu0 0
      %511 = vmatprep.subr.bf16.mxu0 0
      %512 = vmatpush1.bf16.msra.mxu0 0
      %513 = vmatprep.mubr.bf16.mxu0 0
      %514 = vmatmul.mubr.bf16.gmra.mrb[0].mxu0 %v367
      %v515 = vpop.f32.mrb[0].mxu0
      %v516 = vadd.f32 0.0, %v515
      %v517 = vpop.f32.mrb[0].mxu0
      %v518 = vpop.f32.mrb[0].mxu0
      %v519 = vpop.f32.mrb[0].mxu0
      %520 = vdwg.mxu0
      %v521 = vmul.f32 %v404, 0.17677669
      %523 = vrot.lane.b32.xlu0 %v521, 120
      %v524 = vpop.permute.xlu0 %523
      %526 = vrot.lane.b32.xlu0 %v521, 112
      %v527 = vpop.permute.xlu0 %526
      %529 = vrot.lane.b32.xlu0 %v521, 104
      %v530 = vpop.permute.xlu0 %529
      %v532 = vpack.c.bf16 %v521, %v521
      %v533 = vpack.c.bf16 %v524, %v524
      %v534 = vpack.c.bf16 %v527, %v527
      %v535 = vpack.c.bf16 %v530, %v530
      %537 = vrot.lane.b32.xlu0 %v460, 120
      %v538 = vpop.permute.xlu0 %537
      %540 = vrot.lane.b32.xlu0 %v460, 112
      %v541 = vpop.permute.xlu0 %540
      %543 = vrot.lane.b32.xlu0 %v460, 104
      %v544 = vpop.permute.xlu0 %543
      %v546 = vpack.c.bf16 %v460, %v460
      %v547 = vpack.c.bf16 %v538, %v538
      %v548 = vpack.c.bf16 %v541, %v541
      %v549 = vpack.c.bf16 %v544, %v544
      %551 = vrot.lane.b32.xlu0 %v516, 120
      %v552 = vpop.permute.xlu0 %551
      %554 = vrot.lane.b32.xlu0 %v516, 112
      %v555 = vpop.permute.xlu0 %554
      %557 = vrot.lane.b32.xlu0 %v516, 104
      %v558 = vpop.permute.xlu0 %557
      %v560 = vpack.c.bf16 %v516, %v516
      %v561 = vpack.c.bf16 %v552, %v552
      %v562 = vpack.c.bf16 %v555, %v555
      %v563 = vpack.c.bf16 %v558, %v558
      %vm564 = vcmask 64512
      %v566 = vsel %vm564, %v532, 0
      %v569 = vsel %vm564, %v546, 0
      %571 = vmatprep.subr.bf16.mxu0 0
      %572 = vmatpush1.bf16.xpose.msra.mxu0 %v569
      %573 = vmatprep.subr.bf16.mxu0 0
      %574 = vmatpush1.bf16.xpose.msra.mxu0 0
      %575 = vmatprep.subr.bf16.mxu0 0
      %576 = vmatpush1.bf16.xpose.msra.mxu0 0
      %577 = vmatprep.subr.bf16.mxu0 0
      %578 = vmatpush1.bf16.xpose.msra.mxu0 0
      %579 = vmatprep.subr.bf16.mxu0 0
      %580 = vmatpush1.bf16.xpose.msra.mxu0 0
      %581 = vmatprep.subr.bf16.mxu0 0
      %582 = vmatpush1.bf16.xpose.msra.mxu0 0
      %583 = vmatprep.subr.bf16.mxu0 0
      %584 = vmatpush1.bf16.xpose.msra.mxu0 0
      %585 = vmatprep.subr.bf16.mxu0 0
      %586 = vmatpush1.bf16.xpose.msra.mxu0 0
      %587 = vmatprep.subr.bf16.mxu0 0
      %588 = vmatpush1.bf16.xpose.msra.mxu0 0
      %589 = vmatprep.subr.bf16.mxu0 0
      %590 = vmatpush1.bf16.xpose.msra.mxu0 0
      %591 = vmatprep.subr.bf16.mxu0 0
      %592 = vmatpush1.bf16.xpose.msra.mxu0 0
      %593 = vmatprep.subr.bf16.mxu0 0
      %594 = vmatpush1.bf16.xpose.msra.mxu0 0
      %595 = vmatprep.subr.bf16.mxu0 0
      %596 = vmatpush1.bf16.xpose.msra.mxu0 0
      %597 = vmatprep.subr.bf16.mxu0 0
      %598 = vmatpush1.bf16.xpose.msra.mxu0 0
      %599 = vmatprep.subr.bf16.mxu0 0
      %600 = vmatpush1.bf16.xpose.msra.mxu0 0
      %601 = vmatprep.subr.bf16.mxu0 0
      %602 = vmatpush1.bf16.xpose.msra.mxu0 0
      %603 = vmatprep.mubr.bf16.mxu0 0
      %604 = vmatmul.mubr.bf16.gmra.mrb[0].mxu0 %v566
      %v605 = vpop.f32.mrb[0].mxu0
      %v606 = vadd.f32 0.0, %v605
      %v607 = vpop.f32.mrb[0].mxu0
      %v608 = vpop.f32.mrb[0].mxu0
      %v609 = vpop.f32.mrb[0].mxu0
      %610 = vdwg.mxu0
      %v612 = vsel %vm564, %v533, 0
      %v615 = vsel %vm564, %v547, 0
      %617 = vmatprep.subr.bf16.mxu0 0
      %618 = vmatpush1.bf16.xpose.msra.mxu0 %v615
      %619 = vmatprep.subr.bf16.mxu0 0
      %620 = vmatpush1.bf16.xpose.msra.mxu0 0
      %621 = vmatprep.subr.bf16.mxu0 0
      %622 = vmatpush1.bf16.xpose.msra.mxu0 0
      %623 = vmatprep.subr.bf16.mxu0 0
      %624 = vmatpush1.bf16.xpose.msra.mxu0 0
      %625 = vmatprep.subr.bf16.mxu0 0
      %626 = vmatpush1.bf16.xpose.msra.mxu0 0
      %627 = vmatprep.subr.bf16.mxu0 0
      %628 = vmatpush1.bf16.xpose.msra.mxu0 0
      %629 = vmatprep.subr.bf16.mxu0 0
      %630 = vmatpush1.bf16.xpose.msra.mxu0 0
      %631 = vmatprep.subr.bf16.mxu0 0
      %632 = vmatpush1.bf16.xpose.msra.mxu0 0
      %633 = vmatprep.subr.bf16.mxu0 0
      %634 = vmatpush1.bf16.xpose.msra.mxu0 0
      %635 = vmatprep.subr.bf16.mxu0 0
      %636 = vmatpush1.bf16.xpose.msra.mxu0 0
      %637 = vmatprep.subr.bf16.mxu0 0
      %638 = vmatpush1.bf16.xpose.msra.mxu0 0
      %639 = vmatprep.subr.bf16.mxu0 0
      %640 = vmatpush1.bf16.xpose.msra.mxu0 0
      %641 = vmatprep.subr.bf16.mxu0 0
      %642 = vmatpush1.bf16.xpose.msra.mxu0 0
      %643 = vmatprep.subr.bf16.mxu0 0
      %644 = vmatpush1.bf16.xpose.msra.mxu0 0
      %645 = vmatprep.subr.bf16.mxu0 0
      %646 = vmatpush1.bf16.xpose.msra.mxu0 0
      %647 = vmatprep.subr.bf16.mxu0 0
      %648 = vmatpush1.bf16.xpose.msra.mxu0 0
      %649 = vmatprep.mubr.bf16.mxu0 0
      %650 = vmatmul.mubr.bf16.gmra.mrb[0].mxu0 %v612
      %v651 = vpop.f32.mrb[0].mxu0
      %v652 = vadd.f32 0.0, %v651
      %v653 = vpop.f32.mrb[0].mxu0
      %v654 = vpop.f32.mrb[0].mxu0
      %v655 = vpop.f32.mrb[0].mxu0
      %656 = vdwg.mxu0
      %v658 = vsel %vm564, %v534, 0
      %v661 = vsel %vm564, %v548, 0
      %663 = vmatprep.subr.bf16.mxu0 0
      %664 = vmatpush1.bf16.xpose.msra.mxu0 %v661
      %665 = vmatprep.subr.bf16.mxu0 0
      %666 = vmatpush1.bf16.xpose.msra.mxu0 0
      %667 = vmatprep.subr.bf16.mxu0 0
      %668 = vmatpush1.bf16.xpose.msra.mxu0 0
      %669 = vmatprep.subr.bf16.mxu0 0
      %670 = vmatpush1.bf16.xpose.msra.mxu0 0
      %671 = vmatprep.subr.bf16.mxu0 0
      %672 = vmatpush1.bf16.xpose.msra.mxu0 0
      %673 = vmatprep.subr.bf16.mxu0 0
      %674 = vmatpush1.bf16.xpose.msra.mxu0 0
      %675 = vmatprep.subr.bf16.mxu0 0
      %676 = vmatpush1.bf16.xpose.msra.mxu0 0
      %677 = vmatprep.subr.bf16.mxu0 0
      %678 = vmatpush1.bf16.xpose.msra.mxu0 0
      %679 = vmatprep.subr.bf16.mxu0 0
      %680 = vmatpush1.bf16.xpose.msra.mxu0 0
      %681 = vmatprep.subr.bf16.mxu0 0
      %682 = vmatpush1.bf16.xpose.msra.mxu0 0
      %683 = vmatprep.subr.bf16.mxu0 0
      %684 = vmatpush1.bf16.xpose.msra.mxu0 0
      %685 = vmatprep.subr.bf16.mxu0 0
      %686 = vmatpush1.bf16.xpose.msra.mxu0 0
      %687 = vmatprep.subr.bf16.mxu0 0
      %688 = vmatpush1.bf16.xpose.msra.mxu0 0
      %689 = vmatprep.subr.bf16.mxu0 0
      %690 = vmatpush1.bf16.xpose.msra.mxu0 0
      %691 = vmatprep.subr.bf16.mxu0 0
      %692 = vmatpush1.bf16.xpose.msra.mxu0 0
      %693 = vmatprep.subr.bf16.mxu0 0
      %694 = vmatpush1.bf16.xpose.msra.mxu0 0
      %695 = vmatprep.mubr.bf16.mxu0 0
      %696 = vmatmul.mubr.bf16.gmra.mrb[0].mxu0 %v658
      %v697 = vpop.f32.mrb[0].mxu0
      %v698 = vadd.f32 0.0, %v697
      %v699 = vpop.f32.mrb[0].mxu0
      %v700 = vpop.f32.mrb[0].mxu0
      %v701 = vpop.f32.mrb[0].mxu0
      %702 = vdwg.mxu0
      %v704 = vsel %vm564, %v535, 0
      %v707 = vsel %vm564, %v549, 0
      %709 = vmatprep.subr.bf16.mxu0 0
      %710 = vmatpush1.bf16.xpose.msra.mxu0 %v707
      %711 = vmatprep.subr.bf16.mxu0 0
      %712 = vmatpush1.bf16.xpose.msra.mxu0 0
      %713 = vmatprep.subr.bf16.mxu0 0
      %714 = vmatpush1.bf16.xpose.msra.mxu0 0
      %715 = vmatprep.subr.bf16.mxu0 0
      %716 = vmatpush1.bf16.xpose.msra.mxu0 0
      %717 = vmatprep.subr.bf16.mxu0 0
      %718 = vmatpush1.bf16.xpose.msra.mxu0 0
      %719 = vmatprep.subr.bf16.mxu0 0
      %720 = vmatpush1.bf16.xpose.msra.mxu0 0
      %721 = vmatprep.subr.bf16.mxu0 0
      %722 = vmatpush1.bf16.xpose.msra.mxu0 0
      %723 = vmatprep.subr.bf16.mxu0 0
      %724 = vmatpush1.bf16.xpose.msra.mxu0 0
      %725 = vmatprep.subr.bf16.mxu0 0
      %726 = vmatpush1.bf16.xpose.msra.mxu0 0
      %727 = vmatprep.subr.bf16.mxu0 0
      %728 = vmatpush1.bf16.xpose.msra.mxu0 0
      %729 = vmatprep.subr.bf16.mxu0 0
      %730 = vmatpush1.bf16.xpose.msra.mxu0 0
      %731 = vmatprep.subr.bf16.mxu0 0
      %732 = vmatpush1.bf16.xpose.msra.mxu0 0
      %733 = vmatprep.subr.bf16.mxu0 0
      %734 = vmatpush1.bf16.xpose.msra.mxu0 0
      %735 = vmatprep.subr.bf16.mxu0 0
      %736 = vmatpush1.bf16.xpose.msra.mxu0 0
      %737 = vmatprep.subr.bf16.mxu0 0
      %738 = vmatpush1.bf16.xpose.msra.mxu0 0
      %739 = vmatprep.subr.bf16.mxu0 0
      %740 = vmatpush1.bf16.xpose.msra.mxu0 0
      %741 = vmatprep.mubr.bf16.mxu0 0
      %742 = vmatmul.mubr.bf16.gmra.mrb[0].mxu0 %v704
      %v743 = vpop.f32.mrb[0].mxu0
      %v744 = vadd.f32 0.0, %v743
      %v745 = vpop.f32.mrb[0].mxu0
      %v746 = vpop.f32.mrb[0].mxu0
      %v747 = vpop.f32.mrb[0].mxu0
      %748 = vdwg.mxu0
      %vm749 = vcmp.eq.f32.partialorder %v347, 0.0
      %v750 = vsel %vm749, 1, 0
      %vm751 = vcmp.eq.s32.totalorder %v750, 1
      %v752 = vsel %vm751, -1.767767e+19, %v606
      %v753 = vsel %vm751, -1.767767e+19, %v652
      %v754 = vsel %vm751, -1.767767e+19, %v698
      %v755 = vsel %vm751, -1.767767e+19, %v744
      %v756 = vsel %vm564, %v752, -inf
      %757 = vmax.xlane.f32.xlu0 %v756
      %v758 = vpop.xlane.xlu0 %757
      %v759 = vsel %vm564, %v753, -inf
      %760 = vmax.xlane.f32.xlu0 %v759
      %v761 = vpop.xlane.xlu0 %760
      %v762 = vsel %vm564, %v754, -inf
      %763 = vmax.xlane.f32.xlu0 %v762
      %v764 = vpop.xlane.xlu0 %763
      %v765 = vsel %vm564, %v755, -inf
      %766 = vmax.xlane.f32.xlu0 %v765
      %v767 = vpop.xlane.xlu0 %766
      %v768 = vsub.f32 %v752, %v758
      %v769 = vsub.f32 %v753, %v761
      %v770 = vsub.f32 %v754, %v764
      %v771 = vsub.f32 %v755, %v767
      %v772 = vmul.f32 %v768, 1.442695
      %v773 = vpow.pop %v772
      %v774 = vmul.f32 %v769, 1.442695
      %v775 = vpow.pop %v774
      %v776 = vmul.f32 %v770, 1.442695
      %v777 = vpow.pop %v776
      %v778 = vmul.f32 %v771, 1.442695
      %v779 = vpow.pop %v778
      %v780 = vsel %vm564, %v773, 0.0
      %781 = vadd.xlane.f32.xlu0 %v780
      %v782 = vpop.xlane.xlu0 %781
      %v783 = vsel %vm564, %v775, 0.0
      %784 = vadd.xlane.f32.xlu0 %v783
      %v785 = vpop.xlane.xlu0 %784
      %v786 = vsel %vm564, %v777, 0.0
      %787 = vadd.xlane.f32.xlu0 %v786
      %v788 = vpop.xlane.xlu0 %787
      %v789 = vsel %vm564, %v779, 0.0
      %790 = vadd.xlane.f32.xlu0 %v789
      %v791 = vpop.xlane.xlu0 %790
      %v792 = vrcp.pop %v782
      %v793 = vrcp.pop %v785
      %v794 = vrcp.pop %v788
      %v795 = vrcp.pop %v791
      %v796 = vmul.f32 %v773, %v792
      %v797 = vmul.f32 %v775, %v793
      %v798 = vmul.f32 %v777, %v794
      %v799 = vmul.f32 %v779, %v795
      %v800 = vpack.c.bf16 %v796, %v796
      %v801 = vpack.c.bf16 %v797, %v797
      %v802 = vpack.c.bf16 %v798, %v798
      %v803 = vpack.c.bf16 %v799, %v799
      %v805 = vsel %vm564, %v800, 0
      %vm807 = vcmask 1043456
      %v809 = vsel %vm807, %v560, 0
      %811 = vmatprep.subr.bf16.mxu0 0
      %812 = vmatpush1.bf16.msra.mxu0 %v809
      %813 = vmatprep.subr.bf16.mxu0 0
      %814 = vmatpush1.bf16.msra.mxu0 0
      %815 = vmatprep.subr.bf16.mxu0 0
      %816 = vmatpush1.bf16.msra.mxu0 0
      %817 = vmatprep.subr.bf16.mxu0 0
      %818 = vmatpush1.bf16.msra.mxu0 0
      %819 = vmatprep.subr.bf16.mxu0 0
      %820 = vmatpush1.bf16.msra.mxu0 0
      %821 = vmatprep.subr.bf16.mxu0 0
      %822 = vmatpush1.bf16.msra.mxu0 0
      %823 = vmatprep.subr.bf16.mxu0 0
      %824 = vmatpush1.bf16.msra.mxu0 0
      %825 = vmatprep.subr.bf16.mxu0 0
      %826 = vmatpush1.bf16.msra.mxu0 0
      %827 = vmatprep.subr.bf16.mxu0 0
      %828 = vmatpush1.bf16.msra.mxu0 0
      %829 = vmatprep.subr.bf16.mxu0 0
      %830 = vmatpush1.bf16.msra.mxu0 0
      %831 = vmatprep.subr.bf16.mxu0 0
      %832 = vmatpush1.bf16.msra.mxu0 0
      %833 = vmatprep.subr.bf16.mxu0 0
      %834 = vmatpush1.bf16.msra.mxu0 0
      %835 = vmatprep.subr.bf16.mxu0 0
      %836 = vmatpush1.bf16.msra.mxu0 0
      %837 = vmatprep.subr.bf16.mxu0 0
      %838 = vmatpush1.bf16.msra.mxu0 0
      %839 = vmatprep.subr.bf16.mxu0 0
      %840 = vmatpush1.bf16.msra.mxu0 0
      %841 = vmatprep.subr.bf16.mxu0 0
      %842 = vmatpush1.bf16.msra.mxu0 0
      %843 = vmatprep.mubr.bf16.mxu0 0
      %844 = vmatmul.mubr.bf16.gmra.mrb[0].mxu0 %v805
      %v845 = vpop.f32.mrb[0].mxu0
      %v846 = vadd.f32 0.0, %v845
      %v847 = vpop.f32.mrb[0].mxu0
      %v848 = vpop.f32.mrb[0].mxu0
      %v849 = vpop.f32.mrb[0].mxu0
      %850 = vdwg.mxu0
      %v852 = vsel %vm564, %v801, 0
      %v855 = vsel %vm807, %v561, 0
      %857 = vmatprep.subr.bf16.mxu0 0
      %858 = vmatpush1.bf16.msra.mxu0 %v855
      %859 = vmatprep.subr.bf16.mxu0 0
      %860 = vmatpush1.bf16.msra.mxu0 0
      %861 = vmatprep.subr.bf16.mxu0 0
      %862 = vmatpush1.bf16.msra.mxu0 0
      %863 = vmatprep.subr.bf16.mxu0 0
      %864 = vmatpush1.bf16.msra.mxu0 0
      %865 = vmatprep.subr.bf16.mxu0 0
      %866 = vmatpush1.bf16.msra.mxu0 0
      %867 = vmatprep.subr.bf16.mxu0 0
      %868 = vmatpush1.bf16.msra.mxu0 0
      %869 = vmatprep.subr.bf16.mxu0 0
      %870 = vmatpush1.bf16.msra.mxu0 0
      %871 = vmatprep.subr.bf16.mxu0 0
      %872 = vmatpush1.bf16.msra.mxu0 0
      %873 = vmatprep.subr.bf16.mxu0 0
      %874 = vmatpush1.bf16.msra.mxu0 0
      %875 = vmatprep.subr.bf16.mxu0 0
      %876 = vmatpush1.bf16.msra.mxu0 0
      %877 = vmatprep.subr.bf16.mxu0 0
      %878 = vmatpush1.bf16.msra.mxu0 0
      %879 = vmatprep.subr.bf16.mxu0 0
      %880 = vmatpush1.bf16.msra.mxu0 0
      %881 = vmatprep.subr.bf16.mxu0 0
      %882 = vmatpush1.bf16.msra.mxu0 0
      %883 = vmatprep.subr.bf16.mxu0 0
      %884 = vmatpush1.bf16.msra.mxu0 0
      %885 = vmatprep.subr.bf16.mxu0 0
      %886 = vmatpush1.bf16.msra.mxu0 0
      %887 = vmatprep.subr.bf16.mxu0 0
      %888 = vmatpush1.bf16.msra.mxu0 0
      %889 = vmatprep.mubr.bf16.mxu0 0
      %890 = vmatmul.mubr.bf16.gmra.mrb[0].mxu0 %v852
      %v891 = vpop.f32.mrb[0].mxu0
      %v892 = vadd.f32 0.0, %v891
      %v893 = vpop.f32.mrb[0].mxu0
      %v894 = vpop.f32.mrb[0].mxu0
      %v895 = vpop.f32.mrb[0].mxu0
      %896 = vdwg.mxu0
      %v898 = vsel %vm564, %v802, 0
      %v901 = vsel %vm807, %v562, 0
      %903 = vmatprep.subr.bf16.mxu0 0
      %904 = vmatpush1.bf16.msra.mxu0 %v901
      %905 = vmatprep.subr.bf16.mxu0 0
      %906 = vmatpush1.bf16.msra.mxu0 0
      %907 = vmatprep.subr.bf16.mxu0 0
      %908 = vmatpush1.bf16.msra.mxu0 0
      %909 = vmatprep.subr.bf16.mxu0 0
      %910 = vmatpush1.bf16.msra.mxu0 0
      %911 = vmatprep.subr.bf16.mxu0 0
      %912 = vmatpush1.bf16.msra.mxu0 0
      %913 = vmatprep.subr.bf16.mxu0 0
      %914 = vmatpush1.bf16.msra.mxu0 0
      %915 = vmatprep.subr.bf16.mxu0 0
      %916 = vmatpush1.bf16.msra.mxu0 0
      %917 = vmatprep.subr.bf16.mxu0 0
      %918 = vmatpush1.bf16.msra.mxu0 0
      %919 = vmatprep.subr.bf16.mxu0 0
      %920 = vmatpush1.bf16.msra.mxu0 0
      %921 = vmatprep.subr.bf16.mxu0 0
      %922 = vmatpush1.bf16.msra.mxu0 0
      %923 = vmatprep.subr.bf16.mxu0 0
      %924 = vmatpush1.bf16.msra.mxu0 0
      %925 = vmatprep.subr.bf16.mxu0 0
      %926 = vmatpush1.bf16.msra.mxu0 0
      %927 = vmatprep.subr.bf16.mxu0 0
      %928 = vmatpush1.bf16.msra.mxu0 0
      %929 = vmatprep.subr.bf16.mxu0 0
      %930 = vmatpush1.bf16.msra.mxu0 0
      %931 = vmatprep.subr.bf16.mxu0 0
      %932 = vmatpush1.bf16.msra.mxu0 0
      %933 = vmatprep.subr.bf16.mxu0 0
      %934 = vmatpush1.bf16.msra.mxu0 0
      %935 = vmatprep.mubr.bf16.mxu0 0
      %936 = vmatmul.mubr.bf16.gmra.mrb[0].mxu0 %v898
      %v937 = vpop.f32.mrb[0].mxu0
      %v938 = vadd.f32 0.0, %v937
      %v939 = vpop.f32.mrb[0].mxu0
      %v940 = vpop.f32.mrb[0].mxu0
      %v941 = vpop.f32.mrb[0].mxu0
      %942 = vdwg.mxu0
      %v944 = vsel %vm564, %v803, 0
      %v947 = vsel %vm807, %v563, 0
      %949 = vmatprep.subr.bf16.mxu0 0
      %950 = vmatpush1.bf16.msra.mxu0 %v947
      %951 = vmatprep.subr.bf16.mxu0 0
      %952 = vmatpush1.bf16.msra.mxu0 0
      %953 = vmatprep.subr.bf16.mxu0 0
      %954 = vmatpush1.bf16.msra.mxu0 0
      %955 = vmatprep.subr.bf16.mxu0 0
      %956 = vmatpush1.bf16.msra.mxu0 0
      %957 = vmatprep.subr.bf16.mxu0 0
      %958 = vmatpush1.bf16.msra.mxu0 0
      %959 = vmatprep.subr.bf16.mxu0 0
      %960 = vmatpush1.bf16.msra.mxu0 0
      %961 = vmatprep.subr.bf16.mxu0 0
      %962 = vmatpush1.bf16.msra.mxu0 0
      %963 = vmatprep.subr.bf16.mxu0 0
      %964 = vmatpush1.bf16.msra.mxu0 0
      %965 = vmatprep.subr.bf16.mxu0 0
      %966 = vmatpush1.bf16.msra.mxu0 0
      %967 = vmatprep.subr.bf16.mxu0 0
      %968 = vmatpush1.bf16.msra.mxu0 0
      %969 = vmatprep.subr.bf16.mxu0 0
      %970 = vmatpush1.bf16.msra.mxu0 0
      %971 = vmatprep.subr.bf16.mxu0 0
      %972 = vmatpush1.bf16.msra.mxu0 0
      %973 = vmatprep.subr.bf16.mxu0 0
      %974 = vmatpush1.bf16.msra.mxu0 0
      %975 = vmatprep.subr.bf16.mxu0 0
      %976 = vmatpush1.bf16.msra.mxu0 0
      %977 = vmatprep.subr.bf16.mxu0 0
      %978 = vmatpush1.bf16.msra.mxu0 0
      %979 = vmatprep.subr.bf16.mxu0 0
      %980 = vmatpush1.bf16.msra.mxu0 0
      %981 = vmatprep.mubr.bf16.mxu0 0
      %982 = vmatmul.mubr.bf16.gmra.mrb[0].mxu0 %v944
      %v983 = vpop.f32.mrb[0].mxu0
      %v984 = vadd.f32 0.0, %v983
      %v985 = vpop.f32.mrb[0].mxu0
      %v986 = vpop.f32.mrb[0].mxu0
      %v987 = vpop.f32.mrb[0].mxu0
      %988 = vdwg.mxu0
      %v989 = vpack.c.bf16 %v846, %v846
      %v990 = vpack.c.bf16 %v892, %v892
      %v991 = vpack.c.bf16 %v938, %v938
      %v992 = vpack.c.bf16 %v984, %v984
      %v993 = vld [vmem:[%s5] sm:$0xf]
      %v994 = vld [vmem:[%s5 + $0x4] sm:$0xf]
      %v995 = vld [vmem:[%s5 + $0x8] sm:$0xf]
      %v996 = vld [vmem:[%s5 + $0xc] sm:$0xf]
      %v998 = vsel %vm564, %v989, 0
      %v1001 = vsel %vm807, %v993, 0
      %1003 = vmatprep.subr.bf16.mxu0 0
      %1004 = vmatpush1.bf16.msra.mxu0 %v1001
      %1005 = vmatprep.subr.bf16.mxu0 0
      %1006 = vmatpush1.bf16.msra.mxu0 0
      %1007 = vmatprep.subr.bf16.mxu0 0
      %1008 = vmatpush1.bf16.msra.mxu0 0
      %1009 = vmatprep.subr.bf16.mxu0 0
      %1010 = vmatpush1.bf16.msra.mxu0 0
      %1011 = vmatprep.subr.bf16.mxu0 0
      %1012 = vmatpush1.bf16.msra.mxu0 0
      %1013 = vmatprep.subr.bf16.mxu0 0
      %1014 = vmatpush1.bf16.msra.mxu0 0
      %1015 = vmatprep.subr.bf16.mxu0 0
      %1016 = vmatpush1.bf16.msra.mxu0 0
      %1017 = vmatprep.subr.bf16.mxu0 0
      %1018 = vmatpush1.bf16.msra.mxu0 0
      %1019 = vmatprep.subr.bf16.mxu0 0
      %1020 = vmatpush1.bf16.msra.mxu0 0
      %1021 = vmatprep.subr.bf16.mxu0 0
      %1022 = vmatpush1.bf16.msra.mxu0 0
      %1023 = vmatprep.subr.bf16.mxu0 0
      %1024 = vmatpush1.bf16.msra.mxu0 0
      %1025 = vmatprep.subr.bf16.mxu0 0
      %1026 = vmatpush1.bf16.msra.mxu0 0
      %1027 = vmatprep.subr.bf16.mxu0 0
      %1028 = vmatpush1.bf16.msra.mxu0 0
      %1029 = vmatprep.subr.bf16.mxu0 0
      %1030 = vmatpush1.bf16.msra.mxu0 0
      %1031 = vmatprep.subr.bf16.mxu0 0
      %1032 = vmatpush1.bf16.msra.mxu0 0
      %1033 = vmatprep.subr.bf16.mxu0 0
      %1034 = vmatpush1.bf16.msra.mxu0 0
      %1035 = vmatprep.mubr.bf16.mxu0 0
      %1036 = vmatmul.mubr.bf16.gmra.mrb[0].mxu0 %v998
      %v1037 = vpop.f32.mrb[0].mxu0
      %v1038 = vadd.f32 0.0, %v1037
      %v1039 = vpop.f32.mrb[0].mxu0
      %v1040 = vpop.f32.mrb[0].mxu0
      %v1041 = vpop.f32.mrb[0].mxu0
      %1042 = vdwg.mxu0
      %v1044 = vsel %vm564, %v990, 0
      %v1047 = vsel %vm807, %v994, 0
      %1049 = vmatprep.subr.bf16.mxu0 0
      %1050 = vmatpush1.bf16.msra.mxu0 %v1047
      %1051 = vmatprep.subr.bf16.mxu0 0
      %1052 = vmatpush1.bf16.msra.mxu0 0
      %1053 = vmatprep.subr.bf16.mxu0 0
      %1054 = vmatpush1.bf16.msra.mxu0 0
      %1055 = vmatprep.subr.bf16.mxu0 0
      %1056 = vmatpush1.bf16.msra.mxu0 0
      %1057 = vmatprep.subr.bf16.mxu0 0
      %1058 = vmatpush1.bf16.msra.mxu0 0
      %1059 = vmatprep.subr.bf16.mxu0 0
      %1060 = vmatpush1.bf16.msra.mxu0 0
      %1061 = vmatprep.subr.bf16.mxu0 0
      %1062 = vmatpush1.bf16.msra.mxu0 0
      %1063 = vmatprep.subr.bf16.mxu0 0
      %1064 = vmatpush1.bf16.msra.mxu0 0
      %1065 = vmatprep.subr.bf16.mxu0 0
      %1066 = vmatpush1.bf16.msra.mxu0 0
      %1067 = vmatprep.subr.bf16.mxu0 0
      %1068 = vmatpush1.bf16.msra.mxu0 0
      %1069 = vmatprep.subr.bf16.mxu0 0
      %1070 = vmatpush1.bf16.msra.mxu0 0
      %1071 = vmatprep.subr.bf16.mxu0 0
      %1072 = vmatpush1.bf16.msra.mxu0 0
      %1073 = vmatprep.subr.bf16.mxu0 0
      %1074 = vmatpush1.bf16.msra.mxu0 0
      %1075 = vmatprep.subr.bf16.mxu0 0
      %1076 = vmatpush1.bf16.msra.mxu0 0
      %1077 = vmatprep.subr.bf16.mxu0 0
      %1078 = vmatpush1.bf16.msra.mxu0 0
      %1079 = vmatprep.subr.bf16.mxu0 0
      %1080 = vmatpush1.bf16.msra.mxu0 0
      %1081 = vmatprep.mubr.bf16.mxu0 0
      %1082 = vmatmul.mubr.bf16.gmra.mrb[0].mxu0 %v1044
      %v1083 = vpop.f32.mrb[0].mxu0
      %v1084 = vadd.f32 0.0, %v1083
      %v1085 = vpop.f32.mrb[0].mxu0
      %v1086 = vpop.f32.mrb[0].mxu0
      %v1087 = vpop.f32.mrb[0].mxu0
      %1088 = vdwg.mxu0
      %v1090 = vsel %vm564, %v991, 0
      %v1093 = vsel %vm807, %v995, 0
      %1095 = vmatprep.subr.bf16.mxu0 0
      %1096 = vmatpush1.bf16.msra.mxu0 %v1093
      %1097 = vmatprep.subr.bf16.mxu0 0
      %1098 = vmatpush1.bf16.msra.mxu0 0
      %1099 = vmatprep.subr.bf16.mxu0 0
      %1100 = vmatpush1.bf16.msra.mxu0 0
      %1101 = vmatprep.subr.bf16.mxu0 0
      %1102 = vmatpush1.bf16.msra.mxu0 0
      %1103 = vmatprep.subr.bf16.mxu0 0
      %1104 = vmatpush1.bf16.msra.mxu0 0
      %1105 = vmatprep.subr.bf16.mxu0 0
      %1106 = vmatpush1.bf16.msra.mxu0 0
      %1107 = vmatprep.subr.bf16.mxu0 0
      %1108 = vmatpush1.bf16.msra.mxu0 0
      %1109 = vmatprep.subr.bf16.mxu0 0
      %1110 = vmatpush1.bf16.msra.mxu0 0
      %1111 = vmatprep.subr.bf16.mxu0 0
      %1112 = vmatpush1.bf16.msra.mxu0 0
      %1113 = vmatprep.subr.bf16.mxu0 0
      %1114 = vmatpush1.bf16.msra.mxu0 0
      %1115 = vmatprep.subr.bf16.mxu0 0
      %1116 = vmatpush1.bf16.msra.mxu0 0
      %1117 = vmatprep.subr.bf16.mxu0 0
      %1118 = vmatpush1.bf16.msra.mxu0 0
      %1119 = vmatprep.subr.bf16.mxu0 0
      %1120 = vmatpush1.bf16.msra.mxu0 0
      %1121 = vmatprep.subr.bf16.mxu0 0
      %1122 = vmatpush1.bf16.msra.mxu0 0
      %1123 = vmatprep.subr.bf16.mxu0 0
      %1124 = vmatpush1.bf16.msra.mxu0 0
      %1125 = vmatprep.subr.bf16.mxu0 0
      %1126 = vmatpush1.bf16.msra.mxu0 0
      %1127 = vmatprep.mubr.bf16.mxu0 0
      %1128 = vmatmul.mubr.bf16.gmra.mrb[0].mxu0 %v1090
      %v1129 = vpop.f32.mrb[0].mxu0
      %v1130 = vadd.f32 0.0, %v1129
      %v1131 = vpop.f32.mrb[0].mxu0
      %v1132 = vpop.f32.mrb[0].mxu0
      %v1133 = vpop.f32.mrb[0].mxu0
      %1134 = vdwg.mxu0
      %v1136 = vsel %vm564, %v992, 0
      %v1139 = vsel %vm807, %v996, 0
      %1141 = vmatprep.subr.bf16.mxu0 0
      %1142 = vmatpush1.bf16.msra.mxu0 %v1139
      %1143 = vmatprep.subr.bf16.mxu0 0
      %1144 = vmatpush1.bf16.msra.mxu0 0
      %1145 = vmatprep.subr.bf16.mxu0 0
      %1146 = vmatpush1.bf16.msra.mxu0 0
      %1147 = vmatprep.subr.bf16.mxu0 0
      %1148 = vmatpush1.bf16.msra.mxu0 0
      %1149 = vmatprep.subr.bf16.mxu0 0
      %1150 = vmatpush1.bf16.msra.mxu0 0
      %1151 = vmatprep.subr.bf16.mxu0 0
      %1152 = vmatpush1.bf16.msra.mxu0 0
      %1153 = vmatprep.subr.bf16.mxu0 0
      %1154 = vmatpush1.bf16.msra.mxu0 0
      %1155 = vmatprep.subr.bf16.mxu0 0
      %1156 = vmatpush1.bf16.msra.mxu0 0
      %1157 = vmatprep.subr.bf16.mxu0 0
      %1158 = vmatpush1.bf16.msra.mxu0 0
      %1159 = vmatprep.subr.bf16.mxu0 0
      %1160 = vmatpush1.bf16.msra.mxu0 0
      %1161 = vmatprep.subr.bf16.mxu0 0
      %1162 = vmatpush1.bf16.msra.mxu0 0
      %1163 = vmatprep.subr.bf16.mxu0 0
      %1164 = vmatpush1.bf16.msra.mxu0 0
      %1165 = vmatprep.subr.bf16.mxu0 0
      %1166 = vmatpush1.bf16.msra.mxu0 0
      %1167 = vmatprep.subr.bf16.mxu0 0
      %1168 = vmatpush1.bf16.msra.mxu0 0
      %1169 = vmatprep.subr.bf16.mxu0 0
      %1170 = vmatpush1.bf16.msra.mxu0 0
      %1171 = vmatprep.subr.bf16.mxu0 0
      %1172 = vmatpush1.bf16.msra.mxu0 0
      %1173 = vmatprep.mubr.bf16.mxu0 0
      %1174 = vmatmul.mubr.bf16.gmra.mrb[0].mxu0 %v1136
      %v1175 = vpop.f32.mrb[0].mxu0
      %v1176 = vadd.f32 0.0, %v1175
      %v1177 = vpop.f32.mrb[0].mxu0
      %v1178 = vpop.f32.mrb[0].mxu0
      %v1179 = vpop.f32.mrb[0].mxu0
      %1180 = vdwg.mxu0
      %v1181 = vsel %vm365, %v1038, 0.0
      %v1182 = vsel %vm365, %v1084, 0.0
      %v1183 = vadd.f32 %v1181, %v1182
      %v1184 = vsel %vm365, %v1130, 0.0
      %v1185 = vadd.f32 %v1183, %v1184
      %v1186 = vsel %vm365, %v1176, 0.0
      %v1187 = vadd.f32 %v1185, %v1186
      %v1188 = vld [vmem:[%s6] sm:$0x1]
      %v1190 = vlaneseq
      %v1191 = vshrl.u32 %v1190, 7
      %v1192 = vsub.s32 0, %v1191
      %v1193 = vrot.slane %v1188, %v1192
      %v1195 = vadd.f32 %v1187, %v1193
      %v1196 = vadd.f32 %v1195, %v346
      %v1197 = vsel %vm365, %v1196, 0.0
      %1198 = vadd.xlane.f32.xlu0 %v1197
      %v1199 = vpop.xlane.xlu0 %1198
      %v1200 = vrcp.pop 32.0
      %v1201 = vmul.f32 %v1199, %v1200
      %v1202 = vsub.f32 %v1196, %v1201
      %v1203 = vmul.f32 %v1202, %v1202
      %v1204 = vsel %vm365, %v1203, 0.0
      %1205 = vadd.xlane.f32.xlu0 %v1204
      %v1206 = vpop.xlane.xlu0 %1205
      %v1207 = vmul.f32 %v1206, %v1200
      %v1208 = vadd.f32 %v1207, 1e-05
      %v1209 = vrsqrt.pop %v1208
      %v1210 = vmul.f32 %v1202, %v1209
      %v1211 = vld [vmem:[%s7] sm:$0x1]
      %v1213 = vlaneseq
      %v1214 = vshrl.u32 %v1213, 7
      %v1215 = vsub.s32 0, %v1214
      %v1216 = vrot.slane %v1211, %v1215
      %v1218 = vmul.f32 %v1210, %v1216
      %v1219 = vld [vmem:[%s8] sm:$0x1]
      %v1221 = vlaneseq
      %v1222 = vshrl.u32 %v1221, 7
      %v1223 = vsub.s32 0, %v1222
      %v1224 = vrot.slane %v1219, %v1223
      %v1226 = vadd.f32 %v1218, %v1224
      %1227 = vst.msk [vmem:[%s344] sm:$0xff] %vm365, %v1226
      %p1228 = scmp.lt.s32.totalorder %s20, 1
      %s1229 = scalar_select %p1228, %s20, 1
      %s1230 = smul.addr %s1229, 8
      %s1231 = scalar_lea.vmem %s9, %s1230
      // Predicated region
      $region57: #{decoder_block.3} parent=55 // pred_check
        %p1232 = pneg %p237
      $region58: #{decoder_block.3} parent=55 // pred_check_branch
        %1234 = sbr.rel (%p1232) target = $region60
      $region59: #{decoder_block.3} parent=55 // pred_region
        _
      $region60: #{decoder_block.3} parent=55 // pred_fallthru
        _
    $region56: #{decoder_block.3} parent=5 // pred_fallthru
      _
    %p1235 = scmp.le.s32.totalorder 2, %s15
    // Predicated region
    $region61: #{decoder_block.3} parent=5 // pred_check
      %p1236 = pneg %p1235
    $region62: #{decoder_block.3} parent=5 // pred_check_branch
      %1238 = sbr.rel (%p1236) target = $region64
    $region63: #{decoder_block.3} parent=5 // pred_region
      %s1239 = ssub.s32 %s15, 2
      // Predicated region
      $region65: #{decoder_block.3} parent=63 // pred_check
        %p1240 = pneg %p243
      $region66: #{decoder_block.3} parent=63 // pred_check_branch
        %1242 = sbr.rel (%p1240) target = $region68
      $region67: #{decoder_block.3} parent=63 // pred_region
        %p1243 = scmp.lt.s32.totalorder %s21, 1
        %s1244 = scalar_select %p1243, %s21, 1
        %s1245 = smul.addr %s1244, 8
        %s1246 = scalar_lea.vmem %s9, %s1245
      $region68: #{decoder_block.3} parent=63 // pred_fallthru
        _
    $region64: #{decoder_block.3} parent=5 // pred_fallthru
      _
  $region6: #{decoder_block.3} parent=0 // loop_footer
    %s19 = sadd.s32 1, %s15
  $region7: #{decoder_block.3} parent=0 // loop_footer_branch
    %14 = sbr.rel target = $region3
  $region8: #{decoder_block.3} parent=0 // loop_exit
    _

</llo_original>
